<compile_context>
chip_gen: v7x
topology: tpu7x:2x2x1
jax: 0.10.0
libtpu: 0.0.40
codegen_flags: <defaults>
</compile_context>

<pallas_src>
import functools

import jax
import jax.numpy as jnp
from jax import lax
from jax.experimental import pallas as pl
from jax.experimental.pallas import tpu as pltpu


VMEM_LIMIT_BYTES = 32 * 1024 * 1024   # safe on v5e/v6e (128 MiB) and v7x (64 MiB)


# --------------------------------- kernel ------------------------------------

def decoder_block_kernel(enc_ref, dec_ref, sbias_ref, xbias_ref,
                         wq1_ref, wk1_ref, wv1_ref, wo1_ref, ln1s_ref, ln1b_ref,
                         wq2_ref, wk2_ref, wv2_ref, wo2_ref, ln2s_ref, ln2b_ref,
                         w1_ref, b1_ref, w2_ref, b2_ref, ln3s_ref, ln3b_ref,
                         out_ref, *, num_heads, approx_recip):
    Bd, Sd, D = dec_ref.shape            # Bd = batch elements in this block
    _, Se, _ = enc_ref.shape
    H = num_heads
    hd = D // H
    Td = Bd * Sd                          # decoder tokens in this block
    Te = Bd * Se                          # encoder tokens in this block
    inv_scale = 1.0 / (D ** 0.5)          # matches PyTorch: d_model**-0.5 scaling
    cdt = wq1_ref.dtype                   # MXU operand dtype (f32 or bf16 - any gen)

    def layernorm(x, scale, shift, eps=1e-5):
        mean = jnp.mean(x, axis=-1, keepdims=True)
        cent = x - mean
        var = jnp.mean(cent * cent, axis=-1, keepdims=True)      # unbiased=False
        return scale * (cent * lax.rsqrt(var + eps)) + shift     # rsqrt -> EUP

    # Per-head lane masks (H, D): 1.0 on head h's feature columns.  Built once
    # with iota + integer compares (no div/mod).  1/sqrt(d_model) is folded
    # into the Q-side mask so the (H, T, T) scores need no extra scaling pass.
    h_ids = lax.broadcasted_iota(jnp.int32, (H, D), 0)
    d_ids = lax.broadcasted_iota(jnp.int32, (H, D), 1)
    head_mask = jnp.logical_and(d_ids >= h_ids * hd,
                                d_ids < (h_ids + 1) * hd).astype(jnp.float32)
    q_mask = head_mask * inv_scale

    def attention(xq_c, xkv_c, wq_ref, wk_ref, wv_ref, wo_ref, bias):
        Tq, Tk = xq_c.shape[0], xkv_c.shape[0]
        q = jnp.dot(xq_c, wq_ref[...], preferred_element_type=jnp.float32)
        k = jnp.dot(xkv_c, wk_ref[...], preferred_element_type=jnp.float32)
        v = jnp.dot(xkv_c, wv_ref[...], preferred_element_type=jnp.float32)
        # Head-batched attention without sub-128-lane slicing or concatenation:
        # per-head operands stay full D lanes wide (other heads' lanes zeroed),
        # so both contractions are single einsums batched over the head axis.
        q_h = (q[None, :, :] * q_mask[:, None, :]).astype(cdt)            # (H,Tq,D)
        k_h = jnp.broadcast_to(k.astype(cdt)[None, :, :], (H, Tk, D))     # (H,Tk,D)
        v_h = (v[None, :, :] * head_mask[:, None, :]).astype(cdt)         # (H,Tk,D)
        s = jnp.einsum('hqd,hkd->hqk', q_h, k_h,
                       preferred_element_type=jnp.float32)                # (H,Tq,Tk)
        s = s + bias                        # additive causal / batch-block bias
        m = jnp.max(s, axis=-1, keepdims=True)
        e = jnp.exp(s - m)                                                # f32 softmax
        p = e * pl.reciprocal(jnp.sum(e, axis=-1, keepdims=True),
                              approx=approx_recip)
        ctx_h = jnp.einsum('hqk,hkd->hqd', p.astype(cdt), v_h,
                           preferred_element_type=jnp.float32)            # (H,Tq,D)
        # Heads occupy disjoint lane blocks -> token-major context is a plain
        # add-tree over the tiny static head axis (no relayout, no concat).
        ctx = ctx_h[0]
        for h in range(1, H):
            ctx = ctx + ctx_h[h]
        return jnp.dot(ctx.astype(cdt), wo_ref[...],
                       preferred_element_type=jnp.float32)                # (Tq, D)

    x = dec_ref[...].reshape(Td, D)                 # token-major activations (f32)
    enc_c = enc_ref[...].reshape(Te, D).astype(cdt)  # cast once for K/V projections
    sbias = sbias_ref[...]
    xbias = xbias_ref[...]

    # 1) masked self-attention + residual + LayerNorm
    x_c = x.astype(cdt)                    # cast once; reused by Q/K/V matmuls
    attn = attention(x_c, x_c, wq1_ref, wk1_ref, wv1_ref, wo1_ref, sbias)
    x = layernorm(x + attn, ln1s_ref[...], ln1b_ref[...])

    # 2) cross-attention (queries from decoder, keys/values from encoder)
    x_c = x.astype(cdt)
    cattn = attention(x_c, enc_c, wq2_ref, wk2_ref, wv2_ref, wo2_ref, xbias)
    x = layernorm(x + cattn, ln2s_ref[...], ln2b_ref[...])

    # 3) feed-forward (Linear -> ReLU -> Linear) + residual + LayerNorm
    x_c = x.astype(cdt)
    ffh = jnp.maximum(
        jnp.dot(x_c, w1_ref[...], preferred_element_type=jnp.float32) + b1_ref[...],
        0.0)
    ff = jnp.dot(ffh.astype(cdt), w2_ref[...],
                 preferred_element_type=jnp.float32) + b2_ref[...]
    x = layernorm(x + ff, ln3s_ref[...], ln3b_ref[...])

    # Lane-dense output slab: last dim Sd*D (multiple of 128 at these shapes)
    # so the HBM writeback is an unmasked full-lane store rather than 32-lane
    # masked stores.  The in-VMEM flatten is a deliberate, cheap relayout.
    x3 = x.reshape(Bd, Sd, D)
    slab = jnp.concatenate([x3[:, s:s + 1, :] for s in range(Sd)], axis=-1)
    out_ref[...] = slab.astype(out_ref.dtype)        # (Bd, 1, Sd*D)


# --------------------------------- wrapper -----------------------------------

def decoder_block(enc_output, dec_input, params, num_heads, *,
                  compute_dtype=jnp.float32, per_batch_grid=False):
    """Fused DecoderBlock forward.

    compute_dtype: dtype of MXU operands (projection weights and matmul
        inputs).  bfloat16 is recommended on ALL TPU generations (v5e, v6e,
        v7x) — the MXU is bf16-native everywhere; softmax, residuals,
        LayerNorm and all accumulations stay in float32.  float32 is the
        default only for bit-accurate validation.
    per_batch_grid: if True, use a size-B "parallel" grid (one batch element
        per step) so v7x's two TensorCores split the batch.  On single-TC
        chips (v5e/v6e) the default single-invocation kernel is preferable
        (weights DMA'd once, no per-step overhead).
    """
    B, S, D = dec_input.shape
    Be, Se, De = enc_output.shape
    assert B == Be and D == De, "encoder/decoder batch and d_model must match"
    assert D % num_heads == 0, "d_model must be divisible by num_heads"

    approx_recip = bool(jnp.dtype(compute_dtype) != jnp.dtype(jnp.float32))

    # MXU weights in the compute dtype; LayerNorm params / biases stay f32.
    mm_keys = ("wq1", "wk1", "wv1", "wo1", "wq2", "wk2", "wv2", "wo2", "w1", "w2")
    wc = {k: params[k].astype(compute_dtype) for k in mm_keys}
    weights = [
        wc["wq1"], wc["wk1"], wc["wv1"], wc["wo1"], params["ln1s"], params["ln1b"],
        wc["wq2"], wc["wk2"], wc["wv2"], wc["wo2"], params["ln2s"], params["ln2b"],
        wc["w1"], params["b1"], wc["w2"], params["b2"], params["ln3s"], params["ln3b"],
    ]

    # Precomputed additive mask biases (0 / large-negative), added once to the
    # head-batched scores inside the kernel.
    if per_batch_grid:
        r = jnp.arange(S)[:, None]
        c = jnp.arange(S)[None, :]
        self_bias = jnp.where(c <= r, 0.0, -1e30).astype(jnp.float32)      # causal
        cross_bias = jnp.zeros((S, Se), jnp.float32)                        # no mask
    else:
        Td, Te = B * S, B * Se
        rd = jnp.arange(Td)[:, None]
        cd = jnp.arange(Td)[None, :]
        same_b = (rd // S) == (cd // S)        # tokens of all B elements are folded
        self_bias = jnp.where(same_b & (cd <= rd), 0.0, -1e30).astype(jnp.float32)
        ce = jnp.arange(Te)[None, :]
        cross_bias = jnp.where((rd // S) == (ce // Se), 0.0, -1e30).astype(jnp.float32)

    operands = (enc_output, dec_input, self_bias, cross_bias, *weights)

    kernel = functools.partial(decoder_block_kernel, num_heads=num_heads,
                               approx_recip=approx_recip)

    # Output as a lane-dense slab (last dim S*D); reshaped back outside.
    out_shape = jax.ShapeDtypeStruct((B, 1, S * D), jnp.float32)

    # Advisory cost estimate for the XLA scheduler.
    Td, Te = B * S, B * Se
    flops = (2 * Td * D * D * 6 + 2 * Te * D * D * 2            # projections
             + 2 * 2 * num_heads * Td * Td * D                  # self-attn
             + 2 * 2 * num_heads * Td * Te * D                  # cross-attn
             + 2 * 2 * Td * D * (4 * D))                        # FFN
    cost = pl.CostEstimate(
        flops=int(flops),
        transcendentals=int(num_heads * Td * Td + num_heads * Td * Te + 6 * Td),
        bytes_accessed=int(sum(int(a.size) * a.dtype.itemsize for a in operands)
                           + B * S * D * 4),
    )

    if per_batch_grid:
        # v7x: 2 TensorCores per chip -> shard the batch across cores.
        # TODO(synk): for large S add a (batch x q-block) grid so each core
        #             has multiple steps to pipeline the weight DMA behind.
        enc_spec = pl.BlockSpec((1, Se, D), lambda b: (b, 0, 0))
        dec_spec = pl.BlockSpec((1, S, D), lambda b: (b, 0, 0))

        def const_spec(a):
            return pl.BlockSpec(a.shape, lambda b, n=a.ndim: (0,) * n)

        out = pl.pallas_call(
            kernel,
            out_shape=out_shape,
            grid=(B,),
            in_specs=[enc_spec, dec_spec] + [const_spec(a) for a in operands[2:]],
            out_specs=pl.BlockSpec((1, 1, S * D), lambda b: (b, 0, 0)),
            compiler_params=pltpu.CompilerParams(
                dimension_semantics=("parallel",),
                vmem_limit_bytes=VMEM_LIMIT_BYTES),
            cost_estimate=cost,
        )(*operands)
    else:
        # Single invocation: whole batch resident in VMEM, weights DMA'd once.
        # Explicit VMEM placement for every operand.
        vmem_spec = pl.BlockSpec(memory_space=pltpu.MemorySpace.VMEM)
        out = pl.pallas_call(
            kernel,
            out_shape=out_shape,
            in_specs=[vmem_spec] * len(operands),
            out_specs=vmem_spec,
            compiler_params=pltpu.CompilerParams(
                vmem_limit_bytes=VMEM_LIMIT_BYTES),
            cost_estimate=cost,
        )(*operands)

    return out.reshape(B, S, D)


# -------------------------- pure-JAX reference --------------------------------

def _ref_mha(x_q, x_kv, wq, wk, wv, wo, num_heads, d_model, masked):
    B, Sq, _ = x_q.shape
    Sk = x_kv.shape[1]
    hd = d_model // num_heads
    q = (x_q @ wq).reshape(B, Sq, num_heads, hd).transpose(0, 2, 1, 3)
    k = (x_kv @ wk).reshape(B, Sk, num_heads, hd).transpose(0, 2, 1, 3)
    v = (x_kv @ wv).reshape(B, Sk, num_heads, hd).transpose(0, 2, 1, 3)
    scores = jnp.einsum("bhqd,bhkd->bhqk", q, k)
    if masked:
        mask = jnp.triu(jnp.ones((Sq, Sk), bool), k=1)
        scores = jnp.where(mask, -jnp.inf, scores)
    w = jax.nn.softmax(scores / (d_model ** 0.5), axis=-1)
    ctx = jnp.einsum("bhqk,bhkd->bhqd", w, v).transpose(0, 2, 1, 3)
    return ctx.reshape(B, Sq, d_model) @ wo


def _ref_ln(x, s, b, eps=1e-5):
    m = x.mean(-1, keepdims=True)
    v = ((x - m) ** 2).mean(-1, keepdims=True)
    return s * (x - m) / jnp.sqrt(v + eps) + b


def decoder_block_reference(enc, dec, p, num_heads):
    D = dec.shape[-1]
    x = dec
    x = _ref_ln(x + _ref_mha(x, x, p["wq1"], p["wk1"], p["wv1"], p["wo1"],
                             num_heads, D, True), p["ln1s"], p["ln1b"])
    x = _ref_ln(x + _ref_mha(x, enc, p["wq2"], p["wk2"], p["wv2"], p["wo2"],
                             num_heads, D, False), p["ln2s"], p["ln2b"])
    ff = jnp.maximum(x @ p["w1"] + p["b1"], 0.0) @ p["w2"] + p["b2"]
    x = _ref_ln(x + ff, p["ln3s"], p["ln3b"])
    return x


# ----------------------------------- main -------------------------------------

if __name__ == "__main__":
    B, S, D, H = 2, 8, 32, 4  # batch, seq_len, d_model, num_heads

    key = jax.random.PRNGKey(0)
    keys = jax.random.split(key, 16)

    def w(k, shape, scale=0.1):
        return (scale * jax.random.normal(k, shape)).astype(jnp.float32)

    params = {
        "wq1": w(keys[0], (D, D)), "wk1": w(keys[1], (D, D)),
        "wv1": w(keys[2], (D, D)), "wo1": w(keys[3], (D, D)),
        "ln1s": jnp.ones((1, D), jnp.float32), "ln1b": jnp.zeros((1, D), jnp.float32),
        "wq2": w(keys[4], (D, D)), "wk2": w(keys[5], (D, D)),
        "wv2": w(keys[6], (D, D)), "wo2": w(keys[7], (D, D)),
        "ln2s": jnp.ones((1, D), jnp.float32), "ln2b": jnp.zeros((1, D), jnp.float32),
        "w1": w(keys[8], (D, 4 * D)), "b1": w(keys[9], (1, 4 * D)),
        "w2": w(keys[10], (4 * D, D)), "b2": w(keys[11], (1, D)),
        "ln3s": jnp.ones((1, D), jnp.float32), "ln3b": jnp.zeros((1, D), jnp.float32),
    }

    enc_output = jax.random.normal(keys[12], (B, S, D), jnp.float32)
    dec_input = jax.random.normal(keys[13], (B, S, D), jnp.float32)

    ref = decoder_block_reference(enc_output, dec_input, params, num_heads=H)

    # Default path: single-invocation kernel, f32 MXU operands, exact softmax.
    out = jax.block_until_ready(decoder_block(enc_output, dec_input, params, H))
    assert out.shape == (B, S, D)
    assert jnp.allclose(out, ref, atol=2e-2, rtol=2e-2), "f32 kernel mismatch vs reference"

    # Fast path (any generation): bf16 MXU operands + per-batch 'parallel'
    # grid (one batch element per TensorCore on v7x). Looser tolerance for bf16.
    out_fast = jax.block_until_ready(
        decoder_block(enc_output, dec_input, params, H,
                      compute_dtype=jnp.bfloat16, per_batch_grid=True))
    assert out_fast.shape == (B, S, D)
    assert jnp.allclose(out_fast, ref, atol=1e-1, rtol=1e-1), "bf16 kernel mismatch vs reference"

    print("KERNEL_OK")
</pallas_src>

<mosaic_0001>
module attributes {stable_mosaic.version = 11 : i64} {
  func.func @decoder_block_kernel(%arg0: memref<2x8x32xf32, #tpu.memory_space<vmem>>, %arg1: memref<2x8x32xf32, #tpu.memory_space<vmem>>, %arg2: memref<16x16xf32, #tpu.memory_space<vmem>>, %arg3: memref<16x16xf32, #tpu.memory_space<vmem>>, %arg4: memref<32x32xf32, #tpu.memory_space<vmem>>, %arg5: memref<32x32xf32, #tpu.memory_space<vmem>>, %arg6: memref<32x32xf32, #tpu.memory_space<vmem>>, %arg7: memref<32x32xf32, #tpu.memory_space<vmem>>, %arg8: memref<1x32xf32, #tpu.memory_space<vmem>>, %arg9: memref<1x32xf32, #tpu.memory_space<vmem>>, %arg10: memref<32x32xf32, #tpu.memory_space<vmem>>, %arg11: memref<32x32xf32, #tpu.memory_space<vmem>>, %arg12: memref<32x32xf32, #tpu.memory_space<vmem>>, %arg13: memref<32x32xf32, #tpu.memory_space<vmem>>, %arg14: memref<1x32xf32, #tpu.memory_space<vmem>>, %arg15: memref<1x32xf32, #tpu.memory_space<vmem>>, %arg16: memref<32x128xf32, #tpu.memory_space<vmem>>, %arg17: memref<1x128xf32, #tpu.memory_space<vmem>>, %arg18: memref<128x32xf32, #tpu.memory_space<vmem>>, %arg19: memref<1x32xf32, #tpu.memory_space<vmem>>, %arg20: memref<1x32xf32, #tpu.memory_space<vmem>>, %arg21: memref<1x32xf32, #tpu.memory_space<vmem>>, %arg22: memref<2x1x256xf32, #tpu.memory_space<vmem>>) attributes {dimension_semantics = [], scalar_prefetch = 0 : i64, scratch_operands = 0 : i64, tpu.core_type = #tpu.core_type<tc>} {
    %0 = tpu.iota {dimensions = array<i32: 0>} : vector<4x32xi32>
    %1 = tpu.iota {dimensions = array<i32: 1>} : vector<4x32xi32>
    %c8_i32 = arith.constant 8 : i32
    %2 = vector.broadcast %c8_i32 : i32 to vector<4x32xi32>
    %3 = arith.muli %0, %2 : vector<4x32xi32>
    %4 = arith.cmpi sge, %1, %3 : vector<4x32xi32>
    %c1_i32 = arith.constant 1 : i32
    %5 = vector.broadcast %c1_i32 : i32 to vector<4x32xi32>
    %6 = arith.addi %0, %5 : vector<4x32xi32>
    %c8_i32_0 = arith.constant 8 : i32
    %7 = vector.broadcast %c8_i32_0 : i32 to vector<4x32xi32>
    %8 = arith.muli %6, %7 : vector<4x32xi32>
    %9 = arith.cmpi slt, %1, %8 : vector<4x32xi32>
    %10 = arith.andi %4, %9 : vector<4x32xi1>
    %11 = arith.extui %10 : vector<4x32xi1> to vector<4x32xi32>
    %12 = arith.sitofp %11 : vector<4x32xi32> to vector<4x32xf32>
    %cst = arith.constant 0.176776692 : f32
    %13 = vector.broadcast %cst : f32 to vector<4x32xf32>
    %14 = arith.mulf %12, %13 : vector<4x32xf32>
    %c0 = arith.constant 0 : index
    %c0_1 = arith.constant 0 : index
    %c0_2 = arith.constant 0 : index
    %15 = vector.load %arg1[%c0, %c0_1, %c0_2] : memref<2x8x32xf32, #tpu.memory_space<vmem>>, vector<2x8x32xf32>
    %16 = vector.shape_cast %15 : vector<2x8x32xf32> to vector<16x32xf32>
    %c0_3 = arith.constant 0 : index
    %c0_4 = arith.constant 0 : index
    %c0_5 = arith.constant 0 : index
    %17 = vector.load %arg0[%c0_3, %c0_4, %c0_5] : memref<2x8x32xf32, #tpu.memory_space<vmem>>, vector<2x8x32xf32>
    %18 = vector.shape_cast %17 : vector<2x8x32xf32> to vector<16x32xf32>
    %c0_6 = arith.constant 0 : index
    %c0_7 = arith.constant 0 : index
    %19 = vector.load %arg2[%c0_6, %c0_7] : memref<16x16xf32, #tpu.memory_space<vmem>>, vector<16x16xf32>
    %c0_8 = arith.constant 0 : index
    %c0_9 = arith.constant 0 : index
    %20 = vector.load %arg3[%c0_8, %c0_9] : memref<16x16xf32, #tpu.memory_space<vmem>>, vector<16x16xf32>
    %c0_10 = arith.constant 0 : index
    %c0_11 = arith.constant 0 : index
    %21 = vector.load %arg4[%c0_10, %c0_11] : memref<32x32xf32, #tpu.memory_space<vmem>>, vector<32x32xf32>
    %cst_12 = arith.constant dense<0.000000e+00> : vector<16x32xf32>
    %22 = tpu.matmul %16, %21, %cst_12 {dimension_numbers = #tpu.dot_dimension_numbers<[1], [0], [0], [1], [0, 0, 1, 1], [], []>} : vector<16x32xf32>, vector<32x32xf32>, vector<16x32xf32> -> vector<16x32xf32>
    %c0_13 = arith.constant 0 : index
    %c0_14 = arith.constant 0 : index
    %23 = vector.load %arg5[%c0_13, %c0_14] : memref<32x32xf32, #tpu.memory_space<vmem>>, vector<32x32xf32>
    %cst_15 = arith.constant dense<0.000000e+00> : vector<16x32xf32>
    %24 = tpu.matmul %16, %23, %cst_15 {dimension_numbers = #tpu.dot_dimension_numbers<[1], [0], [0], [1], [0, 0, 1, 1], [], []>} : vector<16x32xf32>, vector<32x32xf32>, vector<16x32xf32> -> vector<16x32xf32>
    %c0_16 = arith.constant 0 : index
    %c0_17 = arith.constant 0 : index
    %25 = vector.load %arg6[%c0_16, %c0_17] : memref<32x32xf32, #tpu.memory_space<vmem>>, vector<32x32xf32>
    %cst_18 = arith.constant dense<0.000000e+00> : vector<16x32xf32>
    %26 = tpu.matmul %16, %25, %cst_18 {dimension_numbers = #tpu.dot_dimension_numbers<[1], [0], [0], [1], [0, 0, 1, 1], [], []>} : vector<16x32xf32>, vector<32x32xf32>, vector<16x32xf32> -> vector<16x32xf32>
    %27 = vector.shape_cast %22 : vector<16x32xf32> to vector<1x16x32xf32>
    %28 = vector.shape_cast %14 : vector<4x32xf32> to vector<4x1x32xf32>
    %29 = vector.broadcast %27 : vector<1x16x32xf32> to vector<4x16x32xf32>
    %30 = vector.broadcast %28 : vector<4x1x32xf32> to vector<4x16x32xf32>
    %31 = arith.mulf %29, %30 : vector<4x16x32xf32>
    %32 = vector.shape_cast %24 : vector<16x32xf32> to vector<1x16x32xf32>
    %33 = vector.shape_cast %32 : vector<1x16x32xf32> to vector<1x16x32xf32>
    %34 = vector.broadcast %33 : vector<1x16x32xf32> to vector<4x16x32xf32>
    %35 = vector.shape_cast %26 : vector<16x32xf32> to vector<1x16x32xf32>
    %36 = vector.shape_cast %12 : vector<4x32xf32> to vector<4x1x32xf32>
    %37 = vector.broadcast %35 : vector<1x16x32xf32> to vector<4x16x32xf32>
    %38 = vector.broadcast %36 : vector<4x1x32xf32> to vector<4x16x32xf32>
    %39 = arith.mulf %37, %38 : vector<4x16x32xf32>
    "tpu.trace_start"() <{level = 10 : i32, message = "hqd,hkd->hqk"}> : () -> ()
    %cst_19 = arith.constant dense<0.000000e+00> : vector<4x16x16xf32>
    %40 = tpu.matmul %31, %34, %cst_19 {dimension_numbers = #tpu.dot_dimension_numbers<[2], [2], [1], [1], [0, 0, 0, 1, 1, 1], [0], [0]>} : vector<4x16x32xf32>, vector<4x16x32xf32>, vector<4x16x16xf32> -> vector<4x16x16xf32>
    "tpu.trace_stop"() : () -> ()
    %41 = vector.shape_cast %19 : vector<16x16xf32> to vector<1x16x16xf32>
    %42 = vector.broadcast %41 : vector<1x16x16xf32> to vector<4x16x16xf32>
    %43 = arith.addf %40, %42 : vector<4x16x16xf32>
    %cst_20 = arith.constant dense<0xFF800000> : vector<4x16xf32>
    %44 = vector.multi_reduction <maximumf>, %43, %cst_20 [2] : vector<4x16x16xf32> to vector<4x16xf32>
    %45 = vector.shape_cast %44 : vector<4x16xf32> to vector<4x16x1xf32>
    %46 = vector.broadcast %45 : vector<4x16x1xf32> to vector<4x16x16xf32>
    %47 = arith.subf %43, %46 : vector<4x16x16xf32>
    %48 = math.exp %47 : vector<4x16x16xf32>
    %cst_21 = arith.constant dense<0.000000e+00> : vector<4x16xf32>
    %49 = vector.multi_reduction <add>, %48, %cst_21 [2] : vector<4x16x16xf32> to vector<4x16xf32>
    %50 = vector.shape_cast %49 : vector<4x16xf32> to vector<4x16x1xf32>
    %51 = tpu.reciprocal %50 : vector<4x16x1xf32> -> vector<4x16x1xf32>
    %52 = vector.broadcast %51 : vector<4x16x1xf32> to vector<4x16x16xf32>
    %53 = arith.mulf %48, %52 : vector<4x16x16xf32>
    "tpu.trace_start"() <{level = 10 : i32, message = "hqk,hkd->hqd"}> : () -> ()
    %cst_22 = arith.constant dense<0.000000e+00> : vector<4x16x32xf32>
    %54 = tpu.matmul %53, %39, %cst_22 {dimension_numbers = #tpu.dot_dimension_numbers<[2], [1], [1], [2], [0, 0, 0, 1, 1, 2], [0], [0]>} : vector<4x16x16xf32>, vector<4x16x32xf32>, vector<4x16x32xf32> -> vector<4x16x32xf32>
    "tpu.trace_stop"() : () -> ()
    %55 = vector.extract_strided_slice %54 {offsets = [0, 0, 0], sizes = [1, 16, 32], strides = [1, 1, 1]} : vector<4x16x32xf32> to vector<1x16x32xf32>
    %56 = vector.shape_cast %55 : vector<1x16x32xf32> to vector<16x32xf32>
    %57 = vector.extract_strided_slice %54 {offsets = [1, 0, 0], sizes = [1, 16, 32], strides = [1, 1, 1]} : vector<4x16x32xf32> to vector<1x16x32xf32>
    %58 = vector.shape_cast %57 : vector<1x16x32xf32> to vector<16x32xf32>
    %59 = arith.addf %56, %58 : vector<16x32xf32>
    %60 = vector.extract_strided_slice %54 {offsets = [2, 0, 0], sizes = [1, 16, 32], strides = [1, 1, 1]} : vector<4x16x32xf32> to vector<1x16x32xf32>
    %61 = vector.shape_cast %60 : vector<1x16x32xf32> to vector<16x32xf32>
    %62 = arith.addf %59, %61 : vector<16x32xf32>
    %63 = vector.extract_strided_slice %54 {offsets = [3, 0, 0], sizes = [1, 16, 32], strides = [1, 1, 1]} : vector<4x16x32xf32> to vector<1x16x32xf32>
    %64 = vector.shape_cast %63 : vector<1x16x32xf32> to vector<16x32xf32>
    %65 = arith.addf %62, %64 : vector<16x32xf32>
    %c0_23 = arith.constant 0 : index
    %c0_24 = arith.constant 0 : index
    %66 = vector.load %arg7[%c0_23, %c0_24] : memref<32x32xf32, #tpu.memory_space<vmem>>, vector<32x32xf32>
    %cst_25 = arith.constant dense<0.000000e+00> : vector<16x32xf32>
    %67 = tpu.matmul %65, %66, %cst_25 {dimension_numbers = #tpu.dot_dimension_numbers<[1], [0], [0], [1], [0, 0, 1, 1], [], []>} : vector<16x32xf32>, vector<32x32xf32>, vector<16x32xf32> -> vector<16x32xf32>
    %68 = arith.addf %16, %67 : vector<16x32xf32>
    %c0_26 = arith.constant 0 : index
    %c0_27 = arith.constant 0 : index
    %69 = vector.load %arg8[%c0_26, %c0_27] : memref<1x32xf32, #tpu.memory_space<vmem>>, vector<1x32xf32>
    %c0_28 = arith.constant 0 : index
    %c0_29 = arith.constant 0 : index
    %70 = vector.load %arg9[%c0_28, %c0_29] : memref<1x32xf32, #tpu.memory_space<vmem>>, vector<1x32xf32>
    %cst_30 = arith.constant dense<0.000000e+00> : vector<16xf32>
    %71 = vector.multi_reduction <add>, %68, %cst_30 [1] : vector<16x32xf32> to vector<16xf32>
    %72 = vector.shape_cast %71 : vector<16xf32> to vector<16x1xf32>
    %cst_31 = arith.constant 3.200000e+01 : f32
    %73 = vector.broadcast %cst_31 : f32 to vector<16x1xf32>
    %74 = arith.divf %72, %73 : vector<16x1xf32>
    %75 = vector.broadcast %74 : vector<16x1xf32> to vector<16x32xf32>
    %76 = arith.subf %68, %75 : vector<16x32xf32>
    %77 = arith.mulf %76, %76 : vector<16x32xf32>
    %cst_32 = arith.constant dense<0.000000e+00> : vector<16xf32>
    %78 = vector.multi_reduction <add>, %77, %cst_32 [1] : vector<16x32xf32> to vector<16xf32>
    %79 = vector.shape_cast %78 : vector<16xf32> to vector<16x1xf32>
    %cst_33 = arith.constant 3.200000e+01 : f32
    %80 = vector.broadcast %cst_33 : f32 to vector<16x1xf32>
    %81 = arith.divf %79, %80 : vector<16x1xf32>
    %cst_34 = arith.constant 9.99999974E-6 : f32
    %82 = vector.broadcast %cst_34 : f32 to vector<16x1xf32>
    %83 = arith.addf %81, %82 : vector<16x1xf32>
    %84 = math.rsqrt %83 : vector<16x1xf32>
    %85 = vector.broadcast %84 : vector<16x1xf32> to vector<16x32xf32>
    %86 = arith.mulf %76, %85 : vector<16x32xf32>
    %87 = vector.broadcast %69 : vector<1x32xf32> to vector<16x32xf32>
    %88 = arith.mulf %87, %86 : vector<16x32xf32>
    %89 = vector.broadcast %70 : vector<1x32xf32> to vector<16x32xf32>
    %90 = arith.addf %88, %89 : vector<16x32xf32>
    %c0_35 = arith.constant 0 : index
    %c0_36 = arith.constant 0 : index
    %91 = vector.load %arg10[%c0_35, %c0_36] : memref<32x32xf32, #tpu.memory_space<vmem>>, vector<32x32xf32>
    %cst_37 = arith.constant dense<0.000000e+00> : vector<16x32xf32>
    %92 = tpu.matmul %90, %91, %cst_37 {dimension_numbers = #tpu.dot_dimension_numbers<[1], [0], [0], [1], [0, 0, 1, 1], [], []>} : vector<16x32xf32>, vector<32x32xf32>, vector<16x32xf32> -> vector<16x32xf32>
    %c0_38 = arith.constant 0 : index
    %c0_39 = arith.constant 0 : index
    %93 = vector.load %arg11[%c0_38, %c0_39] : memref<32x32xf32, #tpu.memory_space<vmem>>, vector<32x32xf32>
    %cst_40 = arith.constant dense<0.000000e+00> : vector<16x32xf32>
    %94 = tpu.matmul %18, %93, %cst_40 {dimension_numbers = #tpu.dot_dimension_numbers<[1], [0], [0], [1], [0, 0, 1, 1], [], []>} : vector<16x32xf32>, vector<32x32xf32>, vector<16x32xf32> -> vector<16x32xf32>
    %c0_41 = arith.constant 0 : index
    %c0_42 = arith.constant 0 : index
    %95 = vector.load %arg12[%c0_41, %c0_42] : memref<32x32xf32, #tpu.memory_space<vmem>>, vector<32x32xf32>
    %cst_43 = arith.constant dense<0.000000e+00> : vector<16x32xf32>
    %96 = tpu.matmul %18, %95, %cst_43 {dimension_numbers = #tpu.dot_dimension_numbers<[1], [0], [0], [1], [0, 0, 1, 1], [], []>} : vector<16x32xf32>, vector<32x32xf32>, vector<16x32xf32> -> vector<16x32xf32>
    %97 = vector.shape_cast %92 : vector<16x32xf32> to vector<1x16x32xf32>
    %98 = vector.shape_cast %14 : vector<4x32xf32> to vector<4x1x32xf32>
    %99 = vector.broadcast %97 : vector<1x16x32xf32> to vector<4x16x32xf32>
    %100 = vector.broadcast %98 : vector<4x1x32xf32> to vector<4x16x32xf32>
    %101 = arith.mulf %99, %100 : vector<4x16x32xf32>
    %102 = vector.shape_cast %94 : vector<16x32xf32> to vector<1x16x32xf32>
    %103 = vector.shape_cast %102 : vector<1x16x32xf32> to vector<1x16x32xf32>
    %104 = vector.broadcast %103 : vector<1x16x32xf32> to vector<4x16x32xf32>
    %105 = vector.shape_cast %96 : vector<16x32xf32> to vector<1x16x32xf32>
    %106 = vector.shape_cast %12 : vector<4x32xf32> to vector<4x1x32xf32>
    %107 = vector.broadcast %105 : vector<1x16x32xf32> to vector<4x16x32xf32>
    %108 = vector.broadcast %106 : vector<4x1x32xf32> to vector<4x16x32xf32>
    %109 = arith.mulf %107, %108 : vector<4x16x32xf32>
    "tpu.trace_start"() <{level = 10 : i32, message = "hqd,hkd->hqk"}> : () -> ()
    %cst_44 = arith.constant dense<0.000000e+00> : vector<4x16x16xf32>
    %110 = tpu.matmul %101, %104, %cst_44 {dimension_numbers = #tpu.dot_dimension_numbers<[2], [2], [1], [1], [0, 0, 0, 1, 1, 1], [0], [0]>} : vector<4x16x32xf32>, vector<4x16x32xf32>, vector<4x16x16xf32> -> vector<4x16x16xf32>
    "tpu.trace_stop"() : () -> ()
    %111 = vector.shape_cast %20 : vector<16x16xf32> to vector<1x16x16xf32>
    %112 = vector.broadcast %111 : vector<1x16x16xf32> to vector<4x16x16xf32>
    %113 = arith.addf %110, %112 : vector<4x16x16xf32>
    %cst_45 = arith.constant dense<0xFF800000> : vector<4x16xf32>
    %114 = vector.multi_reduction <maximumf>, %113, %cst_45 [2] : vector<4x16x16xf32> to vector<4x16xf32>
    %115 = vector.shape_cast %114 : vector<4x16xf32> to vector<4x16x1xf32>
    %116 = vector.broadcast %115 : vector<4x16x1xf32> to vector<4x16x16xf32>
    %117 = arith.subf %113, %116 : vector<4x16x16xf32>
    %118 = math.exp %117 : vector<4x16x16xf32>
    %cst_46 = arith.constant dense<0.000000e+00> : vector<4x16xf32>
    %119 = vector.multi_reduction <add>, %118, %cst_46 [2] : vector<4x16x16xf32> to vector<4x16xf32>
    %120 = vector.shape_cast %119 : vector<4x16xf32> to vector<4x16x1xf32>
    %121 = tpu.reciprocal %120 : vector<4x16x1xf32> -> vector<4x16x1xf32>
    %122 = vector.broadcast %121 : vector<4x16x1xf32> to vector<4x16x16xf32>
    %123 = arith.mulf %118, %122 : vector<4x16x16xf32>
    "tpu.trace_start"() <{level = 10 : i32, message = "hqk,hkd->hqd"}> : () -> ()
    %cst_47 = arith.constant dense<0.000000e+00> : vector<4x16x32xf32>
    %124 = tpu.matmul %123, %109, %cst_47 {dimension_numbers = #tpu.dot_dimension_numbers<[2], [1], [1], [2], [0, 0, 0, 1, 1, 2], [0], [0]>} : vector<4x16x16xf32>, vector<4x16x32xf32>, vector<4x16x32xf32> -> vector<4x16x32xf32>
    "tpu.trace_stop"() : () -> ()
    %125 = vector.extract_strided_slice %124 {offsets = [0, 0, 0], sizes = [1, 16, 32], strides = [1, 1, 1]} : vector<4x16x32xf32> to vector<1x16x32xf32>
    %126 = vector.shape_cast %125 : vector<1x16x32xf32> to vector<16x32xf32>
    %127 = vector.extract_strided_slice %124 {offsets = [1, 0, 0], sizes = [1, 16, 32], strides = [1, 1, 1]} : vector<4x16x32xf32> to vector<1x16x32xf32>
    %128 = vector.shape_cast %127 : vector<1x16x32xf32> to vector<16x32xf32>
    %129 = arith.addf %126, %128 : vector<16x32xf32>
    %130 = vector.extract_strided_slice %124 {offsets = [2, 0, 0], sizes = [1, 16, 32], strides = [1, 1, 1]} : vector<4x16x32xf32> to vector<1x16x32xf32>
    %131 = vector.shape_cast %130 : vector<1x16x32xf32> to vector<16x32xf32>
    %132 = arith.addf %129, %131 : vector<16x32xf32>
    %133 = vector.extract_strided_slice %124 {offsets = [3, 0, 0], sizes = [1, 16, 32], strides = [1, 1, 1]} : vector<4x16x32xf32> to vector<1x16x32xf32>
    %134 = vector.shape_cast %133 : vector<1x16x32xf32> to vector<16x32xf32>
    %135 = arith.addf %132, %134 : vector<16x32xf32>
    %c0_48 = arith.constant 0 : index
    %c0_49 = arith.constant 0 : index
    %136 = vector.load %arg13[%c0_48, %c0_49] : memref<32x32xf32, #tpu.memory_space<vmem>>, vector<32x32xf32>
    %cst_50 = arith.constant dense<0.000000e+00> : vector<16x32xf32>
    %137 = tpu.matmul %135, %136, %cst_50 {dimension_numbers = #tpu.dot_dimension_numbers<[1], [0], [0], [1], [0, 0, 1, 1], [], []>} : vector<16x32xf32>, vector<32x32xf32>, vector<16x32xf32> -> vector<16x32xf32>
    %138 = arith.addf %90, %137 : vector<16x32xf32>
    %c0_51 = arith.constant 0 : index
    %c0_52 = arith.constant 0 : index
    %139 = vector.load %arg14[%c0_51, %c0_52] : memref<1x32xf32, #tpu.memory_space<vmem>>, vector<1x32xf32>
    %c0_53 = arith.constant 0 : index
    %c0_54 = arith.constant 0 : index
    %140 = vector.load %arg15[%c0_53, %c0_54] : memref<1x32xf32, #tpu.memory_space<vmem>>, vector<1x32xf32>
    %cst_55 = arith.constant dense<0.000000e+00> : vector<16xf32>
    %141 = vector.multi_reduction <add>, %138, %cst_55 [1] : vector<16x32xf32> to vector<16xf32>
    %142 = vector.shape_cast %141 : vector<16xf32> to vector<16x1xf32>
    %cst_56 = arith.constant 3.200000e+01 : f32
    %143 = vector.broadcast %cst_56 : f32 to vector<16x1xf32>
    %144 = arith.divf %142, %143 : vector<16x1xf32>
    %145 = vector.broadcast %144 : vector<16x1xf32> to vector<16x32xf32>
    %146 = arith.subf %138, %145 : vector<16x32xf32>
    %147 = arith.mulf %146, %146 : vector<16x32xf32>
    %cst_57 = arith.constant dense<0.000000e+00> : vector<16xf32>
    %148 = vector.multi_reduction <add>, %147, %cst_57 [1] : vector<16x32xf32> to vector<16xf32>
    %149 = vector.shape_cast %148 : vector<16xf32> to vector<16x1xf32>
    %cst_58 = arith.constant 3.200000e+01 : f32
    %150 = vector.broadcast %cst_58 : f32 to vector<16x1xf32>
    %151 = arith.divf %149, %150 : vector<16x1xf32>
    %cst_59 = arith.constant 9.99999974E-6 : f32
    %152 = vector.broadcast %cst_59 : f32 to vector<16x1xf32>
    %153 = arith.addf %151, %152 : vector<16x1xf32>
    %154 = math.rsqrt %153 : vector<16x1xf32>
    %155 = vector.broadcast %154 : vector<16x1xf32> to vector<16x32xf32>
    %156 = arith.mulf %146, %155 : vector<16x32xf32>
    %157 = vector.broadcast %139 : vector<1x32xf32> to vector<16x32xf32>
    %158 = arith.mulf %157, %156 : vector<16x32xf32>
    %159 = vector.broadcast %140 : vector<1x32xf32> to vector<16x32xf32>
    %160 = arith.addf %158, %159 : vector<16x32xf32>
    %c0_60 = arith.constant 0 : index
    %c0_61 = arith.constant 0 : index
    %161 = vector.load %arg16[%c0_60, %c0_61] : memref<32x128xf32, #tpu.memory_space<vmem>>, vector<32x128xf32>
    %cst_62 = arith.constant dense<0.000000e+00> : vector<16x128xf32>
    %162 = tpu.matmul %160, %161, %cst_62 {dimension_numbers = #tpu.dot_dimension_numbers<[1], [0], [0], [1], [0, 0, 1, 1], [], []>} : vector<16x32xf32>, vector<32x128xf32>, vector<16x128xf32> -> vector<16x128xf32>
    %c0_63 = arith.constant 0 : index
    %c0_64 = arith.constant 0 : index
    %163 = vector.load %arg17[%c0_63, %c0_64] : memref<1x128xf32, #tpu.memory_space<vmem>>, vector<1x128xf32>
    %164 = vector.broadcast %163 : vector<1x128xf32> to vector<16x128xf32>
    %165 = arith.addf %162, %164 : vector<16x128xf32>
    %cst_65 = arith.constant 0.000000e+00 : f32
    %166 = vector.broadcast %cst_65 : f32 to vector<16x128xf32>
    %167 = arith.maximumf %165, %166 : vector<16x128xf32>
    %c0_66 = arith.constant 0 : index
    %c0_67 = arith.constant 0 : index
    %168 = vector.load %arg18[%c0_66, %c0_67] : memref<128x32xf32, #tpu.memory_space<vmem>>, vector<128x32xf32>
    %cst_68 = arith.constant dense<0.000000e+00> : vector<16x32xf32>
    %169 = tpu.matmul %167, %168, %cst_68 {dimension_numbers = #tpu.dot_dimension_numbers<[1], [0], [0], [1], [0, 0, 1, 1], [], []>} : vector<16x128xf32>, vector<128x32xf32>, vector<16x32xf32> -> vector<16x32xf32>
    %c0_69 = arith.constant 0 : index
    %c0_70 = arith.constant 0 : index
    %170 = vector.load %arg19[%c0_69, %c0_70] : memref<1x32xf32, #tpu.memory_space<vmem>>, vector<1x32xf32>
    %171 = vector.broadcast %170 : vector<1x32xf32> to vector<16x32xf32>
    %172 = arith.addf %169, %171 : vector<16x32xf32>
    %173 = arith.addf %160, %172 : vector<16x32xf32>
    %c0_71 = arith.constant 0 : index
    %c0_72 = arith.constant 0 : index
    %174 = vector.load %arg20[%c0_71, %c0_72] : memref<1x32xf32, #tpu.memory_space<vmem>>, vector<1x32xf32>
    %c0_73 = arith.constant 0 : index
    %c0_74 = arith.constant 0 : index
    %175 = vector.load %arg21[%c0_73, %c0_74] : memref<1x32xf32, #tpu.memory_space<vmem>>, vector<1x32xf32>
    %cst_75 = arith.constant dense<0.000000e+00> : vector<16xf32>
    %176 = vector.multi_reduction <add>, %173, %cst_75 [1] : vector<16x32xf32> to vector<16xf32>
    %177 = vector.shape_cast %176 : vector<16xf32> to vector<16x1xf32>
    %cst_76 = arith.constant 3.200000e+01 : f32
    %178 = vector.broadcast %cst_76 : f32 to vector<16x1xf32>
    %179 = arith.divf %177, %178 : vector<16x1xf32>
    %180 = vector.broadcast %179 : vector<16x1xf32> to vector<16x32xf32>
    %181 = arith.subf %173, %180 : vector<16x32xf32>
    %182 = arith.mulf %181, %181 : vector<16x32xf32>
    %cst_77 = arith.constant dense<0.000000e+00> : vector<16xf32>
    %183 = vector.multi_reduction <add>, %182, %cst_77 [1] : vector<16x32xf32> to vector<16xf32>
    %184 = vector.shape_cast %183 : vector<16xf32> to vector<16x1xf32>
    %cst_78 = arith.constant 3.200000e+01 : f32
    %185 = vector.broadcast %cst_78 : f32 to vector<16x1xf32>
    %186 = arith.divf %184, %185 : vector<16x1xf32>
    %cst_79 = arith.constant 9.99999974E-6 : f32
    %187 = vector.broadcast %cst_79 : f32 to vector<16x1xf32>
    %188 = arith.addf %186, %187 : vector<16x1xf32>
    %189 = math.rsqrt %188 : vector<16x1xf32>
    %190 = vector.broadcast %189 : vector<16x1xf32> to vector<16x32xf32>
    %191 = arith.mulf %181, %190 : vector<16x32xf32>
    %192 = vector.broadcast %174 : vector<1x32xf32> to vector<16x32xf32>
    %193 = arith.mulf %192, %191 : vector<16x32xf32>
    %194 = vector.broadcast %175 : vector<1x32xf32> to vector<16x32xf32>
    %195 = arith.addf %193, %194 : vector<16x32xf32>
    %196 = vector.shape_cast %195 : vector<16x32xf32> to vector<2x8x32xf32>
    %197 = vector.extract_strided_slice %196 {offsets = [0, 0, 0], sizes = [2, 1, 32], strides = [1, 1, 1]} : vector<2x8x32xf32> to vector<2x1x32xf32>
    %198 = vector.extract_strided_slice %196 {offsets = [0, 1, 0], sizes = [2, 1, 32], strides = [1, 1, 1]} : vector<2x8x32xf32> to vector<2x1x32xf32>
    %199 = vector.extract_strided_slice %196 {offsets = [0, 2, 0], sizes = [2, 1, 32], strides = [1, 1, 1]} : vector<2x8x32xf32> to vector<2x1x32xf32>
    %200 = vector.extract_strided_slice %196 {offsets = [0, 3, 0], sizes = [2, 1, 32], strides = [1, 1, 1]} : vector<2x8x32xf32> to vector<2x1x32xf32>
    %201 = vector.extract_strided_slice %196 {offsets = [0, 4, 0], sizes = [2, 1, 32], strides = [1, 1, 1]} : vector<2x8x32xf32> to vector<2x1x32xf32>
    %202 = vector.extract_strided_slice %196 {offsets = [0, 5, 0], sizes = [2, 1, 32], strides = [1, 1, 1]} : vector<2x8x32xf32> to vector<2x1x32xf32>
    %203 = vector.extract_strided_slice %196 {offsets = [0, 6, 0], sizes = [2, 1, 32], strides = [1, 1, 1]} : vector<2x8x32xf32> to vector<2x1x32xf32>
    %204 = vector.extract_strided_slice %196 {offsets = [0, 7, 0], sizes = [2, 1, 32], strides = [1, 1, 1]} : vector<2x8x32xf32> to vector<2x1x32xf32>
    %205 = tpu.concatenate %197, %198, %199, %200, %201, %202, %203, %204 in 2 : vector<2x1x32xf32>, vector<2x1x32xf32>, vector<2x1x32xf32>, vector<2x1x32xf32>, vector<2x1x32xf32>, vector<2x1x32xf32>, vector<2x1x32xf32>, vector<2x1x32xf32> -> vector<2x1x256xf32>
    %c0_80 = arith.constant 0 : index
    %c0_81 = arith.constant 0 : index
    %c0_82 = arith.constant 0 : index
    %206 = vector.load %arg22[%c0_80, %c0_81, %c0_82] : memref<2x1x256xf32, #tpu.memory_space<vmem>>, vector<2x1x256xf32>
    tpu.vector_store %arg22[%c0_80, %c0_81, %c0_82], %205 {strides = array<i32>} : memref<2x1x256xf32, #tpu.memory_space<vmem>>, vector<2x1x256xf32>,
    return
  }
}

</mosaic_0001>

<llo_original>
// kernel: tpu_custom_call.1
$region0: #{tpu_custom_call.1}
  #allocation0 [shape = 'u32[]', space=smem, size = 0x4, offset = 0x4, fixed_abs, tag = 'smem constant byte address 0x4 - core index']
  #allocation1 [shape = 'u32[144,128]{1,0:T(1,128)}', space=vmem, size = 0x12000, scoped, tag = 'internal scratch']
  %s0 = inlined_call_operand.hbm [shape: f32[2,8,32], index: 0, kind: input, shape index: {}]
  %s1 = inlined_call_operand.hbm [shape: f32[2,8,32], index: 1, kind: input, shape index: {}]
  %s2 = inlined_call_operand.hbm [shape: f32[16,16], index: 2, kind: input, shape index: {}]
  %s3 = inlined_call_operand.hbm [shape: f32[16,16], index: 3, kind: input, shape index: {}]
  %s4 = inlined_call_operand.vmem [shape: f32[32,32], index: 4, kind: input, shape index: {}]
  %s5 = inlined_call_operand.vmem [shape: f32[32,32], index: 5, kind: input, shape index: {}]
  %s6 = inlined_call_operand.vmem [shape: f32[32,32], index: 6, kind: input, shape index: {}]
  %s7 = inlined_call_operand.vmem [shape: f32[32,32], index: 7, kind: input, shape index: {}]
  %s8 = inlined_call_operand.hbm [shape: f32[1,32], index: 8, kind: input, shape index: {}]
  %s9 = inlined_call_operand.hbm [shape: f32[1,32], index: 9, kind: input, shape index: {}]
  %s10 = inlined_call_operand.vmem [shape: f32[32,32], index: 10, kind: input, shape index: {}]
  %s11 = inlined_call_operand.vmem [shape: f32[32,32], index: 11, kind: input, shape index: {}]
  %s12 = inlined_call_operand.hbm [shape: f32[32,32], index: 12, kind: input, shape index: {}]
  %s13 = inlined_call_operand.hbm [shape: f32[32,32], index: 13, kind: input, shape index: {}]
  %s14 = inlined_call_operand.hbm [shape: f32[1,32], index: 14, kind: input, shape index: {}]
  %s15 = inlined_call_operand.hbm [shape: f32[1,32], index: 15, kind: input, shape index: {}]
  %s16 = inlined_call_operand.hbm [shape: f32[32,128], index: 16, kind: input, shape index: {}]
  %s17 = inlined_call_operand.hbm [shape: f32[1,128], index: 17, kind: input, shape index: {}]
  %s18 = inlined_call_operand.vmem [shape: f32[128,32], index: 18, kind: input, shape index: {}]
  %s19 = inlined_call_operand.vmem [shape: f32[1,32], index: 19, kind: input, shape index: {}]
  %s20 = inlined_call_operand.vmem [shape: f32[1,32], index: 20, kind: input, shape index: {}]
  %s21 = inlined_call_operand.vmem [shape: f32[1,32], index: 21, kind: input, shape index: {}]
  %s22 = inlined_call_operand.hbm [shape: f32[2,1,256], index: 22, kind: output, shape index: {}]
  %s23 = sld [smem:[#allocation0]]
  $region146: #{tpu_custom_call.1} parent=0
    _
  %s25 = ssub.s32 1, %s23
  %s26 = scalar_select 0, %s25, %s23
  $region1: #{tpu_custom_call.1} parent=0
    #allocation2 [shape = 'u8[8192]{0}', space=vmem, size = 0x2000, scoped, tag = 'input window, operand 0, single buffered']
    #allocation3 [shape = 's32[1]{0}', space=sflag, size = 0x4, scoped, tag = 'scoped memory for tpu_custom_call.1']
    #allocation4 [shape = 's32[1]{0}', space=sflag, size = 0x4, scoped, tag = 'scoped memory for tpu_custom_call.1']
    #allocation5 [shape = 'u8[8192]{0}', space=vmem, size = 0x2000, scoped, tag = 'input window, operand 1, single buffered']
    #allocation6 [shape = 's32[1]{0}', space=sflag, size = 0x4, scoped, tag = 'scoped memory for tpu_custom_call.1']
    #allocation7 [shape = 'u8[8192]{0}', space=vmem, size = 0x2000, scoped, tag = 'input window, operand 2, single buffered']
    #allocation8 [shape = 'u8[8192]{0}', space=vmem, size = 0x2000, scoped, tag = 'input window, operand 3, single buffered']
    #allocation9 [shape = 's32[1]{0}', space=sflag, size = 0x4, scoped, tag = 'scoped memory for tpu_custom_call.1']
    #allocation10 [shape = 'u8[512]{0}', space=vmem, size = 0x400, scoped, tag = 'input window, operand 8, single buffered']
    #allocation11 [shape = 'u8[512]{0}', space=vmem, size = 0x400, scoped, tag = 'input window, operand 9, single buffered']
    #allocation12 [shape = 's32[1]{0}', space=sflag, size = 0x4, scoped, tag = 'scoped memory for tpu_custom_call.1']
    #allocation13 [shape = 'u8[16384]{0}', space=vmem, size = 0x4000, scoped, tag = 'input window, operand 12, single buffered']
    #allocation14 [shape = 'u8[16384]{0}', space=vmem, size = 0x4000, scoped, tag = 'input window, operand 13, single buffered']
    #allocation15 [shape = 's32[1]{0}', space=sflag, size = 0x4, scoped, tag = 'scoped memory for tpu_custom_call.1']
    #allocation16 [shape = 'u8[512]{0}', space=vmem, size = 0x400, scoped, tag = 'input window, operand 14, single buffered']
    #allocation17 [shape = 'u8[512]{0}', space=vmem, size = 0x400, scoped, tag = 'input window, operand 15, single buffered']
    #allocation18 [shape = 's32[1]{0}', space=sflag, size = 0x4, scoped, tag = 'scoped memory for tpu_custom_call.1']
    #allocation19 [shape = 'u8[16384]{0}', space=vmem, size = 0x4000, scoped, tag = 'input window, operand 16, single buffered']
    #allocation20 [shape = 'u8[512]{0}', space=vmem, size = 0x400, scoped, tag = 'input window, operand 17, single buffered']
    #allocation21 [shape = 's32[1]{0}', space=sflag, size = 0x4, scoped, tag = 'scoped memory for tpu_custom_call.1']
    #allocation22 [shape = 'u8[2048]{0}', space=vmem, size = 0x800, scoped, tag = 'output window, operand 0, single buffered']
    %27 = vsyncpa [#allocation3], 0
    %28 = vsyncpa [#allocation6], 0
    %29 = vsyncpa [#allocation9], 0
    %30 = vsyncpa [#allocation12], 0
    %31 = vsyncpa [#allocation15], 0
    %32 = vsyncpa [#allocation18], 0
    %33 = vsyncpa [#allocation21], 0
    %34 = vsyncpa [#allocation4], 0
    // Predicated region
    $region2: #{tpu_custom_call.1} parent=1 // pred_check
      _
    $region3: #{tpu_custom_call.1} parent=1 // pred_check_branch
      %36 = sbr.rel (0) target = $region5
    $region4: #{tpu_custom_call.1} parent=1 // pred_region
      %s38 = ssub.s32 256, 256
      %39 = vsyncadd [#allocation3], %s38
      %s40 = sshll.u32 [#allocation2], 4
      %s41 = int_to_ptr.vmem [resolvable:$true] %s40
      %46 = dma.hbm_to_vmem [thread:$0]  %s0, 256, %s41, [#allocation3], 128, 128, 8
    $region5: #{tpu_custom_call.1} parent=1 // pred_fallthru
      _
    // Predicated region
    $region6: #{tpu_custom_call.1} parent=1 // pred_check
      _
    $region7: #{tpu_custom_call.1} parent=1 // pred_check_branch
      %48 = sbr.rel (0) target = $region9
    $region8: #{tpu_custom_call.1} parent=1 // pred_region
      %s50 = ssub.s32 256, 256
      %51 = vsyncadd [#allocation6], %s50
      %s52 = sshll.u32 [#allocation5], 4
      %s53 = int_to_ptr.vmem [resolvable:$true] %s52
      %58 = dma.hbm_to_vmem [thread:$0]  %s1, 256, %s53, [#allocation6], 128, 128, 8
    $region9: #{tpu_custom_call.1} parent=1 // pred_fallthru
      _
    // Predicated region
    $region10: #{tpu_custom_call.1} parent=1 // pred_check
      _
    $region11: #{tpu_custom_call.1} parent=1 // pred_check_branch
      %60 = sbr.rel (0) target = $region13
    $region12: #{tpu_custom_call.1} parent=1 // pred_region
      %s62 = ssub.s32 256, 256
      %63 = vsyncadd [#allocation6], %s62
      %s64 = sshll.u32 [#allocation7], 4
      %s65 = int_to_ptr.vmem [resolvable:$true] %s64
      %70 = dma.hbm_to_vmem [thread:$0]  %s2, 256, %s65, [#allocation6], 128, 128, 8
    $region13: #{tpu_custom_call.1} parent=1 // pred_fallthru
      _
    // Predicated region
    $region14: #{tpu_custom_call.1} parent=1 // pred_check
      _
    $region15: #{tpu_custom_call.1} parent=1 // pred_check_branch
      %72 = sbr.rel (0) target = $region17
    $region16: #{tpu_custom_call.1} parent=1 // pred_region
      %s74 = ssub.s32 256, 256
      %75 = vsyncadd [#allocation9], %s74
      %s76 = sshll.u32 [#allocation8], 4
      %s77 = int_to_ptr.vmem [resolvable:$true] %s76
      %82 = dma.hbm_to_vmem [thread:$0]  %s3, 256, %s77, [#allocation9], 128, 128, 8
    $region17: #{tpu_custom_call.1} parent=1 // pred_fallthru
      _
    // Predicated region
    $region18: #{tpu_custom_call.1} parent=1 // pred_check
      _
    $region19: #{tpu_custom_call.1} parent=1 // pred_check_branch
      %84 = sbr.rel (0) target = $region21
    $region20: #{tpu_custom_call.1} parent=1 // pred_region
      _
    $region21: #{tpu_custom_call.1} parent=1 // pred_fallthru
      _
    // Predicated region
    $region22: #{tpu_custom_call.1} parent=1 // pred_check
      _
    $region23: #{tpu_custom_call.1} parent=1 // pred_check_branch
      %86 = sbr.rel (0) target = $region25
    $region24: #{tpu_custom_call.1} parent=1 // pred_region
      _
    $region25: #{tpu_custom_call.1} parent=1 // pred_fallthru
      _
    // Predicated region
    $region26: #{tpu_custom_call.1} parent=1 // pred_check
      _
    $region27: #{tpu_custom_call.1} parent=1 // pred_check_branch
      %88 = sbr.rel (0) target = $region29
    $region28: #{tpu_custom_call.1} parent=1 // pred_region
      _
    $region29: #{tpu_custom_call.1} parent=1 // pred_fallthru
      _
    // Predicated region
    $region30: #{tpu_custom_call.1} parent=1 // pred_check
      _
    $region31: #{tpu_custom_call.1} parent=1 // pred_check_branch
      %90 = sbr.rel (0) target = $region33
    $region32: #{tpu_custom_call.1} parent=1 // pred_region
      _
    $region33: #{tpu_custom_call.1} parent=1 // pred_fallthru
      _
    // Predicated region
    $region34: #{tpu_custom_call.1} parent=1 // pred_check
      _
    $region35: #{tpu_custom_call.1} parent=1 // pred_check_branch
      %92 = sbr.rel (0) target = $region37
    $region36: #{tpu_custom_call.1} parent=1 // pred_region
      %s94 = ssub.s32 16, 16
      %95 = vsyncadd [#allocation9], %s94
      %s97 = sshll.u32 [#allocation10], 4
      %s98 = int_to_ptr.vmem [resolvable:$true] %s97
      %100 = dma.hbm_to_vmem [thread:$0]  %s8, 16, %s98, [#allocation9]
    $region37: #{tpu_custom_call.1} parent=1 // pred_fallthru
      _
    // Predicated region
    $region38: #{tpu_custom_call.1} parent=1 // pred_check
      _
    $region39: #{tpu_custom_call.1} parent=1 // pred_check_branch
      %102 = sbr.rel (0) target = $region41
    $region40: #{tpu_custom_call.1} parent=1 // pred_region
      %s104 = ssub.s32 16, 16
      %105 = vsyncadd [#allocation12], %s104
      %s107 = sshll.u32 [#allocation11], 4
      %s108 = int_to_ptr.vmem [resolvable:$true] %s107
      %110 = dma.hbm_to_vmem [thread:$0]  %s9, 16, %s108, [#allocation12]
    $region41: #{tpu_custom_call.1} parent=1 // pred_fallthru
      _
    // Predicated region
    $region42: #{tpu_custom_call.1} parent=1 // pred_check
      _
    $region43: #{tpu_custom_call.1} parent=1 // pred_check_branch
      %112 = sbr.rel (0) target = $region45
    $region44: #{tpu_custom_call.1} parent=1 // pred_region
      _
    $region45: #{tpu_custom_call.1} parent=1 // pred_fallthru
      _
    // Predicated region
    $region46: #{tpu_custom_call.1} parent=1 // pred_check
      _
    $region47: #{tpu_custom_call.1} parent=1 // pred_check_branch
      %114 = sbr.rel (0) target = $region49
    $region48: #{tpu_custom_call.1} parent=1 // pred_region
      _
    $region49: #{tpu_custom_call.1} parent=1 // pred_fallthru
      _
    // Predicated region
    $region50: #{tpu_custom_call.1} parent=1 // pred_check
      _
    $region51: #{tpu_custom_call.1} parent=1 // pred_check_branch
      %116 = sbr.rel (0) target = $region53
    $region52: #{tpu_custom_call.1} parent=1 // pred_region
      %s118 = ssub.s32 512, 512
      %119 = vsyncadd [#allocation12], %s118
      %s120 = sshll.u32 [#allocation13], 4
      %s121 = int_to_ptr.vmem [resolvable:$true] %s120
      %126 = dma.hbm_to_vmem [thread:$0]  %s12, 512, %s121, [#allocation12], 128, 128, 8
    $region53: #{tpu_custom_call.1} parent=1 // pred_fallthru
      _
    // Predicated region
    $region54: #{tpu_custom_call.1} parent=1 // pred_check
      _
    $region55: #{tpu_custom_call.1} parent=1 // pred_check_branch
      %128 = sbr.rel (0) target = $region57
    $region56: #{tpu_custom_call.1} parent=1 // pred_region
      %s130 = ssub.s32 512, 512
      %131 = vsyncadd [#allocation15], %s130
      %s132 = sshll.u32 [#allocation14], 4
      %s133 = int_to_ptr.vmem [resolvable:$true] %s132
      %138 = dma.hbm_to_vmem [thread:$0]  %s13, 512, %s133, [#allocation15], 128, 128, 8
    $region57: #{tpu_custom_call.1} parent=1 // pred_fallthru
      _
    // Predicated region
    $region58: #{tpu_custom_call.1} parent=1 // pred_check
      _
    $region59: #{tpu_custom_call.1} parent=1 // pred_check_branch
      %140 = sbr.rel (0) target = $region61
    $region60: #{tpu_custom_call.1} parent=1 // pred_region
      %s142 = ssub.s32 16, 16
      %143 = vsyncadd [#allocation15], %s142
      %s145 = sshll.u32 [#allocation16], 4
      %s146 = int_to_ptr.vmem [resolvable:$true] %s145
      %148 = dma.hbm_to_vmem [thread:$0]  %s14, 16, %s146, [#allocation15]
    $region61: #{tpu_custom_call.1} parent=1 // pred_fallthru
      _
    // Predicated region
    $region62: #{tpu_custom_call.1} parent=1 // pred_check
      _
    $region63: #{tpu_custom_call.1} parent=1 // pred_check_branch
      %150 = sbr.rel (0) target = $region65
    $region64: #{tpu_custom_call.1} parent=1 // pred_region
      %s152 = ssub.s32 16, 16
      %153 = vsyncadd [#allocation18], %s152
      %s155 = sshll.u32 [#allocation17], 4
      %s156 = int_to_ptr.vmem [resolvable:$true] %s155
      %158 = dma.hbm_to_vmem [thread:$0]  %s15, 16, %s156, [#allocation18]
    $region65: #{tpu_custom_call.1} parent=1 // pred_fallthru
      _
    // Predicated region
    $region66: #{tpu_custom_call.1} parent=1 // pred_check
      _
    $region67: #{tpu_custom_call.1} parent=1 // pred_check_branch
      %160 = sbr.rel (0) target = $region69
    $region68: #{tpu_custom_call.1} parent=1 // pred_region
      %s162 = ssub.s32 512, 512
      %163 = vsyncadd [#allocation18], %s162
      %s164 = sshll.u32 [#allocation19], 4
      %s165 = int_to_ptr.vmem [resolvable:$true] %s164
      %170 = dma.hbm_to_vmem [thread:$0]  %s16, 512, %s165, [#allocation18], 128, 128, 8
    $region69: #{tpu_custom_call.1} parent=1 // pred_fallthru
      _
    // Predicated region
    $region70: #{tpu_custom_call.1} parent=1 // pred_check
      _
    $region71: #{tpu_custom_call.1} parent=1 // pred_check_branch
      %172 = sbr.rel (0) target = $region73
    $region72: #{tpu_custom_call.1} parent=1 // pred_region
      %s174 = ssub.s32 16, 16
      %175 = vsyncadd [#allocation21], %s174
      %s177 = sshll.u32 [#allocation20], 4
      %s178 = int_to_ptr.vmem [resolvable:$true] %s177
      %180 = dma.hbm_to_vmem [thread:$0]  %s17, 16, %s178, [#allocation21]
    $region73: #{tpu_custom_call.1} parent=1 // pred_fallthru
      _
    // Predicated region
    $region74: #{tpu_custom_call.1} parent=1 // pred_check
      _
    $region75: #{tpu_custom_call.1} parent=1 // pred_check_branch
      %182 = sbr.rel (0) target = $region77
    $region76: #{tpu_custom_call.1} parent=1 // pred_region
      _
    $region77: #{tpu_custom_call.1} parent=1 // pred_fallthru
      _
    // Predicated region
    $region78: #{tpu_custom_call.1} parent=1 // pred_check
      _
    $region79: #{tpu_custom_call.1} parent=1 // pred_check_branch
      %184 = sbr.rel (0) target = $region81
    $region80: #{tpu_custom_call.1} parent=1 // pred_region
      _
    $region81: #{tpu_custom_call.1} parent=1 // pred_fallthru
      _
    // Predicated region
    $region82: #{tpu_custom_call.1} parent=1 // pred_check
      _
    $region83: #{tpu_custom_call.1} parent=1 // pred_check_branch
      %186 = sbr.rel (0) target = $region85
    $region84: #{tpu_custom_call.1} parent=1 // pred_region
      _
    $region85: #{tpu_custom_call.1} parent=1 // pred_fallthru
      _
    // Predicated region
    $region86: #{tpu_custom_call.1} parent=1 // pred_check
      _
    $region87: #{tpu_custom_call.1} parent=1 // pred_check_branch
      %188 = sbr.rel (0) target = $region89
    $region88: #{tpu_custom_call.1} parent=1 // pred_region
      _
    $region89: #{tpu_custom_call.1} parent=1 // pred_fallthru
      _
    // Predicated region
    $region90: #{tpu_custom_call.1} parent=1 // pred_check
      _
    $region91: #{tpu_custom_call.1} parent=1 // pred_check_branch
      %190 = sbr.rel (0) target = $region93
    $region92: #{tpu_custom_call.1} parent=1 // pred_region
      %191 = dma.done [#allocation3], 256
    $region93: #{tpu_custom_call.1} parent=1 // pred_fallthru
      _
    // Predicated region
    $region94: #{tpu_custom_call.1} parent=1 // pred_check
      _
    $region95: #{tpu_custom_call.1} parent=1 // pred_check_branch
      %193 = sbr.rel (0) target = $region97
    $region96: #{tpu_custom_call.1} parent=1 // pred_region
      %194 = dma.done [#allocation6], 256
    $region97: #{tpu_custom_call.1} parent=1 // pred_fallthru
      _
    // Predicated region
    $region98: #{tpu_custom_call.1} parent=1 // pred_check
      _
    $region99: #{tpu_custom_call.1} parent=1 // pred_check_branch
      %196 = sbr.rel (0) target = $region101
    $region100: #{tpu_custom_call.1} parent=1 // pred_region
      %197 = dma.done [#allocation6], 256
    $region101: #{tpu_custom_call.1} parent=1 // pred_fallthru
      _
    // Predicated region
    $region102: #{tpu_custom_call.1} parent=1 // pred_check
      _
    $region103: #{tpu_custom_call.1} parent=1 // pred_check_branch
      %199 = sbr.rel (0) target = $region105
    $region104: #{tpu_custom_call.1} parent=1 // pred_region
      %200 = dma.done [#allocation9], 256
    $region105: #{tpu_custom_call.1} parent=1 // pred_fallthru
      _
    // Predicated region
    $region106: #{tpu_custom_call.1} parent=1 // pred_check
      _
    $region107: #{tpu_custom_call.1} parent=1 // pred_check_branch
      %202 = sbr.rel (0) target = $region109
    $region108: #{tpu_custom_call.1} parent=1 // pred_region
      %203 = dma.done [#allocation9], 16
    $region109: #{tpu_custom_call.1} parent=1 // pred_fallthru
      _
    // Predicated region
    $region110: #{tpu_custom_call.1} parent=1 // pred_check
      _
    $region111: #{tpu_custom_call.1} parent=1 // pred_check_branch
      %205 = sbr.rel (0) target = $region113
    $region112: #{tpu_custom_call.1} parent=1 // pred_region
      %206 = dma.done [#allocation12], 16
    $region113: #{tpu_custom_call.1} parent=1 // pred_fallthru
      _
    // Predicated region
    $region114: #{tpu_custom_call.1} parent=1 // pred_check
      _
    $region115: #{tpu_custom_call.1} parent=1 // pred_check_branch
      %208 = sbr.rel (0) target = $region117
    $region116: #{tpu_custom_call.1} parent=1 // pred_region
      %209 = dma.done [#allocation12], 512
    $region117: #{tpu_custom_call.1} parent=1 // pred_fallthru
      _
    // Predicated region
    $region118: #{tpu_custom_call.1} parent=1 // pred_check
      _
    $region119: #{tpu_custom_call.1} parent=1 // pred_check_branch
      %211 = sbr.rel (0) target = $region121
    $region120: #{tpu_custom_call.1} parent=1 // pred_region
      %212 = dma.done [#allocation15], 512
    $region121: #{tpu_custom_call.1} parent=1 // pred_fallthru
      _
    // Predicated region
    $region122: #{tpu_custom_call.1} parent=1 // pred_check
      _
    $region123: #{tpu_custom_call.1} parent=1 // pred_check_branch
      %214 = sbr.rel (0) target = $region125
    $region124: #{tpu_custom_call.1} parent=1 // pred_region
      %215 = dma.done [#allocation15], 16
    $region125: #{tpu_custom_call.1} parent=1 // pred_fallthru
      _
    // Predicated region
    $region126: #{tpu_custom_call.1} parent=1 // pred_check
      _
    $region127: #{tpu_custom_call.1} parent=1 // pred_check_branch
      %217 = sbr.rel (0) target = $region129
    $region128: #{tpu_custom_call.1} parent=1 // pred_region
      %218 = dma.done [#allocation18], 16
    $region129: #{tpu_custom_call.1} parent=1 // pred_fallthru
      _
    // Predicated region
    $region130: #{tpu_custom_call.1} parent=1 // pred_check
      _
    $region131: #{tpu_custom_call.1} parent=1 // pred_check_branch
      %220 = sbr.rel (0) target = $region133
    $region132: #{tpu_custom_call.1} parent=1 // pred_region
      %221 = dma.done [#allocation18], 512
    $region133: #{tpu_custom_call.1} parent=1 // pred_fallthru
      _
    // Predicated region
    $region134: #{tpu_custom_call.1} parent=1 // pred_check
      _
    $region135: #{tpu_custom_call.1} parent=1 // pred_check_branch
      %223 = sbr.rel (0) target = $region137
    $region136: #{tpu_custom_call.1} parent=1 // pred_region
      %224 = dma.done [#allocation21], 16
    $region137: #{tpu_custom_call.1} parent=1 // pred_fallthru
      _
    %v225 = vlaneseq
    %v226 = vshrl.u32 %v225, 7
    %v227 = vlaneseq
    %v228 = vand.u32 %v227, 127
    %v229 = vmul.u32 %v226, 8
    %vm230 = vcmp.ge.s32.totalorder %v228, %v229
    %v231 = vadd.s32 %v226, 1
    %v232 = vmul.u32 %v231, 8
    %vm233 = vcmp.lt.s32.totalorder %v228, %v232
    %vm234 = vmand %vm230, %vm233
    %v235 = vsel %vm234, 1, 0
    %v236 = vcvt.s32.f32 %v235
    %v237 = vmul.f32 %v236, 0.17677669
    %v238 = vld [vmem:[#allocation5] sm:$0xff]
    %v239 = vld [vmem:[#allocation5 + $0x8] sm:$0xff]
    %v240 = vld [vmem:[#allocation2] sm:$0xff]
    %v241 = vld [vmem:[#allocation2 + $0x8] sm:$0xff]
    %v242 = vld [vmem:[#allocation7] sm:$0xff]
    %v243 = vld [vmem:[#allocation7 + $0x8] sm:$0xff]
    %v244 = vld [vmem:[#allocation8] sm:$0xff]
    %v245 = vld [vmem:[#allocation8 + $0x8] sm:$0xff]
    %v246 = vld [vmem:[%s4] sm:$0xff]
    %v247 = vld [vmem:[%s4 + $0x8] sm:$0xff]
    %v248 = vld [vmem:[%s4 + $0x10] sm:$0xff]
    %v249 = vld [vmem:[%s4 + $0x18] sm:$0xff]
    %vm250 = vcmask 261120
    %v252 = vsel %vm250, %v238, 0
    %v255 = vsel %vm250, %v239, 0
    %257 = vmatprep.subr.mxu0 0.0
    %258 = vmatpush1.msra.mxu0 %v246
    %259 = vmatprep.subr.mxu0 0.0
    %260 = vmatpush1.msra.mxu0 %v247
    %261 = vmatprep.subr.mxu0 0.0
    %262 = vmatpush1.msra.mxu0 %v248
    %263 = vmatprep.subr.mxu0 0.0
    %264 = vmatpush1.msra.mxu0 %v249
    %265 = vmatprep.subr.mxu0 0.0
    %266 = vmatpush1.msra.mxu0 0.0
    %267 = vmatprep.subr.mxu0 0.0
    %268 = vmatpush1.msra.mxu0 0.0
    %269 = vmatprep.subr.mxu0 0.0
    %270 = vmatpush1.msra.mxu0 0.0
    %271 = vmatprep.subr.mxu0 0.0
    %272 = vmatpush1.msra.mxu0 0.0
    %273 = vmatprep.subr.mxu0 0.0
    %274 = vmatpush1.msra.mxu0 0.0
    %275 = vmatprep.subr.mxu0 0.0
    %276 = vmatpush1.msra.mxu0 0.0
    %277 = vmatprep.subr.mxu0 0.0
    %278 = vmatpush1.msra.mxu0 0.0
    %279 = vmatprep.subr.mxu0 0.0
    %280 = vmatpush1.msra.mxu0 0.0
    %281 = vmatprep.subr.mxu0 0.0
    %282 = vmatpush1.msra.mxu0 0.0
    %283 = vmatprep.subr.mxu0 0.0
    %284 = vmatpush1.msra.mxu0 0.0
    %285 = vmatprep.subr.mxu0 0.0
    %286 = vmatpush1.msra.mxu0 0.0
    %287 = vmatprep.subr.mxu0 0.0
    %288 = vmatpush1.msra.mxu0 0.0
    %289 = vmatprep.subr.mxu0 0.0
    %290 = vmatpush1.msra.mxu0 0.0
    %291 = vmatprep.subr.mxu0 0.0
    %292 = vmatpush1.msra.mxu0 0.0
    %293 = vmatprep.subr.mxu0 0.0
    %294 = vmatpush1.msra.mxu0 0.0
    %295 = vmatprep.subr.mxu0 0.0
    %296 = vmatpush1.msra.mxu0 0.0
    %297 = vmatprep.subr.mxu0 0.0
    %298 = vmatpush1.msra.mxu0 0.0
    %299 = vmatprep.subr.mxu0 0.0
    %300 = vmatpush1.msra.mxu0 0.0
    %301 = vmatprep.subr.mxu0 0.0
    %302 = vmatpush1.msra.mxu0 0.0
    %303 = vmatprep.subr.mxu0 0.0
    %304 = vmatpush1.msra.mxu0 0.0
    %305 = vmatprep.subr.mxu0 0.0
    %306 = vmatpush1.msra.mxu0 0.0
    %307 = vmatprep.subr.mxu0 0.0
    %308 = vmatpush1.msra.mxu0 0.0
    %309 = vmatprep.subr.mxu0 0.0
    %310 = vmatpush1.msra.mxu0 0.0
    %311 = vmatprep.subr.mxu0 0.0
    %312 = vmatpush1.msra.mxu0 0.0
    %313 = vmatprep.subr.mxu0 0.0
    %314 = vmatpush1.msra.mxu0 0.0
    %315 = vmatprep.subr.mxu0 0.0
    %316 = vmatpush1.msra.mxu0 0.0
    %317 = vmatprep.subr.mxu0 0.0
    %318 = vmatpush1.msra.mxu0 0.0
    %319 = vmatprep.subr.mxu0 0.0
    %320 = vmatpush1.msra.mxu0 0.0
    %321 = vmatprep.mubr.f32.mxu0 0.0
    %322 = vmatmul.mubr.f32.gmra.mrb[0].mxu0 %v252
    %v323 = vpop.f32.mrb[0].mxu0
    %v324 = vadd.f32 0.0, %v323
    %v325 = vpop.f32.mrb[0].mxu0
    %326 = vmatprep.mubr.f32.mxu0 0.0
    %327 = vmatmul.mubr.f32.gmra.mrb[0].mxu0 %v255
    %v328 = vpop.f32.mrb[0].mxu0
    %v329 = vadd.f32 0.0, %v328
    %v330 = vpop.f32.mrb[0].mxu0
    %331 = vdwg.mxu0
    %v332 = vld [vmem:[%s5] sm:$0xff]
    %v333 = vld [vmem:[%s5 + $0x8] sm:$0xff]
    %v334 = vld [vmem:[%s5 + $0x10] sm:$0xff]
    %v335 = vld [vmem:[%s5 + $0x18] sm:$0xff]
    %336 = vmatprep.subr.mxu0 0.0
    %337 = vmatpush1.msra.mxu0 %v332
    %338 = vmatprep.subr.mxu0 0.0
    %339 = vmatpush1.msra.mxu0 %v333
    %340 = vmatprep.subr.mxu0 0.0
    %341 = vmatpush1.msra.mxu0 %v334
    %342 = vmatprep.subr.mxu0 0.0
    %343 = vmatpush1.msra.mxu0 %v335
    %344 = vmatprep.subr.mxu0 0.0
    %345 = vmatpush1.msra.mxu0 0.0
    %346 = vmatprep.subr.mxu0 0.0
    %347 = vmatpush1.msra.mxu0 0.0
    %348 = vmatprep.subr.mxu0 0.0
    %349 = vmatpush1.msra.mxu0 0.0
    %350 = vmatprep.subr.mxu0 0.0
    %351 = vmatpush1.msra.mxu0 0.0
    %352 = vmatprep.subr.mxu0 0.0
    %353 = vmatpush1.msra.mxu0 0.0
    %354 = vmatprep.subr.mxu0 0.0
    %355 = vmatpush1.msra.mxu0 0.0
    %356 = vmatprep.subr.mxu0 0.0
    %357 = vmatpush1.msra.mxu0 0.0
    %358 = vmatprep.subr.mxu0 0.0
    %359 = vmatpush1.msra.mxu0 0.0
    %360 = vmatprep.subr.mxu0 0.0
    %361 = vmatpush1.msra.mxu0 0.0
    %362 = vmatprep.subr.mxu0 0.0
    %363 = vmatpush1.msra.mxu0 0.0
    %364 = vmatprep.subr.mxu0 0.0
    %365 = vmatpush1.msra.mxu0 0.0
    %366 = vmatprep.subr.mxu0 0.0
    %367 = vmatpush1.msra.mxu0 0.0
    %368 = vmatprep.subr.mxu0 0.0
    %369 = vmatpush1.msra.mxu0 0.0
    %370 = vmatprep.subr.mxu0 0.0
    %371 = vmatpush1.msra.mxu0 0.0
    %372 = vmatprep.subr.mxu0 0.0
    %373 = vmatpush1.msra.mxu0 0.0
    %374 = vmatprep.subr.mxu0 0.0
    %375 = vmatpush1.msra.mxu0 0.0
    %376 = vmatprep.subr.mxu0 0.0
    %377 = vmatpush1.msra.mxu0 0.0
    %378 = vmatprep.subr.mxu0 0.0
    %379 = vmatpush1.msra.mxu0 0.0
    %380 = vmatprep.subr.mxu0 0.0
    %381 = vmatpush1.msra.mxu0 0.0
    %382 = vmatprep.subr.mxu0 0.0
    %383 = vmatpush1.msra.mxu0 0.0
    %384 = vmatprep.subr.mxu0 0.0
    %385 = vmatpush1.msra.mxu0 0.0
    %386 = vmatprep.subr.mxu0 0.0
    %387 = vmatpush1.msra.mxu0 0.0
    %388 = vmatprep.subr.mxu0 0.0
    %389 = vmatpush1.msra.mxu0 0.0
    %390 = vmatprep.subr.mxu0 0.0
    %391 = vmatpush1.msra.mxu0 0.0
    %392 = vmatprep.subr.mxu0 0.0
    %393 = vmatpush1.msra.mxu0 0.0
    %394 = vmatprep.subr.mxu0 0.0
    %395 = vmatpush1.msra.mxu0 0.0
    %396 = vmatprep.subr.mxu0 0.0
    %397 = vmatpush1.msra.mxu0 0.0
    %398 = vmatprep.subr.mxu0 0.0
    %399 = vmatpush1.msra.mxu0 0.0
    %400 = vmatprep.mubr.f32.mxu0 0.0
    %401 = vmatmul.mubr.f32.gmra.mrb[0].mxu0 %v252
    %v402 = vpop.f32.mrb[0].mxu0
    %v403 = vadd.f32 0.0, %v402
    %v404 = vpop.f32.mrb[0].mxu0
    %405 = vmatprep.mubr.f32.mxu0 0.0
    %406 = vmatmul.mubr.f32.gmra.mrb[0].mxu0 %v255
    %v407 = vpop.f32.mrb[0].mxu0
    %v408 = vadd.f32 0.0, %v407
    %v409 = vpop.f32.mrb[0].mxu0
    %410 = vdwg.mxu0
    %v411 = vld [vmem:[%s6] sm:$0xff]
    %v412 = vld [vmem:[%s6 + $0x8] sm:$0xff]
    %v413 = vld [vmem:[%s6 + $0x10] sm:$0xff]
    %v414 = vld [vmem:[%s6 + $0x18] sm:$0xff]
    %415 = vmatprep.subr.mxu0 0.0
    %416 = vmatpush1.msra.mxu0 %v411
    %417 = vmatprep.subr.mxu0 0.0
    %418 = vmatpush1.msra.mxu0 %v412
    %419 = vmatprep.subr.mxu0 0.0
    %420 = vmatpush1.msra.mxu0 %v413
    %421 = vmatprep.subr.mxu0 0.0
    %422 = vmatpush1.msra.mxu0 %v414
    %423 = vmatprep.subr.mxu0 0.0
    %424 = vmatpush1.msra.mxu0 0.0
    %425 = vmatprep.subr.mxu0 0.0
    %426 = vmatpush1.msra.mxu0 0.0
    %427 = vmatprep.subr.mxu0 0.0
    %428 = vmatpush1.msra.mxu0 0.0
    %429 = vmatprep.subr.mxu0 0.0
    %430 = vmatpush1.msra.mxu0 0.0
    %431 = vmatprep.subr.mxu0 0.0
    %432 = vmatpush1.msra.mxu0 0.0
    %433 = vmatprep.subr.mxu0 0.0
    %434 = vmatpush1.msra.mxu0 0.0
    %435 = vmatprep.subr.mxu0 0.0
    %436 = vmatpush1.msra.mxu0 0.0
    %437 = vmatprep.subr.mxu0 0.0
    %438 = vmatpush1.msra.mxu0 0.0
    %439 = vmatprep.subr.mxu0 0.0
    %440 = vmatpush1.msra.mxu0 0.0
    %441 = vmatprep.subr.mxu0 0.0
    %442 = vmatpush1.msra.mxu0 0.0
    %443 = vmatprep.subr.mxu0 0.0
    %444 = vmatpush1.msra.mxu0 0.0
    %445 = vmatprep.subr.mxu0 0.0
    %446 = vmatpush1.msra.mxu0 0.0
    %447 = vmatprep.subr.mxu0 0.0
    %448 = vmatpush1.msra.mxu0 0.0
    %449 = vmatprep.subr.mxu0 0.0
    %450 = vmatpush1.msra.mxu0 0.0
    %451 = vmatprep.subr.mxu0 0.0
    %452 = vmatpush1.msra.mxu0 0.0
    %453 = vmatprep.subr.mxu0 0.0
    %454 = vmatpush1.msra.mxu0 0.0
    %455 = vmatprep.subr.mxu0 0.0
    %456 = vmatpush1.msra.mxu0 0.0
    %457 = vmatprep.subr.mxu0 0.0
    %458 = vmatpush1.msra.mxu0 0.0
    %459 = vmatprep.subr.mxu0 0.0
    %460 = vmatpush1.msra.mxu0 0.0
    %461 = vmatprep.subr.mxu0 0.0
    %462 = vmatpush1.msra.mxu0 0.0
    %463 = vmatprep.subr.mxu0 0.0
    %464 = vmatpush1.msra.mxu0 0.0
    %465 = vmatprep.subr.mxu0 0.0
    %466 = vmatpush1.msra.mxu0 0.0
    %467 = vmatprep.subr.mxu0 0.0
    %468 = vmatpush1.msra.mxu0 0.0
    %469 = vmatprep.subr.mxu0 0.0
    %470 = vmatpush1.msra.mxu0 0.0
    %471 = vmatprep.subr.mxu0 0.0
    %472 = vmatpush1.msra.mxu0 0.0
    %473 = vmatprep.subr.mxu0 0.0
    %474 = vmatpush1.msra.mxu0 0.0
    %475 = vmatprep.subr.mxu0 0.0
    %476 = vmatpush1.msra.mxu0 0.0
    %477 = vmatprep.subr.mxu0 0.0
    %478 = vmatpush1.msra.mxu0 0.0
    %479 = vmatprep.mubr.f32.mxu0 0.0
    %480 = vmatmul.mubr.f32.gmra.mrb[0].mxu0 %v252
    %v481 = vpop.f32.mrb[0].mxu0
    %v482 = vadd.f32 0.0, %v481
    %v483 = vpop.f32.mrb[0].mxu0
    %484 = vmatprep.mubr.f32.mxu0 0.0
    %485 = vmatmul.mubr.f32.gmra.mrb[0].mxu0 %v255
    %v486 = vpop.f32.mrb[0].mxu0
    %v487 = vadd.f32 0.0, %v486
    %v488 = vpop.f32.mrb[0].mxu0
    %489 = vdwg.mxu0
    %v492 = vunpack.c.l.s4 1966171168
    %v493 = vunpack.c.0.s8 %v492
    %v494 = vlaneseq
    %v495 = vshrl.u32 %v494, 7
    %v496 = vsub.s32 %v493, %v495
    %v497 = vrot.slane %v237, %v496
    %v498 = vcombine.high %v497, %v497
    %v500 = vunpack.c.l.s4 1966171168
    %v501 = vunpack.c.0.s8 %v500
    %v502 = vlaneseq
    %v503 = vshrl.u32 %v502, 7
    %v504 = vsub.s32 %v501, %v503
    %v505 = vrot.slane %v497, %v504
    %v507 = vunpack.c.l.s4 1966171168
    %v508 = vunpack.c.0.s8 %v507
    %v509 = vlaneseq
    %v510 = vshrl.u32 %v509, 7
    %v511 = vsub.s32 %v508, %v510
    %v512 = vrot.slane %v498, %v511
    %v513 = vcombine.high %v505, %v505
    %v514 = vcombine.high %v512, %v512
    %v515 = vlaneseq
    %v516 = vshrl.u32 %v515, 7
    %v517 = vsub.s32 0, %v516
    %v518 = vrot.slane %v505, %v517
    %v519 = vlaneseq
    %v520 = vshrl.u32 %v519, 7
    %v521 = vsub.s32 0, %v520
    %v522 = vrot.slane %v512, %v521
    %v523 = vlaneseq
    %v524 = vshrl.u32 %v523, 7
    %v525 = vsub.s32 0, %v524
    %v526 = vrot.slane %v513, %v525
    %v527 = vlaneseq
    %v528 = vshrl.u32 %v527, 7
    %v529 = vsub.s32 0, %v528
    %v530 = vrot.slane %v514, %v529
    %v535 = vmul.f32 %v324, %v518
    %v536 = vmul.f32 %v329, %v518
    %v537 = vmul.f32 %v324, %v522
    %v538 = vmul.f32 %v329, %v522
    %v539 = vmul.f32 %v324, %v526
    %v540 = vmul.f32 %v329, %v526
    %v541 = vmul.f32 %v324, %v530
    %v542 = vmul.f32 %v329, %v530
    %v545 = vunpack.c.l.s4 1966171168
    %v546 = vunpack.c.0.s8 %v545
    %v547 = vlaneseq
    %v548 = vshrl.u32 %v547, 7
    %v549 = vsub.s32 %v546, %v548
    %v550 = vrot.slane %v236, %v549
    %v551 = vcombine.high %v550, %v550
    %v553 = vunpack.c.l.s4 1966171168
    %v554 = vunpack.c.0.s8 %v553
    %v555 = vlaneseq
    %v556 = vshrl.u32 %v555, 7
    %v557 = vsub.s32 %v554, %v556
    %v558 = vrot.slane %v550, %v557
    %v560 = vunpack.c.l.s4 1966171168
    %v561 = vunpack.c.0.s8 %v560
    %v562 = vlaneseq
    %v563 = vshrl.u32 %v562, 7
    %v564 = vsub.s32 %v561, %v563
    %v565 = vrot.slane %v551, %v564
    %v566 = vcombine.high %v558, %v558
    %v567 = vcombine.high %v565, %v565
    %v568 = vlaneseq
    %v569 = vshrl.u32 %v568, 7
    %v570 = vsub.s32 0, %v569
    %v571 = vrot.slane %v558, %v570
    %v572 = vlaneseq
    %v573 = vshrl.u32 %v572, 7
    %v574 = vsub.s32 0, %v573
    %v575 = vrot.slane %v565, %v574
    %v576 = vlaneseq
    %v577 = vshrl.u32 %v576, 7
    %v578 = vsub.s32 0, %v577
    %v579 = vrot.slane %v566, %v578
    %v580 = vlaneseq
    %v581 = vshrl.u32 %v580, 7
    %v582 = vsub.s32 0, %v581
    %v583 = vrot.slane %v567, %v582
    %v588 = vmul.f32 %v482, %v571
    %v589 = vmul.f32 %v487, %v571
    %v590 = vmul.f32 %v482, %v575
    %v591 = vmul.f32 %v487, %v575
    %v592 = vmul.f32 %v482, %v579
    %v593 = vmul.f32 %v487, %v579
    %v594 = vmul.f32 %v482, %v583
    %v595 = vmul.f32 %v487, %v583
    %v597 = vsel %vm250, %v535, 0
    %v600 = vsel %vm250, %v536, 0
    %v603 = vsel %vm250, %v403, 0
    %v606 = vsel %vm250, %v408, 0
    %608 = vmatprep.subr.mxu0 0.0
    %609 = vmatpush1.xpose.msra.mxu0 %v603
    %610 = vmatprep.subr.mxu0 0.0
    %611 = vmatpush1.xpose.msra.mxu0 %v606
    %612 = vmatprep.subr.mxu0 0.0
    %613 = vmatpush1.xpose.msra.mxu0 0.0
    %614 = vmatprep.subr.mxu0 0.0
    %615 = vmatpush1.xpose.msra.mxu0 0.0
    %616 = vmatprep.subr.mxu0 0.0
    %617 = vmatpush1.xpose.msra.mxu0 0.0
    %618 = vmatprep.subr.mxu0 0.0
    %619 = vmatpush1.xpose.msra.mxu0 0.0
    %620 = vmatprep.subr.mxu0 0.0
    %621 = vmatpush1.xpose.msra.mxu0 0.0
    %622 = vmatprep.subr.mxu0 0.0
    %623 = vmatpush1.xpose.msra.mxu0 0.0
    %624 = vmatprep.subr.mxu0 0.0
    %625 = vmatpush1.xpose.msra.mxu0 0.0
    %626 = vmatprep.subr.mxu0 0.0
    %627 = vmatpush1.xpose.msra.mxu0 0.0
    %628 = vmatprep.subr.mxu0 0.0
    %629 = vmatpush1.xpose.msra.mxu0 0.0
    %630 = vmatprep.subr.mxu0 0.0
    %631 = vmatpush1.xpose.msra.mxu0 0.0
    %632 = vmatprep.subr.mxu0 0.0
    %633 = vmatpush1.xpose.msra.mxu0 0.0
    %634 = vmatprep.subr.mxu0 0.0
    %635 = vmatpush1.xpose.msra.mxu0 0.0
    %636 = vmatprep.subr.mxu0 0.0
    %637 = vmatpush1.xpose.msra.mxu0 0.0
    %638 = vmatprep.subr.mxu0 0.0
    %639 = vmatpush1.xpose.msra.mxu0 0.0
    %640 = vmatprep.subr.mxu0 0.0
    %641 = vmatpush1.xpose.msra.mxu0 0.0
    %642 = vmatprep.subr.mxu0 0.0
    %643 = vmatpush1.xpose.msra.mxu0 0.0
    %644 = vmatprep.subr.mxu0 0.0
    %645 = vmatpush1.xpose.msra.mxu0 0.0
    %646 = vmatprep.subr.mxu0 0.0
    %647 = vmatpush1.xpose.msra.mxu0 0.0
    %648 = vmatprep.subr.mxu0 0.0
    %649 = vmatpush1.xpose.msra.mxu0 0.0
    %650 = vmatprep.subr.mxu0 0.0
    %651 = vmatpush1.xpose.msra.mxu0 0.0
    %652 = vmatprep.subr.mxu0 0.0
    %653 = vmatpush1.xpose.msra.mxu0 0.0
    %654 = vmatprep.subr.mxu0 0.0
    %655 = vmatpush1.xpose.msra.mxu0 0.0
    %656 = vmatprep.subr.mxu0 0.0
    %657 = vmatpush1.xpose.msra.mxu0 0.0
    %658 = vmatprep.subr.mxu0 0.0
    %659 = vmatpush1.xpose.msra.mxu0 0.0
    %660 = vmatprep.subr.mxu0 0.0
    %661 = vmatpush1.xpose.msra.mxu0 0.0
    %662 = vmatprep.subr.mxu0 0.0
    %663 = vmatpush1.xpose.msra.mxu0 0.0
    %664 = vmatprep.subr.mxu0 0.0
    %665 = vmatpush1.xpose.msra.mxu0 0.0
    %666 = vmatprep.subr.mxu0 0.0
    %667 = vmatpush1.xpose.msra.mxu0 0.0
    %668 = vmatprep.subr.mxu0 0.0
    %669 = vmatpush1.xpose.msra.mxu0 0.0
    %670 = vmatprep.subr.mxu0 0.0
    %671 = vmatpush1.xpose.msra.mxu0 0.0
    %672 = vmatprep.mubr.f32.mxu0 0.0
    %673 = vmatmul.mubr.f32.gmra.mrb[0].mxu0 %v597
    %v674 = vpop.f32.mrb[0].mxu0
    %v675 = vadd.f32 %v242, %v674
    %v676 = vpop.f32.mrb[0].mxu0
    %677 = vmatprep.mubr.f32.mxu0 0.0
    %678 = vmatmul.mubr.f32.gmra.mrb[0].mxu0 %v600
    %v679 = vpop.f32.mrb[0].mxu0
    %v680 = vadd.f32 %v243, %v679
    %v681 = vpop.f32.mrb[0].mxu0
    %682 = vdwg.mxu0
    %v684 = vsel %vm250, %v537, 0
    %v687 = vsel %vm250, %v538, 0
    %689 = vmatprep.subr.mxu0 0.0
    %690 = vmatpush1.xpose.msra.mxu0 %v603
    %691 = vmatprep.subr.mxu0 0.0
    %692 = vmatpush1.xpose.msra.mxu0 %v606
    %693 = vmatprep.subr.mxu0 0.0
    %694 = vmatpush1.xpose.msra.mxu0 0.0
    %695 = vmatprep.subr.mxu0 0.0
    %696 = vmatpush1.xpose.msra.mxu0 0.0
    %697 = vmatprep.subr.mxu0 0.0
    %698 = vmatpush1.xpose.msra.mxu0 0.0
    %699 = vmatprep.subr.mxu0 0.0
    %700 = vmatpush1.xpose.msra.mxu0 0.0
    %701 = vmatprep.subr.mxu0 0.0
    %702 = vmatpush1.xpose.msra.mxu0 0.0
    %703 = vmatprep.subr.mxu0 0.0
    %704 = vmatpush1.xpose.msra.mxu0 0.0
    %705 = vmatprep.subr.mxu0 0.0
    %706 = vmatpush1.xpose.msra.mxu0 0.0
    %707 = vmatprep.subr.mxu0 0.0
    %708 = vmatpush1.xpose.msra.mxu0 0.0
    %709 = vmatprep.subr.mxu0 0.0
    %710 = vmatpush1.xpose.msra.mxu0 0.0
    %711 = vmatprep.subr.mxu0 0.0
    %712 = vmatpush1.xpose.msra.mxu0 0.0
    %713 = vmatprep.subr.mxu0 0.0
    %714 = vmatpush1.xpose.msra.mxu0 0.0
    %715 = vmatprep.subr.mxu0 0.0
    %716 = vmatpush1.xpose.msra.mxu0 0.0
    %717 = vmatprep.subr.mxu0 0.0
    %718 = vmatpush1.xpose.msra.mxu0 0.0
    %719 = vmatprep.subr.mxu0 0.0
    %720 = vmatpush1.xpose.msra.mxu0 0.0
    %721 = vmatprep.subr.mxu0 0.0
    %722 = vmatpush1.xpose.msra.mxu0 0.0
    %723 = vmatprep.subr.mxu0 0.0
    %724 = vmatpush1.xpose.msra.mxu0 0.0
    %725 = vmatprep.subr.mxu0 0.0
    %726 = vmatpush1.xpose.msra.mxu0 0.0
    %727 = vmatprep.subr.mxu0 0.0
    %728 = vmatpush1.xpose.msra.mxu0 0.0
    %729 = vmatprep.subr.mxu0 0.0
    %730 = vmatpush1.xpose.msra.mxu0 0.0
    %731 = vmatprep.subr.mxu0 0.0
    %732 = vmatpush1.xpose.msra.mxu0 0.0
    %733 = vmatprep.subr.mxu0 0.0
    %734 = vmatpush1.xpose.msra.mxu0 0.0
    %735 = vmatprep.subr.mxu0 0.0
    %736 = vmatpush1.xpose.msra.mxu0 0.0
    %737 = vmatprep.subr.mxu0 0.0
    %738 = vmatpush1.xpose.msra.mxu0 0.0
    %739 = vmatprep.subr.mxu0 0.0
    %740 = vmatpush1.xpose.msra.mxu0 0.0
    %741 = vmatprep.subr.mxu0 0.0
    %742 = vmatpush1.xpose.msra.mxu0 0.0
    %743 = vmatprep.subr.mxu0 0.0
    %744 = vmatpush1.xpose.msra.mxu0 0.0
    %745 = vmatprep.subr.mxu0 0.0
    %746 = vmatpush1.xpose.msra.mxu0 0.0
    %747 = vmatprep.subr.mxu0 0.0
    %748 = vmatpush1.xpose.msra.mxu0 0.0
    %749 = vmatprep.subr.mxu0 0.0
    %750 = vmatpush1.xpose.msra.mxu0 0.0
    %751 = vmatprep.subr.mxu0 0.0
    %752 = vmatpush1.xpose.msra.mxu0 0.0
    %753 = vmatprep.mubr.f32.mxu0 0.0
    %754 = vmatmul.mubr.f32.gmra.mrb[0].mxu0 %v684
    %v755 = vpop.f32.mrb[0].mxu0
    %v756 = vadd.f32 %v242, %v755
    %v757 = vpop.f32.mrb[0].mxu0
    %758 = vmatprep.mubr.f32.mxu0 0.0
    %759 = vmatmul.mubr.f32.gmra.mrb[0].mxu0 %v687
    %v760 = vpop.f32.mrb[0].mxu0
    %v761 = vadd.f32 %v243, %v760
    %v762 = vpop.f32.mrb[0].mxu0
    %763 = vdwg.mxu0
    %v765 = vsel %vm250, %v539, 0
    %v768 = vsel %vm250, %v540, 0
    %770 = vmatprep.subr.mxu0 0.0
    %771 = vmatpush1.xpose.msra.mxu0 %v603
    %772 = vmatprep.subr.mxu0 0.0
    %773 = vmatpush1.xpose.msra.mxu0 %v606
    %774 = vmatprep.subr.mxu0 0.0
    %775 = vmatpush1.xpose.msra.mxu0 0.0
    %776 = vmatprep.subr.mxu0 0.0
    %777 = vmatpush1.xpose.msra.mxu0 0.0
    %778 = vmatprep.subr.mxu0 0.0
    %779 = vmatpush1.xpose.msra.mxu0 0.0
    %780 = vmatprep.subr.mxu0 0.0
    %781 = vmatpush1.xpose.msra.mxu0 0.0
    %782 = vmatprep.subr.mxu0 0.0
    %783 = vmatpush1.xpose.msra.mxu0 0.0
    %784 = vmatprep.subr.mxu0 0.0
    %785 = vmatpush1.xpose.msra.mxu0 0.0
    %786 = vmatprep.subr.mxu0 0.0
    %787 = vmatpush1.xpose.msra.mxu0 0.0
    %788 = vmatprep.subr.mxu0 0.0
    %789 = vmatpush1.xpose.msra.mxu0 0.0
    %790 = vmatprep.subr.mxu0 0.0
    %791 = vmatpush1.xpose.msra.mxu0 0.0
    %792 = vmatprep.subr.mxu0 0.0
    %793 = vmatpush1.xpose.msra.mxu0 0.0
    %794 = vmatprep.subr.mxu0 0.0
    %795 = vmatpush1.xpose.msra.mxu0 0.0
    %796 = vmatprep.subr.mxu0 0.0
    %797 = vmatpush1.xpose.msra.mxu0 0.0
    %798 = vmatprep.subr.mxu0 0.0
    %799 = vmatpush1.xpose.msra.mxu0 0.0
    %800 = vmatprep.subr.mxu0 0.0
    %801 = vmatpush1.xpose.msra.mxu0 0.0
    %802 = vmatprep.subr.mxu0 0.0
    %803 = vmatpush1.xpose.msra.mxu0 0.0
    %804 = vmatprep.subr.mxu0 0.0
    %805 = vmatpush1.xpose.msra.mxu0 0.0
    %806 = vmatprep.subr.mxu0 0.0
    %807 = vmatpush1.xpose.msra.mxu0 0.0
    %808 = vmatprep.subr.mxu0 0.0
    %809 = vmatpush1.xpose.msra.mxu0 0.0
    %810 = vmatprep.subr.mxu0 0.0
    %811 = vmatpush1.xpose.msra.mxu0 0.0
    %812 = vmatprep.subr.mxu0 0.0
    %813 = vmatpush1.xpose.msra.mxu0 0.0
    %814 = vmatprep.subr.mxu0 0.0
    %815 = vmatpush1.xpose.msra.mxu0 0.0
    %816 = vmatprep.subr.mxu0 0.0
    %817 = vmatpush1.xpose.msra.mxu0 0.0
    %818 = vmatprep.subr.mxu0 0.0
    %819 = vmatpush1.xpose.msra.mxu0 0.0
    %820 = vmatprep.subr.mxu0 0.0
    %821 = vmatpush1.xpose.msra.mxu0 0.0
    %822 = vmatprep.subr.mxu0 0.0
    %823 = vmatpush1.xpose.msra.mxu0 0.0
    %824 = vmatprep.subr.mxu0 0.0
    %825 = vmatpush1.xpose.msra.mxu0 0.0
    %826 = vmatprep.subr.mxu0 0.0
    %827 = vmatpush1.xpose.msra.mxu0 0.0
    %828 = vmatprep.subr.mxu0 0.0
    %829 = vmatpush1.xpose.msra.mxu0 0.0
    %830 = vmatprep.subr.mxu0 0.0
    %831 = vmatpush1.xpose.msra.mxu0 0.0
    %832 = vmatprep.subr.mxu0 0.0
    %833 = vmatpush1.xpose.msra.mxu0 0.0
    %834 = vmatprep.mubr.f32.mxu0 0.0
    %835 = vmatmul.mubr.f32.gmra.mrb[0].mxu0 %v765
    %v836 = vpop.f32.mrb[0].mxu0
    %v837 = vadd.f32 %v242, %v836
    %v838 = vpop.f32.mrb[0].mxu0
    %839 = vmatprep.mubr.f32.mxu0 0.0
    %840 = vmatmul.mubr.f32.gmra.mrb[0].mxu0 %v768
    %v841 = vpop.f32.mrb[0].mxu0
    %v842 = vadd.f32 %v243, %v841
    %v843 = vpop.f32.mrb[0].mxu0
    %844 = vdwg.mxu0
    %v846 = vsel %vm250, %v541, 0
    %v849 = vsel %vm250, %v542, 0
    %851 = vmatprep.subr.mxu0 0.0
    %852 = vmatpush1.xpose.msra.mxu0 %v603
    %853 = vmatprep.subr.mxu0 0.0
    %854 = vmatpush1.xpose.msra.mxu0 %v606
    %855 = vmatprep.subr.mxu0 0.0
    %856 = vmatpush1.xpose.msra.mxu0 0.0
    %857 = vmatprep.subr.mxu0 0.0
    %858 = vmatpush1.xpose.msra.mxu0 0.0
    %859 = vmatprep.subr.mxu0 0.0
    %860 = vmatpush1.xpose.msra.mxu0 0.0
    %861 = vmatprep.subr.mxu0 0.0
    %862 = vmatpush1.xpose.msra.mxu0 0.0
    %863 = vmatprep.subr.mxu0 0.0
    %864 = vmatpush1.xpose.msra.mxu0 0.0
    %865 = vmatprep.subr.mxu0 0.0
    %866 = vmatpush1.xpose.msra.mxu0 0.0
    %867 = vmatprep.subr.mxu0 0.0
    %868 = vmatpush1.xpose.msra.mxu0 0.0
    %869 = vmatprep.subr.mxu0 0.0
    %870 = vmatpush1.xpose.msra.mxu0 0.0
    %871 = vmatprep.subr.mxu0 0.0
    %872 = vmatpush1.xpose.msra.mxu0 0.0
    %873 = vmatprep.subr.mxu0 0.0
    %874 = vmatpush1.xpose.msra.mxu0 0.0
    %875 = vmatprep.subr.mxu0 0.0
    %876 = vmatpush1.xpose.msra.mxu0 0.0
    %877 = vmatprep.subr.mxu0 0.0
    %878 = vmatpush1.xpose.msra.mxu0 0.0
    %879 = vmatprep.subr.mxu0 0.0
    %880 = vmatpush1.xpose.msra.mxu0 0.0
    %881 = vmatprep.subr.mxu0 0.0
    %882 = vmatpush1.xpose.msra.mxu0 0.0
    %883 = vmatprep.subr.mxu0 0.0
    %884 = vmatpush1.xpose.msra.mxu0 0.0
    %885 = vmatprep.subr.mxu0 0.0
    %886 = vmatpush1.xpose.msra.mxu0 0.0
    %887 = vmatprep.subr.mxu0 0.0
    %888 = vmatpush1.xpose.msra.mxu0 0.0
    %889 = vmatprep.subr.mxu0 0.0
    %890 = vmatpush1.xpose.msra.mxu0 0.0
    %891 = vmatprep.subr.mxu0 0.0
    %892 = vmatpush1.xpose.msra.mxu0 0.0
    %893 = vmatprep.subr.mxu0 0.0
    %894 = vmatpush1.xpose.msra.mxu0 0.0
    %895 = vmatprep.subr.mxu0 0.0
    %896 = vmatpush1.xpose.msra.mxu0 0.0
    %897 = vmatprep.subr.mxu0 0.0
    %898 = vmatpush1.xpose.msra.mxu0 0.0
    %899 = vmatprep.subr.mxu0 0.0
    %900 = vmatpush1.xpose.msra.mxu0 0.0
    %901 = vmatprep.subr.mxu0 0.0
    %902 = vmatpush1.xpose.msra.mxu0 0.0
    %903 = vmatprep.subr.mxu0 0.0
    %904 = vmatpush1.xpose.msra.mxu0 0.0
    %905 = vmatprep.subr.mxu0 0.0
    %906 = vmatpush1.xpose.msra.mxu0 0.0
    %907 = vmatprep.subr.mxu0 0.0
    %908 = vmatpush1.xpose.msra.mxu0 0.0
    %909 = vmatprep.subr.mxu0 0.0
    %910 = vmatpush1.xpose.msra.mxu0 0.0
    %911 = vmatprep.subr.mxu0 0.0
    %912 = vmatpush1.xpose.msra.mxu0 0.0
    %913 = vmatprep.subr.mxu0 0.0
    %914 = vmatpush1.xpose.msra.mxu0 0.0
    %915 = vmatprep.mubr.f32.mxu0 0.0
    %916 = vmatmul.mubr.f32.gmra.mrb[0].mxu0 %v846
    %v917 = vpop.f32.mrb[0].mxu0
    %v918 = vadd.f32 %v242, %v917
    %v919 = vpop.f32.mrb[0].mxu0
    %920 = vmatprep.mubr.f32.mxu0 0.0
    %921 = vmatmul.mubr.f32.gmra.mrb[0].mxu0 %v849
    %v922 = vpop.f32.mrb[0].mxu0
    %v923 = vadd.f32 %v243, %v922
    %v924 = vpop.f32.mrb[0].mxu0
    %925 = vdwg.mxu0
    %vm926 = vcmask 130048
    %v927 = vsel %vm926, %v675, -inf
    %928 = vmax.xlane.f32.xlu0 %v927
    %v929 = vpop.xlane.xlu0 %928
    %v930 = vsel %vm926, %v680, -inf
    %931 = vmax.xlane.f32.xlu0 %v930
    %v932 = vpop.xlane.xlu0 %931
    %v933 = vsel %vm926, %v756, -inf
    %934 = vmax.xlane.f32.xlu0 %v933
    %v935 = vpop.xlane.xlu0 %934
    %v936 = vsel %vm926, %v761, -inf
    %937 = vmax.xlane.f32.xlu0 %v936
    %v938 = vpop.xlane.xlu0 %937
    %v939 = vsel %vm926, %v837, -inf
    %940 = vmax.xlane.f32.xlu0 %v939
    %v941 = vpop.xlane.xlu0 %940
    %v942 = vsel %vm926, %v842, -inf
    %943 = vmax.xlane.f32.xlu0 %v942
    %v944 = vpop.xlane.xlu0 %943
    %v945 = vsel %vm926, %v918, -inf
    %946 = vmax.xlane.f32.xlu0 %v945
    %v947 = vpop.xlane.xlu0 %946
    %v948 = vsel %vm926, %v923, -inf
    %949 = vmax.xlane.f32.xlu0 %v948
    %v950 = vpop.xlane.xlu0 %949
    %v951 = vsub.f32 %v675, %v929
    %v952 = vsub.f32 %v680, %v932
    %v953 = vsub.f32 %v756, %v935
    %v954 = vsub.f32 %v761, %v938
    %v955 = vsub.f32 %v837, %v941
    %v956 = vsub.f32 %v842, %v944
    %v957 = vsub.f32 %v918, %v947
    %v958 = vsub.f32 %v923, %v950
    %v959 = vmul.f32 %v951, 1.442695
    %v960 = vpow.pop %v959
    %v961 = vmul.f32 %v952, 1.442695
    %v962 = vpow.pop %v961
    %v963 = vmul.f32 %v953, 1.442695
    %v964 = vpow.pop %v963
    %v965 = vmul.f32 %v954, 1.442695
    %v966 = vpow.pop %v965
    %v967 = vmul.f32 %v955, 1.442695
    %v968 = vpow.pop %v967
    %v969 = vmul.f32 %v956, 1.442695
    %v970 = vpow.pop %v969
    %v971 = vmul.f32 %v957, 1.442695
    %v972 = vpow.pop %v971
    %v973 = vmul.f32 %v958, 1.442695
    %v974 = vpow.pop %v973
    %v975 = vsel %vm926, %v960, 0.0
    %976 = vadd.xlane.f32.xlu0 %v975
    %v977 = vpop.xlane.xlu0 %976
    %v978 = vsel %vm926, %v962, 0.0
    %979 = vadd.xlane.f32.xlu0 %v978
    %v980 = vpop.xlane.xlu0 %979
    %v981 = vsel %vm926, %v964, 0.0
    %982 = vadd.xlane.f32.xlu0 %v981
    %v983 = vpop.xlane.xlu0 %982
    %v984 = vsel %vm926, %v966, 0.0
    %985 = vadd.xlane.f32.xlu0 %v984
    %v986 = vpop.xlane.xlu0 %985
    %v987 = vsel %vm926, %v968, 0.0
    %988 = vadd.xlane.f32.xlu0 %v987
    %v989 = vpop.xlane.xlu0 %988
    %v990 = vsel %vm926, %v970, 0.0
    %991 = vadd.xlane.f32.xlu0 %v990
    %v992 = vpop.xlane.xlu0 %991
    %v993 = vsel %vm926, %v972, 0.0
    %994 = vadd.xlane.f32.xlu0 %v993
    %v995 = vpop.xlane.xlu0 %994
    %v996 = vsel %vm926, %v974, 0.0
    %997 = vadd.xlane.f32.xlu0 %v996
    %v998 = vpop.xlane.xlu0 %997
    %v999 = vrcp.pop %v977
    %v1000 = vrcp.pop %v980
    %v1001 = vrcp.pop %v983
    %v1002 = vrcp.pop %v986
    %v1003 = vrcp.pop %v989
    %v1004 = vrcp.pop %v992
    %v1005 = vrcp.pop %v995
    %v1006 = vrcp.pop %v998
    %v1007 = vmul.f32 %v960, %v999
    %v1008 = vmul.f32 %v962, %v1000
    %v1009 = vmul.f32 %v964, %v1001
    %v1010 = vmul.f32 %v966, %v1002
    %v1011 = vmul.f32 %v968, %v1003
    %v1012 = vmul.f32 %v970, %v1004
    %v1013 = vmul.f32 %v972, %v1005
    %v1014 = vmul.f32 %v974, %v1006
    %v1016 = vsel %vm926, %v1007, 0
    %v1019 = vsel %vm926, %v1008, 0
    %1021 = vmatprep.subr.mxu0 0.0
    %1022 = vmatpush1.msra.mxu0 %v588
    %1023 = vmatprep.subr.mxu0 0.0
    %1024 = vmatpush1.msra.mxu0 %v589
    %1025 = vmatprep.subr.mxu0 0.0
    %1026 = vmatpush1.msra.mxu0 0.0
    %1027 = vmatprep.subr.mxu0 0.0
    %1028 = vmatpush1.msra.mxu0 0.0
    %1029 = vmatprep.subr.mxu0 0.0
    %1030 = vmatpush1.msra.mxu0 0.0
    %1031 = vmatprep.subr.mxu0 0.0
    %1032 = vmatpush1.msra.mxu0 0.0
    %1033 = vmatprep.subr.mxu0 0.0
    %1034 = vmatpush1.msra.mxu0 0.0
    %1035 = vmatprep.subr.mxu0 0.0
    %1036 = vmatpush1.msra.mxu0 0.0
    %1037 = vmatprep.subr.mxu0 0.0
    %1038 = vmatpush1.msra.mxu0 0.0
    %1039 = vmatprep.subr.mxu0 0.0
    %1040 = vmatpush1.msra.mxu0 0.0
    %1041 = vmatprep.subr.mxu0 0.0
    %1042 = vmatpush1.msra.mxu0 0.0
    %1043 = vmatprep.subr.mxu0 0.0
    %1044 = vmatpush1.msra.mxu0 0.0
    %1045 = vmatprep.subr.mxu0 0.0
    %1046 = vmatpush1.msra.mxu0 0.0
    %1047 = vmatprep.subr.mxu0 0.0
    %1048 = vmatpush1.msra.mxu0 0.0
    %1049 = vmatprep.subr.mxu0 0.0
    %1050 = vmatpush1.msra.mxu0 0.0
    %1051 = vmatprep.subr.mxu0 0.0
    %1052 = vmatpush1.msra.mxu0 0.0
    %1053 = vmatprep.subr.mxu0 0.0
    %1054 = vmatpush1.msra.mxu0 0.0
    %1055 = vmatprep.subr.mxu0 0.0
    %1056 = vmatpush1.msra.mxu0 0.0
    %1057 = vmatprep.subr.mxu0 0.0
    %1058 = vmatpush1.msra.mxu0 0.0
    %1059 = vmatprep.subr.mxu0 0.0
    %1060 = vmatpush1.msra.mxu0 0.0
    %1061 = vmatprep.subr.mxu0 0.0
    %1062 = vmatpush1.msra.mxu0 0.0
    %1063 = vmatprep.subr.mxu0 0.0
    %1064 = vmatpush1.msra.mxu0 0.0
    %1065 = vmatprep.subr.mxu0 0.0
    %1066 = vmatpush1.msra.mxu0 0.0
    %1067 = vmatprep.subr.mxu0 0.0
    %1068 = vmatpush1.msra.mxu0 0.0
    %1069 = vmatprep.subr.mxu0 0.0
    %1070 = vmatpush1.msra.mxu0 0.0
    %1071 = vmatprep.subr.mxu0 0.0
    %1072 = vmatpush1.msra.mxu0 0.0
    %1073 = vmatprep.subr.mxu0 0.0
    %1074 = vmatpush1.msra.mxu0 0.0
    %1075 = vmatprep.subr.mxu0 0.0
    %1076 = vmatpush1.msra.mxu0 0.0
    %1077 = vmatprep.subr.mxu0 0.0
    %1078 = vmatpush1.msra.mxu0 0.0
    %1079 = vmatprep.subr.mxu0 0.0
    %1080 = vmatpush1.msra.mxu0 0.0
    %1081 = vmatprep.subr.mxu0 0.0
    %1082 = vmatpush1.msra.mxu0 0.0
    %1083 = vmatprep.subr.mxu0 0.0
    %1084 = vmatpush1.msra.mxu0 0.0
    %1085 = vmatprep.mubr.f32.mxu0 0.0
    %1086 = vmatmul.mubr.f32.gmra.mrb[0].mxu0 %v1016
    %v1087 = vpop.f32.mrb[0].mxu0
    %v1088 = vadd.f32 0.0, %v1087
    %v1089 = vpop.f32.mrb[0].mxu0
    %1090 = vmatprep.mubr.f32.mxu0 0.0
    %1091 = vmatmul.mubr.f32.gmra.mrb[0].mxu0 %v1019
    %v1092 = vpop.f32.mrb[0].mxu0
    %v1093 = vadd.f32 0.0, %v1092
    %v1094 = vpop.f32.mrb[0].mxu0
    %1095 = vdwg.mxu0
    %v1097 = vsel %vm926, %v1009, 0
    %v1100 = vsel %vm926, %v1010, 0
    %1102 = vmatprep.subr.mxu0 0.0
    %1103 = vmatpush1.msra.mxu0 %v590
    %1104 = vmatprep.subr.mxu0 0.0
    %1105 = vmatpush1.msra.mxu0 %v591
    %1106 = vmatprep.subr.mxu0 0.0
    %1107 = vmatpush1.msra.mxu0 0.0
    %1108 = vmatprep.subr.mxu0 0.0
    %1109 = vmatpush1.msra.mxu0 0.0
    %1110 = vmatprep.subr.mxu0 0.0
    %1111 = vmatpush1.msra.mxu0 0.0
    %1112 = vmatprep.subr.mxu0 0.0
    %1113 = vmatpush1.msra.mxu0 0.0
    %1114 = vmatprep.subr.mxu0 0.0
    %1115 = vmatpush1.msra.mxu0 0.0
    %1116 = vmatprep.subr.mxu0 0.0
    %1117 = vmatpush1.msra.mxu0 0.0
    %1118 = vmatprep.subr.mxu0 0.0
    %1119 = vmatpush1.msra.mxu0 0.0
    %1120 = vmatprep.subr.mxu0 0.0
    %1121 = vmatpush1.msra.mxu0 0.0
    %1122 = vmatprep.subr.mxu0 0.0
    %1123 = vmatpush1.msra.mxu0 0.0
    %1124 = vmatprep.subr.mxu0 0.0
    %1125 = vmatpush1.msra.mxu0 0.0
    %1126 = vmatprep.subr.mxu0 0.0
    %1127 = vmatpush1.msra.mxu0 0.0
    %1128 = vmatprep.subr.mxu0 0.0
    %1129 = vmatpush1.msra.mxu0 0.0
    %1130 = vmatprep.subr.mxu0 0.0
    %1131 = vmatpush1.msra.mxu0 0.0
    %1132 = vmatprep.subr.mxu0 0.0
    %1133 = vmatpush1.msra.mxu0 0.0
    %1134 = vmatprep.subr.mxu0 0.0
    %1135 = vmatpush1.msra.mxu0 0.0
    %1136 = vmatprep.subr.mxu0 0.0
    %1137 = vmatpush1.msra.mxu0 0.0
    %1138 = vmatprep.subr.mxu0 0.0
    %1139 = vmatpush1.msra.mxu0 0.0
    %1140 = vmatprep.subr.mxu0 0.0
    %1141 = vmatpush1.msra.mxu0 0.0
    %1142 = vmatprep.subr.mxu0 0.0
    %1143 = vmatpush1.msra.mxu0 0.0
    %1144 = vmatprep.subr.mxu0 0.0
    %1145 = vmatpush1.msra.mxu0 0.0
    %1146 = vmatprep.subr.mxu0 0.0
    %1147 = vmatpush1.msra.mxu0 0.0
    %1148 = vmatprep.subr.mxu0 0.0
    %1149 = vmatpush1.msra.mxu0 0.0
    %1150 = vmatprep.subr.mxu0 0.0
    %1151 = vmatpush1.msra.mxu0 0.0
    %1152 = vmatprep.subr.mxu0 0.0
    %1153 = vmatpush1.msra.mxu0 0.0
    %1154 = vmatprep.subr.mxu0 0.0
    %1155 = vmatpush1.msra.mxu0 0.0
    %1156 = vmatprep.subr.mxu0 0.0
    %1157 = vmatpush1.msra.mxu0 0.0
    %1158 = vmatprep.subr.mxu0 0.0
    %1159 = vmatpush1.msra.mxu0 0.0
    %1160 = vmatprep.subr.mxu0 0.0
    %1161 = vmatpush1.msra.mxu0 0.0
    %1162 = vmatprep.subr.mxu0 0.0
    %1163 = vmatpush1.msra.mxu0 0.0
    %1164 = vmatprep.subr.mxu0 0.0
    %1165 = vmatpush1.msra.mxu0 0.0
    %1166 = vmatprep.mubr.f32.mxu0 0.0
    %1167 = vmatmul.mubr.f32.gmra.mrb[0].mxu0 %v1097
    %v1168 = vpop.f32.mrb[0].mxu0
    %v1169 = vadd.f32 0.0, %v1168
    %v1170 = vpop.f32.mrb[0].mxu0
    %1171 = vmatprep.mubr.f32.mxu0 0.0
    %1172 = vmatmul.mubr.f32.gmra.mrb[0].mxu0 %v1100
    %v1173 = vpop.f32.mrb[0].mxu0
    %v1174 = vadd.f32 0.0, %v1173
    %v1175 = vpop.f32.mrb[0].mxu0
    %1176 = vdwg.mxu0
    %v1178 = vsel %vm926, %v1011, 0
    %v1181 = vsel %vm926, %v1012, 0
    %1183 = vmatprep.subr.mxu0 0.0
    %1184 = vmatpush1.msra.mxu0 %v592
    %1185 = vmatprep.subr.mxu0 0.0
    %1186 = vmatpush1.msra.mxu0 %v593
    %1187 = vmatprep.subr.mxu0 0.0
    %1188 = vmatpush1.msra.mxu0 0.0
    %1189 = vmatprep.subr.mxu0 0.0
    %1190 = vmatpush1.msra.mxu0 0.0
    %1191 = vmatprep.subr.mxu0 0.0
    %1192 = vmatpush1.msra.mxu0 0.0
    %1193 = vmatprep.subr.mxu0 0.0
    %1194 = vmatpush1.msra.mxu0 0.0
    %1195 = vmatprep.subr.mxu0 0.0
    %1196 = vmatpush1.msra.mxu0 0.0
    %1197 = vmatprep.subr.mxu0 0.0
    %1198 = vmatpush1.msra.mxu0 0.0
    %1199 = vmatprep.subr.mxu0 0.0
    %1200 = vmatpush1.msra.mxu0 0.0
    %1201 = vmatprep.subr.mxu0 0.0
    %1202 = vmatpush1.msra.mxu0 0.0
    %1203 = vmatprep.subr.mxu0 0.0
    %1204 = vmatpush1.msra.mxu0 0.0
    %1205 = vmatprep.subr.mxu0 0.0
    %1206 = vmatpush1.msra.mxu0 0.0
    %1207 = vmatprep.subr.mxu0 0.0
    %1208 = vmatpush1.msra.mxu0 0.0
    %1209 = vmatprep.subr.mxu0 0.0
    %1210 = vmatpush1.msra.mxu0 0.0
    %1211 = vmatprep.subr.mxu0 0.0
    %1212 = vmatpush1.msra.mxu0 0.0
    %1213 = vmatprep.subr.mxu0 0.0
    %1214 = vmatpush1.msra.mxu0 0.0
    %1215 = vmatprep.subr.mxu0 0.0
    %1216 = vmatpush1.msra.mxu0 0.0
    %1217 = vmatprep.subr.mxu0 0.0
    %1218 = vmatpush1.msra.mxu0 0.0
    %1219 = vmatprep.subr.mxu0 0.0
    %1220 = vmatpush1.msra.mxu0 0.0
    %1221 = vmatprep.subr.mxu0 0.0
    %1222 = vmatpush1.msra.mxu0 0.0
    %1223 = vmatprep.subr.mxu0 0.0
    %1224 = vmatpush1.msra.mxu0 0.0
    %1225 = vmatprep.subr.mxu0 0.0
    %1226 = vmatpush1.msra.mxu0 0.0
    %1227 = vmatprep.subr.mxu0 0.0
    %1228 = vmatpush1.msra.mxu0 0.0
    %1229 = vmatprep.subr.mxu0 0.0
    %1230 = vmatpush1.msra.mxu0 0.0
    %1231 = vmatprep.subr.mxu0 0.0
    %1232 = vmatpush1.msra.mxu0 0.0
    %1233 = vmatprep.subr.mxu0 0.0
    %1234 = vmatpush1.msra.mxu0 0.0
    %1235 = vmatprep.subr.mxu0 0.0
    %1236 = vmatpush1.msra.mxu0 0.0
    %1237 = vmatprep.subr.mxu0 0.0
    %1238 = vmatpush1.msra.mxu0 0.0
    %1239 = vmatprep.subr.mxu0 0.0
    %1240 = vmatpush1.msra.mxu0 0.0
    %1241 = vmatprep.subr.mxu0 0.0
    %1242 = vmatpush1.msra.mxu0 0.0
    %1243 = vmatprep.subr.mxu0 0.0
    %1244 = vmatpush1.msra.mxu0 0.0
    %1245 = vmatprep.subr.mxu0 0.0
    %1246 = vmatpush1.msra.mxu0 0.0
    %1247 = vmatprep.mubr.f32.mxu0 0.0
    %1248 = vmatmul.mubr.f32.gmra.mrb[0].mxu0 %v1178
    %v1249 = vpop.f32.mrb[0].mxu0
    %v1250 = vadd.f32 0.0, %v1249
    %v1251 = vpop.f32.mrb[0].mxu0
    %1252 = vmatprep.mubr.f32.mxu0 0.0
    %1253 = vmatmul.mubr.f32.gmra.mrb[0].mxu0 %v1181
    %v1254 = vpop.f32.mrb[0].mxu0
    %v1255 = vadd.f32 0.0, %v1254
    %v1256 = vpop.f32.mrb[0].mxu0
    %1257 = vdwg.mxu0
    %v1259 = vsel %vm926, %v1013, 0
    %v1262 = vsel %vm926, %v1014, 0
    %1264 = vmatprep.subr.mxu0 0.0
    %1265 = vmatpush1.msra.mxu0 %v594
    %1266 = vmatprep.subr.mxu0 0.0
    %1267 = vmatpush1.msra.mxu0 %v595
    %1268 = vmatprep.subr.mxu0 0.0
    %1269 = vmatpush1.msra.mxu0 0.0
    %1270 = vmatprep.subr.mxu0 0.0
    %1271 = vmatpush1.msra.mxu0 0.0
    %1272 = vmatprep.subr.mxu0 0.0
    %1273 = vmatpush1.msra.mxu0 0.0
    %1274 = vmatprep.subr.mxu0 0.0
    %1275 = vmatpush1.msra.mxu0 0.0
    %1276 = vmatprep.subr.mxu0 0.0
    %1277 = vmatpush1.msra.mxu0 0.0
    %1278 = vmatprep.subr.mxu0 0.0
    %1279 = vmatpush1.msra.mxu0 0.0
    %1280 = vmatprep.subr.mxu0 0.0
    %1281 = vmatpush1.msra.mxu0 0.0
    %1282 = vmatprep.subr.mxu0 0.0
    %1283 = vmatpush1.msra.mxu0 0.0
    %1284 = vmatprep.subr.mxu0 0.0
    %1285 = vmatpush1.msra.mxu0 0.0
    %1286 = vmatprep.subr.mxu0 0.0
    %1287 = vmatpush1.msra.mxu0 0.0
    %1288 = vmatprep.subr.mxu0 0.0
    %1289 = vmatpush1.msra.mxu0 0.0
    %1290 = vmatprep.subr.mxu0 0.0
    %1291 = vmatpush1.msra.mxu0 0.0
    %1292 = vmatprep.subr.mxu0 0.0
    %1293 = vmatpush1.msra.mxu0 0.0
    %1294 = vmatprep.subr.mxu0 0.0
    %1295 = vmatpush1.msra.mxu0 0.0
    %1296 = vmatprep.subr.mxu0 0.0
    %1297 = vmatpush1.msra.mxu0 0.0
    %1298 = vmatprep.subr.mxu0 0.0
    %1299 = vmatpush1.msra.mxu0 0.0
    %1300 = vmatprep.subr.mxu0 0.0
    %1301 = vmatpush1.msra.mxu0 0.0
    %1302 = vmatprep.subr.mxu0 0.0
    %1303 = vmatpush1.msra.mxu0 0.0
    %1304 = vmatprep.subr.mxu0 0.0
    %1305 = vmatpush1.msra.mxu0 0.0
    %1306 = vmatprep.subr.mxu0 0.0
    %1307 = vmatpush1.msra.mxu0 0.0
    %1308 = vmatprep.subr.mxu0 0.0
    %1309 = vmatpush1.msra.mxu0 0.0
    %1310 = vmatprep.subr.mxu0 0.0
    %1311 = vmatpush1.msra.mxu0 0.0
    %1312 = vmatprep.subr.mxu0 0.0
    %1313 = vmatpush1.msra.mxu0 0.0
    %1314 = vmatprep.subr.mxu0 0.0
    %1315 = vmatpush1.msra.mxu0 0.0
    %1316 = vmatprep.subr.mxu0 0.0
    %1317 = vmatpush1.msra.mxu0 0.0
    %1318 = vmatprep.subr.mxu0 0.0
    %1319 = vmatpush1.msra.mxu0 0.0
    %1320 = vmatprep.subr.mxu0 0.0
    %1321 = vmatpush1.msra.mxu0 0.0
    %1322 = vmatprep.subr.mxu0 0.0
    %1323 = vmatpush1.msra.mxu0 0.0
    %1324 = vmatprep.subr.mxu0 0.0
    %1325 = vmatpush1.msra.mxu0 0.0
    %1326 = vmatprep.subr.mxu0 0.0
    %1327 = vmatpush1.msra.mxu0 0.0
    %1328 = vmatprep.mubr.f32.mxu0 0.0
    %1329 = vmatmul.mubr.f32.gmra.mrb[0].mxu0 %v1259
    %v1330 = vpop.f32.mrb[0].mxu0
    %v1331 = vadd.f32 0.0, %v1330
    %v1332 = vpop.f32.mrb[0].mxu0
    %1333 = vmatprep.mubr.f32.mxu0 0.0
    %1334 = vmatmul.mubr.f32.gmra.mrb[0].mxu0 %v1262
    %v1335 = vpop.f32.mrb[0].mxu0
    %v1336 = vadd.f32 0.0, %v1335
    %v1337 = vpop.f32.mrb[0].mxu0
    %1338 = vdwg.mxu0
    %v1339 = vadd.f32 %v1088, %v1169
    %v1340 = vadd.f32 %v1093, %v1174
    %v1341 = vadd.f32 %v1339, %v1250
    %v1342 = vadd.f32 %v1340, %v1255
    %v1343 = vadd.f32 %v1341, %v1331
    %v1344 = vadd.f32 %v1342, %v1336
    %v1345 = vld [vmem:[%s7] sm:$0xff]
    %v1346 = vld [vmem:[%s7 + $0x8] sm:$0xff]
    %v1347 = vld [vmem:[%s7 + $0x10] sm:$0xff]
    %v1348 = vld [vmem:[%s7 + $0x18] sm:$0xff]
    %v1350 = vsel %vm250, %v1343, 0
    %v1353 = vsel %vm250, %v1344, 0
    %1355 = vmatprep.subr.mxu0 0.0
    %1356 = vmatpush1.msra.mxu0 %v1345
    %1357 = vmatprep.subr.mxu0 0.0
    %1358 = vmatpush1.msra.mxu0 %v1346
    %1359 = vmatprep.subr.mxu0 0.0
    %1360 = vmatpush1.msra.mxu0 %v1347
    %1361 = vmatprep.subr.mxu0 0.0
    %1362 = vmatpush1.msra.mxu0 %v1348
    %1363 = vmatprep.subr.mxu0 0.0
    %1364 = vmatpush1.msra.mxu0 0.0
    %1365 = vmatprep.subr.mxu0 0.0
    %1366 = vmatpush1.msra.mxu0 0.0
    %1367 = vmatprep.subr.mxu0 0.0
    %1368 = vmatpush1.msra.mxu0 0.0
    %1369 = vmatprep.subr.mxu0 0.0
    %1370 = vmatpush1.msra.mxu0 0.0
    %1371 = vmatprep.subr.mxu0 0.0
    %1372 = vmatpush1.msra.mxu0 0.0
    %1373 = vmatprep.subr.mxu0 0.0
    %1374 = vmatpush1.msra.mxu0 0.0
    %1375 = vmatprep.subr.mxu0 0.0
    %1376 = vmatpush1.msra.mxu0 0.0
    %1377 = vmatprep.subr.mxu0 0.0
    %1378 = vmatpush1.msra.mxu0 0.0
    %1379 = vmatprep.subr.mxu0 0.0
    %1380 = vmatpush1.msra.mxu0 0.0
    %1381 = vmatprep.subr.mxu0 0.0
    %1382 = vmatpush1.msra.mxu0 0.0
    %1383 = vmatprep.subr.mxu0 0.0
    %1384 = vmatpush1.msra.mxu0 0.0
    %1385 = vmatprep.subr.mxu0 0.0
    %1386 = vmatpush1.msra.mxu0 0.0
    %1387 = vmatprep.subr.mxu0 0.0
    %1388 = vmatpush1.msra.mxu0 0.0
    %1389 = vmatprep.subr.mxu0 0.0
    %1390 = vmatpush1.msra.mxu0 0.0
    %1391 = vmatprep.subr.mxu0 0.0
    %1392 = vmatpush1.msra.mxu0 0.0
    %1393 = vmatprep.subr.mxu0 0.0
    %1394 = vmatpush1.msra.mxu0 0.0
    %1395 = vmatprep.subr.mxu0 0.0
    %1396 = vmatpush1.msra.mxu0 0.0
    %1397 = vmatprep.subr.mxu0 0.0
    %1398 = vmatpush1.msra.mxu0 0.0
    %1399 = vmatprep.subr.mxu0 0.0
    %1400 = vmatpush1.msra.mxu0 0.0
    %1401 = vmatprep.subr.mxu0 0.0
    %1402 = vmatpush1.msra.mxu0 0.0
    %1403 = vmatprep.subr.mxu0 0.0
    %1404 = vmatpush1.msra.mxu0 0.0
    %1405 = vmatprep.subr.mxu0 0.0
    %1406 = vmatpush1.msra.mxu0 0.0
    %1407 = vmatprep.subr.mxu0 0.0
    %1408 = vmatpush1.msra.mxu0 0.0
    %1409 = vmatprep.subr.mxu0 0.0
    %1410 = vmatpush1.msra.mxu0 0.0
    %1411 = vmatprep.subr.mxu0 0.0
    %1412 = vmatpush1.msra.mxu0 0.0
    %1413 = vmatprep.subr.mxu0 0.0
    %1414 = vmatpush1.msra.mxu0 0.0
    %1415 = vmatprep.subr.mxu0 0.0
    %1416 = vmatpush1.msra.mxu0 0.0
    %1417 = vmatprep.subr.mxu0 0.0
    %1418 = vmatpush1.msra.mxu0 0.0
    %1419 = vmatprep.mubr.f32.mxu0 0.0
    %1420 = vmatmul.mubr.f32.gmra.mrb[0].mxu0 %v1350
    %v1421 = vpop.f32.mrb[0].mxu0
    %v1422 = vadd.f32 0.0, %v1421
    %v1423 = vpop.f32.mrb[0].mxu0
    %1424 = vmatprep.mubr.f32.mxu0 0.0
    %1425 = vmatmul.mubr.f32.gmra.mrb[0].mxu0 %v1353
    %v1426 = vpop.f32.mrb[0].mxu0
    %v1427 = vadd.f32 0.0, %v1426
    %v1428 = vpop.f32.mrb[0].mxu0
    %1429 = vdwg.mxu0
    %v1430 = vadd.f32 %v238, %v1422
    %v1431 = vadd.f32 %v239, %v1427
    %v1432 = vld [vmem:[#allocation10] sm:$0x1]
    %v1433 = vld [vmem:[#allocation11] sm:$0x1]
    %v1434 = vsel %vm250, %v1430, 0.0
    %1435 = vadd.xlane.f32.xlu0 %v1434
    %v1436 = vpop.xlane.xlu0 %1435
    %v1437 = vsel %vm250, %v1431, 0.0
    %1438 = vadd.xlane.f32.xlu0 %v1437
    %v1439 = vpop.xlane.xlu0 %1438
    %v1440 = vrcp.pop 32.0
    %v1441 = vmul.f32 %v1436, %v1440
    %v1442 = vmul.f32 %v1439, %v1440
    %v1443 = vsub.f32 %v1430, %v1441
    %v1444 = vsub.f32 %v1431, %v1442
    %v1445 = vmul.f32 %v1443, %v1443
    %v1446 = vmul.f32 %v1444, %v1444
    %v1447 = vsel %vm250, %v1445, 0.0
    %1448 = vadd.xlane.f32.xlu0 %v1447
    %v1449 = vpop.xlane.xlu0 %1448
    %v1450 = vsel %vm250, %v1446, 0.0
    %1451 = vadd.xlane.f32.xlu0 %v1450
    %v1452 = vpop.xlane.xlu0 %1451
    %v1453 = vmul.f32 %v1449, %v1440
    %v1454 = vmul.f32 %v1452, %v1440
    %v1455 = vadd.f32 %v1453, 1e-05
    %v1456 = vadd.f32 %v1454, 1e-05
    %v1457 = vrsqrt.pop %v1455
    %v1458 = vrsqrt.pop %v1456
    %v1459 = vmul.f32 %v1443, %v1457
    %v1460 = vmul.f32 %v1444, %v1458
    %v1462 = vlaneseq
    %v1463 = vshrl.u32 %v1462, 7
    %v1464 = vsub.s32 0, %v1463
    %v1465 = vrot.slane %v1432, %v1464
    %v1467 = vmul.f32 %v1465, %v1459
    %v1468 = vmul.f32 %v1465, %v1460
    %v1470 = vlaneseq
    %v1471 = vshrl.u32 %v1470, 7
    %v1472 = vsub.s32 0, %v1471
    %v1473 = vrot.slane %v1433, %v1472
    %v1475 = vadd.f32 %v1467, %v1473
    %v1476 = vadd.f32 %v1468, %v1473
    %v1477 = vld [vmem:[%s10] sm:$0xff]
    %v1478 = vld [vmem:[%s10 + $0x8] sm:$0xff]
    %v1479 = vld [vmem:[%s10 + $0x10] sm:$0xff]
    %v1480 = vld [vmem:[%s10 + $0x18] sm:$0xff]
    %v1482 = vsel %vm250, %v1475, 0
    %v1485 = vsel %vm250, %v1476, 0
    %1487 = vmatprep.subr.mxu0 0.0
    %1488 = vmatpush1.msra.mxu0 %v1477
    %1489 = vmatprep.subr.mxu0 0.0
    %1490 = vmatpush1.msra.mxu0 %v1478
    %1491 = vmatprep.subr.mxu0 0.0
    %1492 = vmatpush1.msra.mxu0 %v1479
    %1493 = vmatprep.subr.mxu0 0.0
    %1494 = vmatpush1.msra.mxu0 %v1480
    %1495 = vmatprep.subr.mxu0 0.0
    %1496 = vmatpush1.msra.mxu0 0.0
    %1497 = vmatprep.subr.mxu0 0.0
    %1498 = vmatpush1.msra.mxu0 0.0
    %1499 = vmatprep.subr.mxu0 0.0
    %1500 = vmatpush1.msra.mxu0 0.0
    %1501 = vmatprep.subr.mxu0 0.0
    %1502 = vmatpush1.msra.mxu0 0.0
    %1503 = vmatprep.subr.mxu0 0.0
    %1504 = vmatpush1.msra.mxu0 0.0
    %1505 = vmatprep.subr.mxu0 0.0
    %1506 = vmatpush1.msra.mxu0 0.0
    %1507 = vmatprep.subr.mxu0 0.0
    %1508 = vmatpush1.msra.mxu0 0.0
    %1509 = vmatprep.subr.mxu0 0.0
    %1510 = vmatpush1.msra.mxu0 0.0
    %1511 = vmatprep.subr.mxu0 0.0
    %1512 = vmatpush1.msra.mxu0 0.0
    %1513 = vmatprep.subr.mxu0 0.0
    %1514 = vmatpush1.msra.mxu0 0.0
    %1515 = vmatprep.subr.mxu0 0.0
    %1516 = vmatpush1.msra.mxu0 0.0
    %1517 = vmatprep.subr.mxu0 0.0
    %1518 = vmatpush1.msra.mxu0 0.0
    %1519 = vmatprep.subr.mxu0 0.0
    %1520 = vmatpush1.msra.mxu0 0.0
    %1521 = vmatprep.subr.mxu0 0.0
    %1522 = vmatpush1.msra.mxu0 0.0
    %1523 = vmatprep.subr.mxu0 0.0
    %1524 = vmatpush1.msra.mxu0 0.0
    %1525 = vmatprep.subr.mxu0 0.0
    %1526 = vmatpush1.msra.mxu0 0.0
    %1527 = vmatprep.subr.mxu0 0.0
    %1528 = vmatpush1.msra.mxu0 0.0
    %1529 = vmatprep.subr.mxu0 0.0
    %1530 = vmatpush1.msra.mxu0 0.0
    %1531 = vmatprep.subr.mxu0 0.0
    %1532 = vmatpush1.msra.mxu0 0.0
    %1533 = vmatprep.subr.mxu0 0.0
    %1534 = vmatpush1.msra.mxu0 0.0
    %1535 = vmatprep.subr.mxu0 0.0
    %1536 = vmatpush1.msra.mxu0 0.0
    %1537 = vmatprep.subr.mxu0 0.0
    %1538 = vmatpush1.msra.mxu0 0.0
    %1539 = vmatprep.subr.mxu0 0.0
    %1540 = vmatpush1.msra.mxu0 0.0
    %1541 = vmatprep.subr.mxu0 0.0
    %1542 = vmatpush1.msra.mxu0 0.0
    %1543 = vmatprep.subr.mxu0 0.0
    %1544 = vmatpush1.msra.mxu0 0.0
    %1545 = vmatprep.subr.mxu0 0.0
    %1546 = vmatpush1.msra.mxu0 0.0
    %1547 = vmatprep.subr.mxu0 0.0
    %1548 = vmatpush1.msra.mxu0 0.0
    %1549 = vmatprep.subr.mxu0 0.0
    %1550 = vmatpush1.msra.mxu0 0.0
    %1551 = vmatprep.mubr.f32.mxu0 0.0
    %1552 = vmatmul.mubr.f32.gmra.mrb[0].mxu0 %v1482
    %v1553 = vpop.f32.mrb[0].mxu0
    %v1554 = vadd.f32 0.0, %v1553
    %v1555 = vpop.f32.mrb[0].mxu0
    %1556 = vmatprep.mubr.f32.mxu0 0.0
    %1557 = vmatmul.mubr.f32.gmra.mrb[0].mxu0 %v1485
    %v1558 = vpop.f32.mrb[0].mxu0
    %v1559 = vadd.f32 0.0, %v1558
    %v1560 = vpop.f32.mrb[0].mxu0
    %1561 = vdwg.mxu0
    %v1562 = vld [vmem:[%s11] sm:$0xff]
    %v1563 = vld [vmem:[%s11 + $0x8] sm:$0xff]
    %v1564 = vld [vmem:[%s11 + $0x10] sm:$0xff]
    %v1565 = vld [vmem:[%s11 + $0x18] sm:$0xff]
    %v1567 = vsel %vm250, %v240, 0
    %v1570 = vsel %vm250, %v241, 0
    %1572 = vmatprep.subr.mxu0 0.0
    %1573 = vmatpush1.msra.mxu0 %v1562
    %1574 = vmatprep.subr.mxu0 0.0
    %1575 = vmatpush1.msra.mxu0 %v1563
    %1576 = vmatprep.subr.mxu0 0.0
    %1577 = vmatpush1.msra.mxu0 %v1564
    %1578 = vmatprep.subr.mxu0 0.0
    %1579 = vmatpush1.msra.mxu0 %v1565
    %1580 = vmatprep.subr.mxu0 0.0
    %1581 = vmatpush1.msra.mxu0 0.0
    %1582 = vmatprep.subr.mxu0 0.0
    %1583 = vmatpush1.msra.mxu0 0.0
    %1584 = vmatprep.subr.mxu0 0.0
    %1585 = vmatpush1.msra.mxu0 0.0
    %1586 = vmatprep.subr.mxu0 0.0
    %1587 = vmatpush1.msra.mxu0 0.0
    %1588 = vmatprep.subr.mxu0 0.0
    %1589 = vmatpush1.msra.mxu0 0.0
    %1590 = vmatprep.subr.mxu0 0.0
    %1591 = vmatpush1.msra.mxu0 0.0
    %1592 = vmatprep.subr.mxu0 0.0
    %1593 = vmatpush1.msra.mxu0 0.0
    %1594 = vmatprep.subr.mxu0 0.0
    %1595 = vmatpush1.msra.mxu0 0.0
    %1596 = vmatprep.subr.mxu0 0.0
    %1597 = vmatpush1.msra.mxu0 0.0
    %1598 = vmatprep.subr.mxu0 0.0
    %1599 = vmatpush1.msra.mxu0 0.0
    %1600 = vmatprep.subr.mxu0 0.0
    %1601 = vmatpush1.msra.mxu0 0.0
    %1602 = vmatprep.subr.mxu0 0.0
    %1603 = vmatpush1.msra.mxu0 0.0
    %1604 = vmatprep.subr.mxu0 0.0
    %1605 = vmatpush1.msra.mxu0 0.0
    %1606 = vmatprep.subr.mxu0 0.0
    %1607 = vmatpush1.msra.mxu0 0.0
    %1608 = vmatprep.subr.mxu0 0.0
    %1609 = vmatpush1.msra.mxu0 0.0
    %1610 = vmatprep.subr.mxu0 0.0
    %1611 = vmatpush1.msra.mxu0 0.0
    %1612 = vmatprep.subr.mxu0 0.0
    %1613 = vmatpush1.msra.mxu0 0.0
    %1614 = vmatprep.subr.mxu0 0.0
    %1615 = vmatpush1.msra.mxu0 0.0
    %1616 = vmatprep.subr.mxu0 0.0
    %1617 = vmatpush1.msra.mxu0 0.0
    %1618 = vmatprep.subr.mxu0 0.0
    %1619 = vmatpush1.msra.mxu0 0.0
    %1620 = vmatprep.subr.mxu0 0.0
    %1621 = vmatpush1.msra.mxu0 0.0
    %1622 = vmatprep.subr.mxu0 0.0
    %1623 = vmatpush1.msra.mxu0 0.0
    %1624 = vmatprep.subr.mxu0 0.0
    %1625 = vmatpush1.msra.mxu0 0.0
    %1626 = vmatprep.subr.mxu0 0.0
    %1627 = vmatpush1.msra.mxu0 0.0
    %1628 = vmatprep.subr.mxu0 0.0
    %1629 = vmatpush1.msra.mxu0 0.0
    %1630 = vmatprep.subr.mxu0 0.0
    %1631 = vmatpush1.msra.mxu0 0.0
    %1632 = vmatprep.subr.mxu0 0.0
    %1633 = vmatpush1.msra.mxu0 0.0
    %1634 = vmatprep.subr.mxu0 0.0
    %1635 = vmatpush1.msra.mxu0 0.0
    %1636 = vmatprep.mubr.f32.mxu0 0.0
    %1637 = vmatmul.mubr.f32.gmra.mrb[0].mxu0 %v1567
    %v1638 = vpop.f32.mrb[0].mxu0
    %v1639 = vadd.f32 0.0, %v1638
    %v1640 = vpop.f32.mrb[0].mxu0
    %1641 = vmatprep.mubr.f32.mxu0 0.0
    %1642 = vmatmul.mubr.f32.gmra.mrb[0].mxu0 %v1570
    %v1643 = vpop.f32.mrb[0].mxu0
    %v1644 = vadd.f32 0.0, %v1643
    %v1645 = vpop.f32.mrb[0].mxu0
    %1646 = vdwg.mxu0
    %v1647 = vld [vmem:[#allocation13] sm:$0xff]
    %v1648 = vld [vmem:[#allocation13 + $0x8] sm:$0xff]
    %v1649 = vld [vmem:[#allocation13 + $0x10] sm:$0xff]
    %v1650 = vld [vmem:[#allocation13 + $0x18] sm:$0xff]
    %1651 = vmatprep.subr.mxu0 0.0
    %1652 = vmatpush1.msra.mxu0 %v1647
    %1653 = vmatprep.subr.mxu0 0.0
    %1654 = vmatpush1.msra.mxu0 %v1648
    %1655 = vmatprep.subr.mxu0 0.0
    %1656 = vmatpush1.msra.mxu0 %v1649
    %1657 = vmatprep.subr.mxu0 0.0
    %1658 = vmatpush1.msra.mxu0 %v1650
    %1659 = vmatprep.subr.mxu0 0.0
    %1660 = vmatpush1.msra.mxu0 0.0
    %1661 = vmatprep.subr.mxu0 0.0
    %1662 = vmatpush1.msra.mxu0 0.0
    %1663 = vmatprep.subr.mxu0 0.0
    %1664 = vmatpush1.msra.mxu0 0.0
    %1665 = vmatprep.subr.mxu0 0.0
    %1666 = vmatpush1.msra.mxu0 0.0
    %1667 = vmatprep.subr.mxu0 0.0
    %1668 = vmatpush1.msra.mxu0 0.0
    %1669 = vmatprep.subr.mxu0 0.0
    %1670 = vmatpush1.msra.mxu0 0.0
    %1671 = vmatprep.subr.mxu0 0.0
    %1672 = vmatpush1.msra.mxu0 0.0
    %1673 = vmatprep.subr.mxu0 0.0
    %1674 = vmatpush1.msra.mxu0 0.0
    %1675 = vmatprep.subr.mxu0 0.0
    %1676 = vmatpush1.msra.mxu0 0.0
    %1677 = vmatprep.subr.mxu0 0.0
    %1678 = vmatpush1.msra.mxu0 0.0
    %1679 = vmatprep.subr.mxu0 0.0
    %1680 = vmatpush1.msra.mxu0 0.0
    %1681 = vmatprep.subr.mxu0 0.0
    %1682 = vmatpush1.msra.mxu0 0.0
    %1683 = vmatprep.subr.mxu0 0.0
    %1684 = vmatpush1.msra.mxu0 0.0
    %1685 = vmatprep.subr.mxu0 0.0
    %1686 = vmatpush1.msra.mxu0 0.0
    %1687 = vmatprep.subr.mxu0 0.0
    %1688 = vmatpush1.msra.mxu0 0.0
    %1689 = vmatprep.subr.mxu0 0.0
    %1690 = vmatpush1.msra.mxu0 0.0
    %1691 = vmatprep.subr.mxu0 0.0
    %1692 = vmatpush1.msra.mxu0 0.0
    %1693 = vmatprep.subr.mxu0 0.0
    %1694 = vmatpush1.msra.mxu0 0.0
    %1695 = vmatprep.subr.mxu0 0.0
    %1696 = vmatpush1.msra.mxu0 0.0
    %1697 = vmatprep.subr.mxu0 0.0
    %1698 = vmatpush1.msra.mxu0 0.0
    %1699 = vmatprep.subr.mxu0 0.0
    %1700 = vmatpush1.msra.mxu0 0.0
    %1701 = vmatprep.subr.mxu0 0.0
    %1702 = vmatpush1.msra.mxu0 0.0
    %1703 = vmatprep.subr.mxu0 0.0
    %1704 = vmatpush1.msra.mxu0 0.0
    %1705 = vmatprep.subr.mxu0 0.0
    %1706 = vmatpush1.msra.mxu0 0.0
    %1707 = vmatprep.subr.mxu0 0.0
    %1708 = vmatpush1.msra.mxu0 0.0
    %1709 = vmatprep.subr.mxu0 0.0
    %1710 = vmatpush1.msra.mxu0 0.0
    %1711 = vmatprep.subr.mxu0 0.0
    %1712 = vmatpush1.msra.mxu0 0.0
    %1713 = vmatprep.subr.mxu0 0.0
    %1714 = vmatpush1.msra.mxu0 0.0
    %1715 = vmatprep.mubr.f32.mxu0 0.0
    %1716 = vmatmul.mubr.f32.gmra.mrb[0].mxu0 %v1567
    %v1717 = vpop.f32.mrb[0].mxu0
    %v1718 = vadd.f32 0.0, %v1717
    %v1719 = vpop.f32.mrb[0].mxu0
    %1720 = vmatprep.mubr.f32.mxu0 0.0
    %1721 = vmatmul.mubr.f32.gmra.mrb[0].mxu0 %v1570
    %v1722 = vpop.f32.mrb[0].mxu0
    %v1723 = vadd.f32 0.0, %v1722
    %v1724 = vpop.f32.mrb[0].mxu0
    %1725 = vdwg.mxu0
    %v1726 = vmul.f32 %v1554, %v518
    %v1727 = vmul.f32 %v1559, %v518
    %v1728 = vmul.f32 %v1554, %v522
    %v1729 = vmul.f32 %v1559, %v522
    %v1730 = vmul.f32 %v1554, %v526
    %v1731 = vmul.f32 %v1559, %v526
    %v1732 = vmul.f32 %v1554, %v530
    %v1733 = vmul.f32 %v1559, %v530
    %v1734 = vmul.f32 %v1718, %v571
    %v1735 = vmul.f32 %v1723, %v571
    %v1736 = vmul.f32 %v1718, %v575
    %v1737 = vmul.f32 %v1723, %v575
    %v1738 = vmul.f32 %v1718, %v579
    %v1739 = vmul.f32 %v1723, %v579
    %v1740 = vmul.f32 %v1718, %v583
    %v1741 = vmul.f32 %v1723, %v583
    %v1743 = vsel %vm250, %v1726, 0
    %v1746 = vsel %vm250, %v1727, 0
    %v1749 = vsel %vm250, %v1639, 0
    %v1752 = vsel %vm250, %v1644, 0
    %1754 = vmatprep.subr.mxu0 0.0
    %1755 = vmatpush1.xpose.msra.mxu0 %v1749
    %1756 = vmatprep.subr.mxu0 0.0
    %1757 = vmatpush1.xpose.msra.mxu0 %v1752
    %1758 = vmatprep.subr.mxu0 0.0
    %1759 = vmatpush1.xpose.msra.mxu0 0.0
    %1760 = vmatprep.subr.mxu0 0.0
    %1761 = vmatpush1.xpose.msra.mxu0 0.0
    %1762 = vmatprep.subr.mxu0 0.0
    %1763 = vmatpush1.xpose.msra.mxu0 0.0
    %1764 = vmatprep.subr.mxu0 0.0
    %1765 = vmatpush1.xpose.msra.mxu0 0.0
    %1766 = vmatprep.subr.mxu0 0.0
    %1767 = vmatpush1.xpose.msra.mxu0 0.0
    %1768 = vmatprep.subr.mxu0 0.0
    %1769 = vmatpush1.xpose.msra.mxu0 0.0
    %1770 = vmatprep.subr.mxu0 0.0
    %1771 = vmatpush1.xpose.msra.mxu0 0.0
    %1772 = vmatprep.subr.mxu0 0.0
    %1773 = vmatpush1.xpose.msra.mxu0 0.0
    %1774 = vmatprep.subr.mxu0 0.0
    %1775 = vmatpush1.xpose.msra.mxu0 0.0
    %1776 = vmatprep.subr.mxu0 0.0
    %1777 = vmatpush1.xpose.msra.mxu0 0.0
    %1778 = vmatprep.subr.mxu0 0.0
    %1779 = vmatpush1.xpose.msra.mxu0 0.0
    %1780 = vmatprep.subr.mxu0 0.0
    %1781 = vmatpush1.xpose.msra.mxu0 0.0
    %1782 = vmatprep.subr.mxu0 0.0
    %1783 = vmatpush1.xpose.msra.mxu0 0.0
    %1784 = vmatprep.subr.mxu0 0.0
    %1785 = vmatpush1.xpose.msra.mxu0 0.0
    %1786 = vmatprep.subr.mxu0 0.0
    %1787 = vmatpush1.xpose.msra.mxu0 0.0
    %1788 = vmatprep.subr.mxu0 0.0
    %1789 = vmatpush1.xpose.msra.mxu0 0.0
    %1790 = vmatprep.subr.mxu0 0.0
    %1791 = vmatpush1.xpose.msra.mxu0 0.0
    %1792 = vmatprep.subr.mxu0 0.0
    %1793 = vmatpush1.xpose.msra.mxu0 0.0
    %1794 = vmatprep.subr.mxu0 0.0
    %1795 = vmatpush1.xpose.msra.mxu0 0.0
    %1796 = vmatprep.subr.mxu0 0.0
    %1797 = vmatpush1.xpose.msra.mxu0 0.0
    %1798 = vmatprep.subr.mxu0 0.0
    %1799 = vmatpush1.xpose.msra.mxu0 0.0
    %1800 = vmatprep.subr.mxu0 0.0
    %1801 = vmatpush1.xpose.msra.mxu0 0.0
    %1802 = vmatprep.subr.mxu0 0.0
    %1803 = vmatpush1.xpose.msra.mxu0 0.0
    %1804 = vmatprep.subr.mxu0 0.0
    %1805 = vmatpush1.xpose.msra.mxu0 0.0
    %1806 = vmatprep.subr.mxu0 0.0
    %1807 = vmatpush1.xpose.msra.mxu0 0.0
    %1808 = vmatprep.subr.mxu0 0.0
    %1809 = vmatpush1.xpose.msra.mxu0 0.0
    %1810 = vmatprep.subr.mxu0 0.0
    %1811 = vmatpush1.xpose.msra.mxu0 0.0
    %1812 = vmatprep.subr.mxu0 0.0
    %1813 = vmatpush1.xpose.msra.mxu0 0.0
    %1814 = vmatprep.subr.mxu0 0.0
    %1815 = vmatpush1.xpose.msra.mxu0 0.0
    %1816 = vmatprep.subr.mxu0 0.0
    %1817 = vmatpush1.xpose.msra.mxu0 0.0
    %1818 = vmatprep.mubr.f32.mxu0 0.0
    %1819 = vmatmul.mubr.f32.gmra.mrb[0].mxu0 %v1743
    %v1820 = vpop.f32.mrb[0].mxu0
    %v1821 = vadd.f32 %v244, %v1820
    %v1822 = vpop.f32.mrb[0].mxu0
    %1823 = vmatprep.mubr.f32.mxu0 0.0
    %1824 = vmatmul.mubr.f32.gmra.mrb[0].mxu0 %v1746
    %v1825 = vpop.f32.mrb[0].mxu0
    %v1826 = vadd.f32 %v245, %v1825
    %v1827 = vpop.f32.mrb[0].mxu0
    %1828 = vdwg.mxu0
    %v1830 = vsel %vm250, %v1728, 0
    %v1833 = vsel %vm250, %v1729, 0
    %1835 = vmatprep.subr.mxu0 0.0
    %1836 = vmatpush1.xpose.msra.mxu0 %v1749
    %1837 = vmatprep.subr.mxu0 0.0
    %1838 = vmatpush1.xpose.msra.mxu0 %v1752
    %1839 = vmatprep.subr.mxu0 0.0
    %1840 = vmatpush1.xpose.msra.mxu0 0.0
    %1841 = vmatprep.subr.mxu0 0.0
    %1842 = vmatpush1.xpose.msra.mxu0 0.0
    %1843 = vmatprep.subr.mxu0 0.0
    %1844 = vmatpush1.xpose.msra.mxu0 0.0
    %1845 = vmatprep.subr.mxu0 0.0
    %1846 = vmatpush1.xpose.msra.mxu0 0.0
    %1847 = vmatprep.subr.mxu0 0.0
    %1848 = vmatpush1.xpose.msra.mxu0 0.0
    %1849 = vmatprep.subr.mxu0 0.0
    %1850 = vmatpush1.xpose.msra.mxu0 0.0
    %1851 = vmatprep.subr.mxu0 0.0
    %1852 = vmatpush1.xpose.msra.mxu0 0.0
    %1853 = vmatprep.subr.mxu0 0.0
    %1854 = vmatpush1.xpose.msra.mxu0 0.0
    %1855 = vmatprep.subr.mxu0 0.0
    %1856 = vmatpush1.xpose.msra.mxu0 0.0
    %1857 = vmatprep.subr.mxu0 0.0
    %1858 = vmatpush1.xpose.msra.mxu0 0.0
    %1859 = vmatprep.subr.mxu0 0.0
    %1860 = vmatpush1.xpose.msra.mxu0 0.0
    %1861 = vmatprep.subr.mxu0 0.0
    %1862 = vmatpush1.xpose.msra.mxu0 0.0
    %1863 = vmatprep.subr.mxu0 0.0
    %1864 = vmatpush1.xpose.msra.mxu0 0.0
    %1865 = vmatprep.subr.mxu0 0.0
    %1866 = vmatpush1.xpose.msra.mxu0 0.0
    %1867 = vmatprep.subr.mxu0 0.0
    %1868 = vmatpush1.xpose.msra.mxu0 0.0
    %1869 = vmatprep.subr.mxu0 0.0
    %1870 = vmatpush1.xpose.msra.mxu0 0.0
    %1871 = vmatprep.subr.mxu0 0.0
    %1872 = vmatpush1.xpose.msra.mxu0 0.0
    %1873 = vmatprep.subr.mxu0 0.0
    %1874 = vmatpush1.xpose.msra.mxu0 0.0
    %1875 = vmatprep.subr.mxu0 0.0
    %1876 = vmatpush1.xpose.msra.mxu0 0.0
    %1877 = vmatprep.subr.mxu0 0.0
    %1878 = vmatpush1.xpose.msra.mxu0 0.0
    %1879 = vmatprep.subr.mxu0 0.0
    %1880 = vmatpush1.xpose.msra.mxu0 0.0
    %1881 = vmatprep.subr.mxu0 0.0
    %1882 = vmatpush1.xpose.msra.mxu0 0.0
    %1883 = vmatprep.subr.mxu0 0.0
    %1884 = vmatpush1.xpose.msra.mxu0 0.0
    %1885 = vmatprep.subr.mxu0 0.0
    %1886 = vmatpush1.xpose.msra.mxu0 0.0
    %1887 = vmatprep.subr.mxu0 0.0
    %1888 = vmatpush1.xpose.msra.mxu0 0.0
    %1889 = vmatprep.subr.mxu0 0.0
    %1890 = vmatpush1.xpose.msra.mxu0 0.0
    %1891 = vmatprep.subr.mxu0 0.0
    %1892 = vmatpush1.xpose.msra.mxu0 0.0
    %1893 = vmatprep.subr.mxu0 0.0
    %1894 = vmatpush1.xpose.msra.mxu0 0.0
    %1895 = vmatprep.subr.mxu0 0.0
    %1896 = vmatpush1.xpose.msra.mxu0 0.0
    %1897 = vmatprep.subr.mxu0 0.0
    %1898 = vmatpush1.xpose.msra.mxu0 0.0
    %1899 = vmatprep.mubr.f32.mxu0 0.0
    %1900 = vmatmul.mubr.f32.gmra.mrb[0].mxu0 %v1830
    %v1901 = vpop.f32.mrb[0].mxu0
    %v1902 = vadd.f32 %v244, %v1901
    %v1903 = vpop.f32.mrb[0].mxu0
    %1904 = vmatprep.mubr.f32.mxu0 0.0
    %1905 = vmatmul.mubr.f32.gmra.mrb[0].mxu0 %v1833
    %v1906 = vpop.f32.mrb[0].mxu0
    %v1907 = vadd.f32 %v245, %v1906
    %v1908 = vpop.f32.mrb[0].mxu0
    %1909 = vdwg.mxu0
    %v1911 = vsel %vm250, %v1730, 0
    %v1914 = vsel %vm250, %v1731, 0
    %1916 = vmatprep.subr.mxu0 0.0
    %1917 = vmatpush1.xpose.msra.mxu0 %v1749
    %1918 = vmatprep.subr.mxu0 0.0
    %1919 = vmatpush1.xpose.msra.mxu0 %v1752
    %1920 = vmatprep.subr.mxu0 0.0
    %1921 = vmatpush1.xpose.msra.mxu0 0.0
    %1922 = vmatprep.subr.mxu0 0.0
    %1923 = vmatpush1.xpose.msra.mxu0 0.0
    %1924 = vmatprep.subr.mxu0 0.0
    %1925 = vmatpush1.xpose.msra.mxu0 0.0
    %1926 = vmatprep.subr.mxu0 0.0
    %1927 = vmatpush1.xpose.msra.mxu0 0.0
    %1928 = vmatprep.subr.mxu0 0.0
    %1929 = vmatpush1.xpose.msra.mxu0 0.0
    %1930 = vmatprep.subr.mxu0 0.0
    %1931 = vmatpush1.xpose.msra.mxu0 0.0
    %1932 = vmatprep.subr.mxu0 0.0
    %1933 = vmatpush1.xpose.msra.mxu0 0.0
    %1934 = vmatprep.subr.mxu0 0.0
    %1935 = vmatpush1.xpose.msra.mxu0 0.0
    %1936 = vmatprep.subr.mxu0 0.0
    %1937 = vmatpush1.xpose.msra.mxu0 0.0
    %1938 = vmatprep.subr.mxu0 0.0
    %1939 = vmatpush1.xpose.msra.mxu0 0.0
    %1940 = vmatprep.subr.mxu0 0.0
    %1941 = vmatpush1.xpose.msra.mxu0 0.0
    %1942 = vmatprep.subr.mxu0 0.0
    %1943 = vmatpush1.xpose.msra.mxu0 0.0
    %1944 = vmatprep.subr.mxu0 0.0
    %1945 = vmatpush1.xpose.msra.mxu0 0.0
    %1946 = vmatprep.subr.mxu0 0.0
    %1947 = vmatpush1.xpose.msra.mxu0 0.0
    %1948 = vmatprep.subr.mxu0 0.0
    %1949 = vmatpush1.xpose.msra.mxu0 0.0
    %1950 = vmatprep.subr.mxu0 0.0
    %1951 = vmatpush1.xpose.msra.mxu0 0.0
    %1952 = vmatprep.subr.mxu0 0.0
    %1953 = vmatpush1.xpose.msra.mxu0 0.0
    %1954 = vmatprep.subr.mxu0 0.0
    %1955 = vmatpush1.xpose.msra.mxu0 0.0
    %1956 = vmatprep.subr.mxu0 0.0
    %1957 = vmatpush1.xpose.msra.mxu0 0.0
    %1958 = vmatprep.subr.mxu0 0.0
    %1959 = vmatpush1.xpose.msra.mxu0 0.0
    %1960 = vmatprep.subr.mxu0 0.0
    %1961 = vmatpush1.xpose.msra.mxu0 0.0
    %1962 = vmatprep.subr.mxu0 0.0
    %1963 = vmatpush1.xpose.msra.mxu0 0.0
    %1964 = vmatprep.subr.mxu0 0.0
    %1965 = vmatpush1.xpose.msra.mxu0 0.0
    %1966 = vmatprep.subr.mxu0 0.0
    %1967 = vmatpush1.xpose.msra.mxu0 0.0
    %1968 = vmatprep.subr.mxu0 0.0
    %1969 = vmatpush1.xpose.msra.mxu0 0.0
    %1970 = vmatprep.subr.mxu0 0.0
    %1971 = vmatpush1.xpose.msra.mxu0 0.0
    %1972 = vmatprep.subr.mxu0 0.0
    %1973 = vmatpush1.xpose.msra.mxu0 0.0
    %1974 = vmatprep.subr.mxu0 0.0
    %1975 = vmatpush1.xpose.msra.mxu0 0.0
    %1976 = vmatprep.subr.mxu0 0.0
    %1977 = vmatpush1.xpose.msra.mxu0 0.0
    %1978 = vmatprep.subr.mxu0 0.0
    %1979 = vmatpush1.xpose.msra.mxu0 0.0
    %1980 = vmatprep.mubr.f32.mxu0 0.0
    %1981 = vmatmul.mubr.f32.gmra.mrb[0].mxu0 %v1911
    %v1982 = vpop.f32.mrb[0].mxu0
    %v1983 = vadd.f32 %v244, %v1982
    %v1984 = vpop.f32.mrb[0].mxu0
    %1985 = vmatprep.mubr.f32.mxu0 0.0
    %1986 = vmatmul.mubr.f32.gmra.mrb[0].mxu0 %v1914
    %v1987 = vpop.f32.mrb[0].mxu0
    %v1988 = vadd.f32 %v245, %v1987
    %v1989 = vpop.f32.mrb[0].mxu0
    %1990 = vdwg.mxu0
    %v1992 = vsel %vm250, %v1732, 0
    %v1995 = vsel %vm250, %v1733, 0
    %1997 = vmatprep.subr.mxu0 0.0
    %1998 = vmatpush1.xpose.msra.mxu0 %v1749
    %1999 = vmatprep.subr.mxu0 0.0
    %2000 = vmatpush1.xpose.msra.mxu0 %v1752
    %2001 = vmatprep.subr.mxu0 0.0
    %2002 = vmatpush1.xpose.msra.mxu0 0.0
    %2003 = vmatprep.subr.mxu0 0.0
    %2004 = vmatpush1.xpose.msra.mxu0 0.0
    %2005 = vmatprep.subr.mxu0 0.0
    %2006 = vmatpush1.xpose.msra.mxu0 0.0
    %2007 = vmatprep.subr.mxu0 0.0
    %2008 = vmatpush1.xpose.msra.mxu0 0.0
    %2009 = vmatprep.subr.mxu0 0.0
    %2010 = vmatpush1.xpose.msra.mxu0 0.0
    %2011 = vmatprep.subr.mxu0 0.0
    %2012 = vmatpush1.xpose.msra.mxu0 0.0
    %2013 = vmatprep.subr.mxu0 0.0
    %2014 = vmatpush1.xpose.msra.mxu0 0.0
    %2015 = vmatprep.subr.mxu0 0.0
    %2016 = vmatpush1.xpose.msra.mxu0 0.0
    %2017 = vmatprep.subr.mxu0 0.0
    %2018 = vmatpush1.xpose.msra.mxu0 0.0
    %2019 = vmatprep.subr.mxu0 0.0
    %2020 = vmatpush1.xpose.msra.mxu0 0.0
    %2021 = vmatprep.subr.mxu0 0.0
    %2022 = vmatpush1.xpose.msra.mxu0 0.0
    %2023 = vmatprep.subr.mxu0 0.0
    %2024 = vmatpush1.xpose.msra.mxu0 0.0
    %2025 = vmatprep.subr.mxu0 0.0
    %2026 = vmatpush1.xpose.msra.mxu0 0.0
    %2027 = vmatprep.subr.mxu0 0.0
    %2028 = vmatpush1.xpose.msra.mxu0 0.0
    %2029 = vmatprep.subr.mxu0 0.0
    %2030 = vmatpush1.xpose.msra.mxu0 0.0
    %2031 = vmatprep.subr.mxu0 0.0
    %2032 = vmatpush1.xpose.msra.mxu0 0.0
    %2033 = vmatprep.subr.mxu0 0.0
    %2034 = vmatpush1.xpose.msra.mxu0 0.0
    %2035 = vmatprep.subr.mxu0 0.0
    %2036 = vmatpush1.xpose.msra.mxu0 0.0
    %2037 = vmatprep.subr.mxu0 0.0
    %2038 = vmatpush1.xpose.msra.mxu0 0.0
    %2039 = vmatprep.subr.mxu0 0.0
    %2040 = vmatpush1.xpose.msra.mxu0 0.0
    %2041 = vmatprep.subr.mxu0 0.0
    %2042 = vmatpush1.xpose.msra.mxu0 0.0
    %2043 = vmatprep.subr.mxu0 0.0
    %2044 = vmatpush1.xpose.msra.mxu0 0.0
    %2045 = vmatprep.subr.mxu0 0.0
    %2046 = vmatpush1.xpose.msra.mxu0 0.0
    %2047 = vmatprep.subr.mxu0 0.0
    %2048 = vmatpush1.xpose.msra.mxu0 0.0
    %2049 = vmatprep.subr.mxu0 0.0
    %2050 = vmatpush1.xpose.msra.mxu0 0.0
    %2051 = vmatprep.subr.mxu0 0.0
    %2052 = vmatpush1.xpose.msra.mxu0 0.0
    %2053 = vmatprep.subr.mxu0 0.0
    %2054 = vmatpush1.xpose.msra.mxu0 0.0
    %2055 = vmatprep.subr.mxu0 0.0
    %2056 = vmatpush1.xpose.msra.mxu0 0.0
    %2057 = vmatprep.subr.mxu0 0.0
    %2058 = vmatpush1.xpose.msra.mxu0 0.0
    %2059 = vmatprep.subr.mxu0 0.0
    %2060 = vmatpush1.xpose.msra.mxu0 0.0
    %2061 = vmatprep.mubr.f32.mxu0 0.0
    %2062 = vmatmul.mubr.f32.gmra.mrb[0].mxu0 %v1992
    %v2063 = vpop.f32.mrb[0].mxu0
    %v2064 = vadd.f32 %v244, %v2063
    %v2065 = vpop.f32.mrb[0].mxu0
    %2066 = vmatprep.mubr.f32.mxu0 0.0
    %2067 = vmatmul.mubr.f32.gmra.mrb[0].mxu0 %v1995
    %v2068 = vpop.f32.mrb[0].mxu0
    %v2069 = vadd.f32 %v245, %v2068
    %v2070 = vpop.f32.mrb[0].mxu0
    %2071 = vdwg.mxu0
    %v2072 = vsel %vm926, %v1821, -inf
    %2073 = vmax.xlane.f32.xlu0 %v2072
    %v2074 = vpop.xlane.xlu0 %2073
    %v2075 = vsel %vm926, %v1826, -inf
    %2076 = vmax.xlane.f32.xlu0 %v2075
    %v2077 = vpop.xlane.xlu0 %2076
    %v2078 = vsel %vm926, %v1902, -inf
    %2079 = vmax.xlane.f32.xlu0 %v2078
    %v2080 = vpop.xlane.xlu0 %2079
    %v2081 = vsel %vm926, %v1907, -inf
    %2082 = vmax.xlane.f32.xlu0 %v2081
    %v2083 = vpop.xlane.xlu0 %2082
    %v2084 = vsel %vm926, %v1983, -inf
    %2085 = vmax.xlane.f32.xlu0 %v2084
    %v2086 = vpop.xlane.xlu0 %2085
    %v2087 = vsel %vm926, %v1988, -inf
    %2088 = vmax.xlane.f32.xlu0 %v2087
    %v2089 = vpop.xlane.xlu0 %2088
    %v2090 = vsel %vm926, %v2064, -inf
    %2091 = vmax.xlane.f32.xlu0 %v2090
    %v2092 = vpop.xlane.xlu0 %2091
    %v2093 = vsel %vm926, %v2069, -inf
    %2094 = vmax.xlane.f32.xlu0 %v2093
    %v2095 = vpop.xlane.xlu0 %2094
    %v2096 = vsub.f32 %v1821, %v2074
    %v2097 = vsub.f32 %v1826, %v2077
    %v2098 = vsub.f32 %v1902, %v2080
    %v2099 = vsub.f32 %v1907, %v2083
    %v2100 = vsub.f32 %v1983, %v2086
    %v2101 = vsub.f32 %v1988, %v2089
    %v2102 = vsub.f32 %v2064, %v2092
    %v2103 = vsub.f32 %v2069, %v2095
    %v2104 = vmul.f32 %v2096, 1.442695
    %v2105 = vpow.pop %v2104
    %v2106 = vmul.f32 %v2097, 1.442695
    %v2107 = vpow.pop %v2106
    %v2108 = vmul.f32 %v2098, 1.442695
    %v2109 = vpow.pop %v2108
    %v2110 = vmul.f32 %v2099, 1.442695
    %v2111 = vpow.pop %v2110
    %v2112 = vmul.f32 %v2100, 1.442695
    %v2113 = vpow.pop %v2112
    %v2114 = vmul.f32 %v2101, 1.442695
    %v2115 = vpow.pop %v2114
    %v2116 = vmul.f32 %v2102, 1.442695
    %v2117 = vpow.pop %v2116
    %v2118 = vmul.f32 %v2103, 1.442695
    %v2119 = vpow.pop %v2118
    %v2120 = vsel %vm926, %v2105, 0.0
    %2121 = vadd.xlane.f32.xlu0 %v2120
    %v2122 = vpop.xlane.xlu0 %2121
    %v2123 = vsel %vm926, %v2107, 0.0
    %2124 = vadd.xlane.f32.xlu0 %v2123
    %v2125 = vpop.xlane.xlu0 %2124
    %v2126 = vsel %vm926, %v2109, 0.0
    %2127 = vadd.xlane.f32.xlu0 %v2126
    %v2128 = vpop.xlane.xlu0 %2127
    %v2129 = vsel %vm926, %v2111, 0.0
    %2130 = vadd.xlane.f32.xlu0 %v2129
    %v2131 = vpop.xlane.xlu0 %2130
    %v2132 = vsel %vm926, %v2113, 0.0
    %2133 = vadd.xlane.f32.xlu0 %v2132
    %v2134 = vpop.xlane.xlu0 %2133
    %v2135 = vsel %vm926, %v2115, 0.0
    %2136 = vadd.xlane.f32.xlu0 %v2135
    %v2137 = vpop.xlane.xlu0 %2136
    %v2138 = vsel %vm926, %v2117, 0.0
    %2139 = vadd.xlane.f32.xlu0 %v2138
    %v2140 = vpop.xlane.xlu0 %2139
    %v2141 = vsel %vm926, %v2119, 0.0
    %2142 = vadd.xlane.f32.xlu0 %v2141
    %v2143 = vpop.xlane.xlu0 %2142
    %v2144 = vrcp.pop %v2122
    %v2145 = vrcp.pop %v2125
    %v2146 = vrcp.pop %v2128
    %v2147 = vrcp.pop %v2131
    %v2148 = vrcp.pop %v2134
    %v2149 = vrcp.pop %v2137
    %v2150 = vrcp.pop %v2140
    %v2151 = vrcp.pop %v2143
    %v2152 = vmul.f32 %v2105, %v2144
    %v2153 = vmul.f32 %v2107, %v2145
    %v2154 = vmul.f32 %v2109, %v2146
    %v2155 = vmul.f32 %v2111, %v2147
    %v2156 = vmul.f32 %v2113, %v2148
    %v2157 = vmul.f32 %v2115, %v2149
    %v2158 = vmul.f32 %v2117, %v2150
    %v2159 = vmul.f32 %v2119, %v2151
    %v2161 = vsel %vm926, %v2152, 0
    %v2164 = vsel %vm926, %v2153, 0
    %2166 = vmatprep.subr.mxu0 0.0
    %2167 = vmatpush1.msra.mxu0 %v1734
    %2168 = vmatprep.subr.mxu0 0.0
    %2169 = vmatpush1.msra.mxu0 %v1735
    %2170 = vmatprep.subr.mxu0 0.0
    %2171 = vmatpush1.msra.mxu0 0.0
    %2172 = vmatprep.subr.mxu0 0.0
    %2173 = vmatpush1.msra.mxu0 0.0
    %2174 = vmatprep.subr.mxu0 0.0
    %2175 = vmatpush1.msra.mxu0 0.0
    %2176 = vmatprep.subr.mxu0 0.0
    %2177 = vmatpush1.msra.mxu0 0.0
    %2178 = vmatprep.subr.mxu0 0.0
    %2179 = vmatpush1.msra.mxu0 0.0
    %2180 = vmatprep.subr.mxu0 0.0
    %2181 = vmatpush1.msra.mxu0 0.0
    %2182 = vmatprep.subr.mxu0 0.0
    %2183 = vmatpush1.msra.mxu0 0.0
    %2184 = vmatprep.subr.mxu0 0.0
    %2185 = vmatpush1.msra.mxu0 0.0
    %2186 = vmatprep.subr.mxu0 0.0
    %2187 = vmatpush1.msra.mxu0 0.0
    %2188 = vmatprep.subr.mxu0 0.0
    %2189 = vmatpush1.msra.mxu0 0.0
    %2190 = vmatprep.subr.mxu0 0.0
    %2191 = vmatpush1.msra.mxu0 0.0
    %2192 = vmatprep.subr.mxu0 0.0
    %2193 = vmatpush1.msra.mxu0 0.0
    %2194 = vmatprep.subr.mxu0 0.0
    %2195 = vmatpush1.msra.mxu0 0.0
    %2196 = vmatprep.subr.mxu0 0.0
    %2197 = vmatpush1.msra.mxu0 0.0
    %2198 = vmatprep.subr.mxu0 0.0
    %2199 = vmatpush1.msra.mxu0 0.0
    %2200 = vmatprep.subr.mxu0 0.0
    %2201 = vmatpush1.msra.mxu0 0.0
    %2202 = vmatprep.subr.mxu0 0.0
    %2203 = vmatpush1.msra.mxu0 0.0
    %2204 = vmatprep.subr.mxu0 0.0
    %2205 = vmatpush1.msra.mxu0 0.0
    %2206 = vmatprep.subr.mxu0 0.0
    %2207 = vmatpush1.msra.mxu0 0.0
    %2208 = vmatprep.subr.mxu0 0.0
    %2209 = vmatpush1.msra.mxu0 0.0
    %2210 = vmatprep.subr.mxu0 0.0
    %2211 = vmatpush1.msra.mxu0 0.0
    %2212 = vmatprep.subr.mxu0 0.0
    %2213 = vmatpush1.msra.mxu0 0.0
    %2214 = vmatprep.subr.mxu0 0.0
    %2215 = vmatpush1.msra.mxu0 0.0
    %2216 = vmatprep.subr.mxu0 0.0
    %2217 = vmatpush1.msra.mxu0 0.0
    %2218 = vmatprep.subr.mxu0 0.0
    %2219 = vmatpush1.msra.mxu0 0.0
    %2220 = vmatprep.subr.mxu0 0.0
    %2221 = vmatpush1.msra.mxu0 0.0
    %2222 = vmatprep.subr.mxu0 0.0
    %2223 = vmatpush1.msra.mxu0 0.0
    %2224 = vmatprep.subr.mxu0 0.0
    %2225 = vmatpush1.msra.mxu0 0.0
    %2226 = vmatprep.subr.mxu0 0.0
    %2227 = vmatpush1.msra.mxu0 0.0
    %2228 = vmatprep.subr.mxu0 0.0
    %2229 = vmatpush1.msra.mxu0 0.0
    %2230 = vmatprep.mubr.f32.mxu0 0.0
    %2231 = vmatmul.mubr.f32.gmra.mrb[0].mxu0 %v2161
    %v2232 = vpop.f32.mrb[0].mxu0
    %v2233 = vadd.f32 0.0, %v2232
    %v2234 = vpop.f32.mrb[0].mxu0
    %2235 = vmatprep.mubr.f32.mxu0 0.0
    %2236 = vmatmul.mubr.f32.gmra.mrb[0].mxu0 %v2164
    %v2237 = vpop.f32.mrb[0].mxu0
    %v2238 = vadd.f32 0.0, %v2237
    %v2239 = vpop.f32.mrb[0].mxu0
    %2240 = vdwg.mxu0
    %v2242 = vsel %vm926, %v2154, 0
    %v2245 = vsel %vm926, %v2155, 0
    %2247 = vmatprep.subr.mxu0 0.0
    %2248 = vmatpush1.msra.mxu0 %v1736
    %2249 = vmatprep.subr.mxu0 0.0
    %2250 = vmatpush1.msra.mxu0 %v1737
    %2251 = vmatprep.subr.mxu0 0.0
    %2252 = vmatpush1.msra.mxu0 0.0
    %2253 = vmatprep.subr.mxu0 0.0
    %2254 = vmatpush1.msra.mxu0 0.0
    %2255 = vmatprep.subr.mxu0 0.0
    %2256 = vmatpush1.msra.mxu0 0.0
    %2257 = vmatprep.subr.mxu0 0.0
    %2258 = vmatpush1.msra.mxu0 0.0
    %2259 = vmatprep.subr.mxu0 0.0
    %2260 = vmatpush1.msra.mxu0 0.0
    %2261 = vmatprep.subr.mxu0 0.0
    %2262 = vmatpush1.msra.mxu0 0.0
    %2263 = vmatprep.subr.mxu0 0.0
    %2264 = vmatpush1.msra.mxu0 0.0
    %2265 = vmatprep.subr.mxu0 0.0
    %2266 = vmatpush1.msra.mxu0 0.0
    %2267 = vmatprep.subr.mxu0 0.0
    %2268 = vmatpush1.msra.mxu0 0.0
    %2269 = vmatprep.subr.mxu0 0.0
    %2270 = vmatpush1.msra.mxu0 0.0
    %2271 = vmatprep.subr.mxu0 0.0
    %2272 = vmatpush1.msra.mxu0 0.0
    %2273 = vmatprep.subr.mxu0 0.0
    %2274 = vmatpush1.msra.mxu0 0.0
    %2275 = vmatprep.subr.mxu0 0.0
    %2276 = vmatpush1.msra.mxu0 0.0
    %2277 = vmatprep.subr.mxu0 0.0
    %2278 = vmatpush1.msra.mxu0 0.0
    %2279 = vmatprep.subr.mxu0 0.0
    %2280 = vmatpush1.msra.mxu0 0.0
    %2281 = vmatprep.subr.mxu0 0.0
    %2282 = vmatpush1.msra.mxu0 0.0
    %2283 = vmatprep.subr.mxu0 0.0
    %2284 = vmatpush1.msra.mxu0 0.0
    %2285 = vmatprep.subr.mxu0 0.0
    %2286 = vmatpush1.msra.mxu0 0.0
    %2287 = vmatprep.subr.mxu0 0.0
    %2288 = vmatpush1.msra.mxu0 0.0
    %2289 = vmatprep.subr.mxu0 0.0
    %2290 = vmatpush1.msra.mxu0 0.0
    %2291 = vmatprep.subr.mxu0 0.0
    %2292 = vmatpush1.msra.mxu0 0.0
    %2293 = vmatprep.subr.mxu0 0.0
    %2294 = vmatpush1.msra.mxu0 0.0
    %2295 = vmatprep.subr.mxu0 0.0
    %2296 = vmatpush1.msra.mxu0 0.0
    %2297 = vmatprep.subr.mxu0 0.0
    %2298 = vmatpush1.msra.mxu0 0.0
    %2299 = vmatprep.subr.mxu0 0.0
    %2300 = vmatpush1.msra.mxu0 0.0
    %2301 = vmatprep.subr.mxu0 0.0
    %2302 = vmatpush1.msra.mxu0 0.0
    %2303 = vmatprep.subr.mxu0 0.0
    %2304 = vmatpush1.msra.mxu0 0.0
    %2305 = vmatprep.subr.mxu0 0.0
    %2306 = vmatpush1.msra.mxu0 0.0
    %2307 = vmatprep.subr.mxu0 0.0
    %2308 = vmatpush1.msra.mxu0 0.0
    %2309 = vmatprep.subr.mxu0 0.0
    %2310 = vmatpush1.msra.mxu0 0.0
    %2311 = vmatprep.mubr.f32.mxu0 0.0
    %2312 = vmatmul.mubr.f32.gmra.mrb[0].mxu0 %v2242
    %v2313 = vpop.f32.mrb[0].mxu0
    %v2314 = vadd.f32 0.0, %v2313
    %v2315 = vpop.f32.mrb[0].mxu0
    %2316 = vmatprep.mubr.f32.mxu0 0.0
    %2317 = vmatmul.mubr.f32.gmra.mrb[0].mxu0 %v2245
    %v2318 = vpop.f32.mrb[0].mxu0
    %v2319 = vadd.f32 0.0, %v2318
    %v2320 = vpop.f32.mrb[0].mxu0
    %2321 = vdwg.mxu0
    %v2323 = vsel %vm926, %v2156, 0
    %v2326 = vsel %vm926, %v2157, 0
    %2328 = vmatprep.subr.mxu0 0.0
    %2329 = vmatpush1.msra.mxu0 %v1738
    %2330 = vmatprep.subr.mxu0 0.0
    %2331 = vmatpush1.msra.mxu0 %v1739
    %2332 = vmatprep.subr.mxu0 0.0
    %2333 = vmatpush1.msra.mxu0 0.0
    %2334 = vmatprep.subr.mxu0 0.0
    %2335 = vmatpush1.msra.mxu0 0.0
    %2336 = vmatprep.subr.mxu0 0.0
    %2337 = vmatpush1.msra.mxu0 0.0
    %2338 = vmatprep.subr.mxu0 0.0
    %2339 = vmatpush1.msra.mxu0 0.0
    %2340 = vmatprep.subr.mxu0 0.0
    %2341 = vmatpush1.msra.mxu0 0.0
    %2342 = vmatprep.subr.mxu0 0.0
    %2343 = vmatpush1.msra.mxu0 0.0
    %2344 = vmatprep.subr.mxu0 0.0
    %2345 = vmatpush1.msra.mxu0 0.0
    %2346 = vmatprep.subr.mxu0 0.0
    %2347 = vmatpush1.msra.mxu0 0.0
    %2348 = vmatprep.subr.mxu0 0.0
    %2349 = vmatpush1.msra.mxu0 0.0
    %2350 = vmatprep.subr.mxu0 0.0
    %2351 = vmatpush1.msra.mxu0 0.0
    %2352 = vmatprep.subr.mxu0 0.0
    %2353 = vmatpush1.msra.mxu0 0.0
    %2354 = vmatprep.subr.mxu0 0.0
    %2355 = vmatpush1.msra.mxu0 0.0
    %2356 = vmatprep.subr.mxu0 0.0
    %2357 = vmatpush1.msra.mxu0 0.0
    %2358 = vmatprep.subr.mxu0 0.0
    %2359 = vmatpush1.msra.mxu0 0.0
    %2360 = vmatprep.subr.mxu0 0.0
    %2361 = vmatpush1.msra.mxu0 0.0
    %2362 = vmatprep.subr.mxu0 0.0
    %2363 = vmatpush1.msra.mxu0 0.0
    %2364 = vmatprep.subr.mxu0 0.0
    %2365 = vmatpush1.msra.mxu0 0.0
    %2366 = vmatprep.subr.mxu0 0.0
    %2367 = vmatpush1.msra.mxu0 0.0
    %2368 = vmatprep.subr.mxu0 0.0
    %2369 = vmatpush1.msra.mxu0 0.0
    %2370 = vmatprep.subr.mxu0 0.0
    %2371 = vmatpush1.msra.mxu0 0.0
    %2372 = vmatprep.subr.mxu0 0.0
    %2373 = vmatpush1.msra.mxu0 0.0
    %2374 = vmatprep.subr.mxu0 0.0
    %2375 = vmatpush1.msra.mxu0 0.0
    %2376 = vmatprep.subr.mxu0 0.0
    %2377 = vmatpush1.msra.mxu0 0.0
    %2378 = vmatprep.subr.mxu0 0.0
    %2379 = vmatpush1.msra.mxu0 0.0
    %2380 = vmatprep.subr.mxu0 0.0
    %2381 = vmatpush1.msra.mxu0 0.0
    %2382 = vmatprep.subr.mxu0 0.0
    %2383 = vmatpush1.msra.mxu0 0.0
    %2384 = vmatprep.subr.mxu0 0.0
    %2385 = vmatpush1.msra.mxu0 0.0
    %2386 = vmatprep.subr.mxu0 0.0
    %2387 = vmatpush1.msra.mxu0 0.0
    %2388 = vmatprep.subr.mxu0 0.0
    %2389 = vmatpush1.msra.mxu0 0.0
    %2390 = vmatprep.subr.mxu0 0.0
    %2391 = vmatpush1.msra.mxu0 0.0
    %2392 = vmatprep.mubr.f32.mxu0 0.0
    %2393 = vmatmul.mubr.f32.gmra.mrb[0].mxu0 %v2323
    %v2394 = vpop.f32.mrb[0].mxu0
    %v2395 = vadd.f32 0.0, %v2394
    %v2396 = vpop.f32.mrb[0].mxu0
    %2397 = vmatprep.mubr.f32.mxu0 0.0
    %2398 = vmatmul.mubr.f32.gmra.mrb[0].mxu0 %v2326
    %v2399 = vpop.f32.mrb[0].mxu0
    %v2400 = vadd.f32 0.0, %v2399
    %v2401 = vpop.f32.mrb[0].mxu0
    %2402 = vdwg.mxu0
    %v2404 = vsel %vm926, %v2158, 0
    %v2407 = vsel %vm926, %v2159, 0
    %2409 = vmatprep.subr.mxu0 0.0
    %2410 = vmatpush1.msra.mxu0 %v1740
    %2411 = vmatprep.subr.mxu0 0.0
    %2412 = vmatpush1.msra.mxu0 %v1741
    %2413 = vmatprep.subr.mxu0 0.0
    %2414 = vmatpush1.msra.mxu0 0.0
    %2415 = vmatprep.subr.mxu0 0.0
    %2416 = vmatpush1.msra.mxu0 0.0
    %2417 = vmatprep.subr.mxu0 0.0
    %2418 = vmatpush1.msra.mxu0 0.0
    %2419 = vmatprep.subr.mxu0 0.0
    %2420 = vmatpush1.msra.mxu0 0.0
    %2421 = vmatprep.subr.mxu0 0.0
    %2422 = vmatpush1.msra.mxu0 0.0
    %2423 = vmatprep.subr.mxu0 0.0
    %2424 = vmatpush1.msra.mxu0 0.0
    %2425 = vmatprep.subr.mxu0 0.0
    %2426 = vmatpush1.msra.mxu0 0.0
    %2427 = vmatprep.subr.mxu0 0.0
    %2428 = vmatpush1.msra.mxu0 0.0
    %2429 = vmatprep.subr.mxu0 0.0
    %2430 = vmatpush1.msra.mxu0 0.0
    %2431 = vmatprep.subr.mxu0 0.0
    %2432 = vmatpush1.msra.mxu0 0.0
    %2433 = vmatprep.subr.mxu0 0.0
    %2434 = vmatpush1.msra.mxu0 0.0
    %2435 = vmatprep.subr.mxu0 0.0
    %2436 = vmatpush1.msra.mxu0 0.0
    %2437 = vmatprep.subr.mxu0 0.0
    %2438 = vmatpush1.msra.mxu0 0.0
    %2439 = vmatprep.subr.mxu0 0.0
    %2440 = vmatpush1.msra.mxu0 0.0
    %2441 = vmatprep.subr.mxu0 0.0
    %2442 = vmatpush1.msra.mxu0 0.0
    %2443 = vmatprep.subr.mxu0 0.0
    %2444 = vmatpush1.msra.mxu0 0.0
    %2445 = vmatprep.subr.mxu0 0.0
    %2446 = vmatpush1.msra.mxu0 0.0
    %2447 = vmatprep.subr.mxu0 0.0
    %2448 = vmatpush1.msra.mxu0 0.0
    %2449 = vmatprep.subr.mxu0 0.0
    %2450 = vmatpush1.msra.mxu0 0.0
    %2451 = vmatprep.subr.mxu0 0.0
    %2452 = vmatpush1.msra.mxu0 0.0
    %2453 = vmatprep.subr.mxu0 0.0
    %2454 = vmatpush1.msra.mxu0 0.0
    %2455 = vmatprep.subr.mxu0 0.0
    %2456 = vmatpush1.msra.mxu0 0.0
    %2457 = vmatprep.subr.mxu0 0.0
    %2458 = vmatpush1.msra.mxu0 0.0
    %2459 = vmatprep.subr.mxu0 0.0
    %2460 = vmatpush1.msra.mxu0 0.0
    %2461 = vmatprep.subr.mxu0 0.0
    %2462 = vmatpush1.msra.mxu0 0.0
    %2463 = vmatprep.subr.mxu0 0.0
    %2464 = vmatpush1.msra.mxu0 0.0
    %2465 = vmatprep.subr.mxu0 0.0
    %2466 = vmatpush1.msra.mxu0 0.0
    %2467 = vmatprep.subr.mxu0 0.0
    %2468 = vmatpush1.msra.mxu0 0.0
    %2469 = vmatprep.subr.mxu0 0.0
    %2470 = vmatpush1.msra.mxu0 0.0
    %2471 = vmatprep.subr.mxu0 0.0
    %2472 = vmatpush1.msra.mxu0 0.0
    %2473 = vmatprep.mubr.f32.mxu0 0.0
    %2474 = vmatmul.mubr.f32.gmra.mrb[0].mxu0 %v2404
    %v2475 = vpop.f32.mrb[0].mxu0
    %v2476 = vadd.f32 0.0, %v2475
    %v2477 = vpop.f32.mrb[0].mxu0
    %2478 = vmatprep.mubr.f32.mxu0 0.0
    %2479 = vmatmul.mubr.f32.gmra.mrb[0].mxu0 %v2407
    %v2480 = vpop.f32.mrb[0].mxu0
    %v2481 = vadd.f32 0.0, %v2480
    %v2482 = vpop.f32.mrb[0].mxu0
    %2483 = vdwg.mxu0
    %v2484 = vadd.f32 %v2233, %v2314
    %v2485 = vadd.f32 %v2238, %v2319
    %v2486 = vadd.f32 %v2484, %v2395
    %v2487 = vadd.f32 %v2485, %v2400
    %v2488 = vadd.f32 %v2486, %v2476
    %v2489 = vadd.f32 %v2487, %v2481
    %v2490 = vld [vmem:[#allocation14] sm:$0xff]
    %v2491 = vld [vmem:[#allocation14 + $0x8] sm:$0xff]
    %v2492 = vld [vmem:[#allocation14 + $0x10] sm:$0xff]
    %v2493 = vld [vmem:[#allocation14 + $0x18] sm:$0xff]
    %v2495 = vsel %vm250, %v2488, 0
    %v2498 = vsel %vm250, %v2489, 0
    %2500 = vmatprep.subr.mxu0 0.0
    %2501 = vmatpush1.msra.mxu0 %v2490
    %2502 = vmatprep.subr.mxu0 0.0
    %2503 = vmatpush1.msra.mxu0 %v2491
    %2504 = vmatprep.subr.mxu0 0.0
    %2505 = vmatpush1.msra.mxu0 %v2492
    %2506 = vmatprep.subr.mxu0 0.0
    %2507 = vmatpush1.msra.mxu0 %v2493
    %2508 = vmatprep.subr.mxu0 0.0
    %2509 = vmatpush1.msra.mxu0 0.0
    %2510 = vmatprep.subr.mxu0 0.0
    %2511 = vmatpush1.msra.mxu0 0.0
    %2512 = vmatprep.subr.mxu0 0.0
    %2513 = vmatpush1.msra.mxu0 0.0
    %2514 = vmatprep.subr.mxu0 0.0
    %2515 = vmatpush1.msra.mxu0 0.0
    %2516 = vmatprep.subr.mxu0 0.0
    %2517 = vmatpush1.msra.mxu0 0.0
    %2518 = vmatprep.subr.mxu0 0.0
    %2519 = vmatpush1.msra.mxu0 0.0
    %2520 = vmatprep.subr.mxu0 0.0
    %2521 = vmatpush1.msra.mxu0 0.0
    %2522 = vmatprep.subr.mxu0 0.0
    %2523 = vmatpush1.msra.mxu0 0.0
    %2524 = vmatprep.subr.mxu0 0.0
    %2525 = vmatpush1.msra.mxu0 0.0
    %2526 = vmatprep.subr.mxu0 0.0
    %2527 = vmatpush1.msra.mxu0 0.0
    %2528 = vmatprep.subr.mxu0 0.0
    %2529 = vmatpush1.msra.mxu0 0.0
    %2530 = vmatprep.subr.mxu0 0.0
    %2531 = vmatpush1.msra.mxu0 0.0
    %2532 = vmatprep.subr.mxu0 0.0
    %2533 = vmatpush1.msra.mxu0 0.0
    %2534 = vmatprep.subr.mxu0 0.0
    %2535 = vmatpush1.msra.mxu0 0.0
    %2536 = vmatprep.subr.mxu0 0.0
    %2537 = vmatpush1.msra.mxu0 0.0
    %2538 = vmatprep.subr.mxu0 0.0
    %2539 = vmatpush1.msra.mxu0 0.0
    %2540 = vmatprep.subr.mxu0 0.0
    %2541 = vmatpush1.msra.mxu0 0.0
    %2542 = vmatprep.subr.mxu0 0.0
    %2543 = vmatpush1.msra.mxu0 0.0
    %2544 = vmatprep.subr.mxu0 0.0
    %2545 = vmatpush1.msra.mxu0 0.0
    %2546 = vmatprep.subr.mxu0 0.0
    %2547 = vmatpush1.msra.mxu0 0.0
    %2548 = vmatprep.subr.mxu0 0.0
    %2549 = vmatpush1.msra.mxu0 0.0
    %2550 = vmatprep.subr.mxu0 0.0
    %2551 = vmatpush1.msra.mxu0 0.0
    %2552 = vmatprep.subr.mxu0 0.0
    %2553 = vmatpush1.msra.mxu0 0.0
    %2554 = vmatprep.subr.mxu0 0.0
    %2555 = vmatpush1.msra.mxu0 0.0
    %2556 = vmatprep.subr.mxu0 0.0
    %2557 = vmatpush1.msra.mxu0 0.0
    %2558 = vmatprep.subr.mxu0 0.0
    %2559 = vmatpush1.msra.mxu0 0.0
    %2560 = vmatprep.subr.mxu0 0.0
    %2561 = vmatpush1.msra.mxu0 0.0
    %2562 = vmatprep.subr.mxu0 0.0
    %2563 = vmatpush1.msra.mxu0 0.0
    %2564 = vmatprep.mubr.f32.mxu0 0.0
    %2565 = vmatmul.mubr.f32.gmra.mrb[0].mxu0 %v2495
    %v2566 = vpop.f32.mrb[0].mxu0
    %v2567 = vadd.f32 0.0, %v2566
    %v2568 = vpop.f32.mrb[0].mxu0
    %2569 = vmatprep.mubr.f32.mxu0 0.0
    %2570 = vmatmul.mubr.f32.gmra.mrb[0].mxu0 %v2498
    %v2571 = vpop.f32.mrb[0].mxu0
    %v2572 = vadd.f32 0.0, %v2571
    %v2573 = vpop.f32.mrb[0].mxu0
    %2574 = vdwg.mxu0
    %v2575 = vadd.f32 %v1475, %v2567
    %v2576 = vadd.f32 %v1476, %v2572
    %v2577 = vld [vmem:[#allocation16] sm:$0x1]
    %v2578 = vld [vmem:[#allocation17] sm:$0x1]
    %v2579 = vsel %vm250, %v2575, 0.0
    %2580 = vadd.xlane.f32.xlu0 %v2579
    %v2581 = vpop.xlane.xlu0 %2580
    %v2582 = vsel %vm250, %v2576, 0.0
    %2583 = vadd.xlane.f32.xlu0 %v2582
    %v2584 = vpop.xlane.xlu0 %2583
    %v2585 = vmul.f32 %v2581, %v1440
    %v2586 = vmul.f32 %v2584, %v1440
    %v2587 = vsub.f32 %v2575, %v2585
    %v2588 = vsub.f32 %v2576, %v2586
    %v2589 = vmul.f32 %v2587, %v2587
    %v2590 = vmul.f32 %v2588, %v2588
    %v2591 = vsel %vm250, %v2589, 0.0
    %2592 = vadd.xlane.f32.xlu0 %v2591
    %v2593 = vpop.xlane.xlu0 %2592
    %v2594 = vsel %vm250, %v2590, 0.0
    %2595 = vadd.xlane.f32.xlu0 %v2594
    %v2596 = vpop.xlane.xlu0 %2595
    %v2597 = vmul.f32 %v2593, %v1440
    %v2598 = vmul.f32 %v2596, %v1440
    %v2599 = vadd.f32 %v2597, 1e-05
    %v2600 = vadd.f32 %v2598, 1e-05
    %v2601 = vrsqrt.pop %v2599
    %v2602 = vrsqrt.pop %v2600
    %v2603 = vmul.f32 %v2587, %v2601
    %v2604 = vmul.f32 %v2588, %v2602
    %v2606 = vlaneseq
    %v2607 = vshrl.u32 %v2606, 7
    %v2608 = vsub.s32 0, %v2607
    %v2609 = vrot.slane %v2577, %v2608
    %v2611 = vmul.f32 %v2609, %v2603
    %v2612 = vmul.f32 %v2609, %v2604
    %v2614 = vlaneseq
    %v2615 = vshrl.u32 %v2614, 7
    %v2616 = vsub.s32 0, %v2615
    %v2617 = vrot.slane %v2578, %v2616
    %v2619 = vadd.f32 %v2611, %v2617
    %v2620 = vadd.f32 %v2612, %v2617
    %v2621 = vld [vmem:[#allocation19] sm:$0xff]
    %v2622 = vld [vmem:[#allocation19 + $0x8] sm:$0xff]
    %v2623 = vld [vmem:[#allocation19 + $0x10] sm:$0xff]
    %v2624 = vld [vmem:[#allocation19 + $0x18] sm:$0xff]
    %v2625 = vld [vmem:[#allocation20] sm:$0x1]
    %v2627 = vlaneseq
    %v2628 = vshrl.u32 %v2627, 7
    %v2629 = vsub.s32 0, %v2628
    %v2630 = vrot.slane %v2625, %v2629
    %v2633 = vsel %vm250, %v2619, 0
    %v2636 = vsel %vm250, %v2620, 0
    %2638 = vmatprep.subr.mxu0 0.0
    %2639 = vmatpush1.msra.mxu0 %v2621
    %2640 = vmatprep.subr.mxu0 0.0
    %2641 = vmatpush1.msra.mxu0 %v2622
    %2642 = vmatprep.subr.mxu0 0.0
    %2643 = vmatpush1.msra.mxu0 %v2623
    %2644 = vmatprep.subr.mxu0 0.0
    %2645 = vmatpush1.msra.mxu0 %v2624
    %2646 = vmatprep.subr.mxu0 0.0
    %2647 = vmatpush1.msra.mxu0 0.0
    %2648 = vmatprep.subr.mxu0 0.0
    %2649 = vmatpush1.msra.mxu0 0.0
    %2650 = vmatprep.subr.mxu0 0.0
    %2651 = vmatpush1.msra.mxu0 0.0
    %2652 = vmatprep.subr.mxu0 0.0
    %2653 = vmatpush1.msra.mxu0 0.0
    %2654 = vmatprep.subr.mxu0 0.0
    %2655 = vmatpush1.msra.mxu0 0.0
    %2656 = vmatprep.subr.mxu0 0.0
    %2657 = vmatpush1.msra.mxu0 0.0
    %2658 = vmatprep.subr.mxu0 0.0
    %2659 = vmatpush1.msra.mxu0 0.0
    %2660 = vmatprep.subr.mxu0 0.0
    %2661 = vmatpush1.msra.mxu0 0.0
    %2662 = vmatprep.subr.mxu0 0.0
    %2663 = vmatpush1.msra.mxu0 0.0
    %2664 = vmatprep.subr.mxu0 0.0
    %2665 = vmatpush1.msra.mxu0 0.0
    %2666 = vmatprep.subr.mxu0 0.0
    %2667 = vmatpush1.msra.mxu0 0.0
    %2668 = vmatprep.subr.mxu0 0.0
    %2669 = vmatpush1.msra.mxu0 0.0
    %2670 = vmatprep.subr.mxu0 0.0
    %2671 = vmatpush1.msra.mxu0 0.0
    %2672 = vmatprep.subr.mxu0 0.0
    %2673 = vmatpush1.msra.mxu0 0.0
    %2674 = vmatprep.subr.mxu0 0.0
    %2675 = vmatpush1.msra.mxu0 0.0
    %2676 = vmatprep.subr.mxu0 0.0
    %2677 = vmatpush1.msra.mxu0 0.0
    %2678 = vmatprep.subr.mxu0 0.0
    %2679 = vmatpush1.msra.mxu0 0.0
    %2680 = vmatprep.subr.mxu0 0.0
    %2681 = vmatpush1.msra.mxu0 0.0
    %2682 = vmatprep.subr.mxu0 0.0
    %2683 = vmatpush1.msra.mxu0 0.0
    %2684 = vmatprep.subr.mxu0 0.0
    %2685 = vmatpush1.msra.mxu0 0.0
    %2686 = vmatprep.subr.mxu0 0.0
    %2687 = vmatpush1.msra.mxu0 0.0
    %2688 = vmatprep.subr.mxu0 0.0
    %2689 = vmatpush1.msra.mxu0 0.0
    %2690 = vmatprep.subr.mxu0 0.0
    %2691 = vmatpush1.msra.mxu0 0.0
    %2692 = vmatprep.subr.mxu0 0.0
    %2693 = vmatpush1.msra.mxu0 0.0
    %2694 = vmatprep.subr.mxu0 0.0
    %2695 = vmatpush1.msra.mxu0 0.0
    %2696 = vmatprep.subr.mxu0 0.0
    %2697 = vmatpush1.msra.mxu0 0.0
    %2698 = vmatprep.subr.mxu0 0.0
    %2699 = vmatpush1.msra.mxu0 0.0
    %2700 = vmatprep.subr.mxu0 0.0
    %2701 = vmatpush1.msra.mxu0 0.0
    %2702 = vmatprep.mubr.f32.mxu0 0.0
    %2703 = vmatmul.mubr.f32.gmra.mrb[0].mxu0 %v2633
    %v2704 = vpop.f32.mrb[0].mxu0
    %v2705 = vadd.f32 %v2630, %v2704
    %v2706 = vpop.f32.mrb[0].mxu0
    %2707 = vmatprep.mubr.f32.mxu0 0.0
    %2708 = vmatmul.mubr.f32.gmra.mrb[0].mxu0 %v2636
    %v2709 = vpop.f32.mrb[0].mxu0
    %v2710 = vadd.f32 %v2630, %v2709
    %v2711 = vpop.f32.mrb[0].mxu0
    %2712 = vdwg.mxu0
    %v2713 = vmax.f32 %v2705, 0.0
    %v2714 = vmax.f32 %v2710, 0.0
    %v2715 = vld [vmem:[%s18] sm:$0xff]
    %v2716 = vld [vmem:[%s18 + $0x8] sm:$0xff]
    %v2717 = vld [vmem:[%s18 + $0x10] sm:$0xff]
    %v2718 = vld [vmem:[%s18 + $0x18] sm:$0xff]
    %v2719 = vld [vmem:[%s18 + $0x20] sm:$0xff]
    %v2720 = vld [vmem:[%s18 + $0x28] sm:$0xff]
    %v2721 = vld [vmem:[%s18 + $0x30] sm:$0xff]
    %v2722 = vld [vmem:[%s18 + $0x38] sm:$0xff]
    %v2723 = vld [vmem:[%s18 + $0x40] sm:$0xff]
    %v2724 = vld [vmem:[%s18 + $0x48] sm:$0xff]
    %v2725 = vld [vmem:[%s18 + $0x50] sm:$0xff]
    %v2726 = vld [vmem:[%s18 + $0x58] sm:$0xff]
    %v2727 = vld [vmem:[%s18 + $0x60] sm:$0xff]
    %v2728 = vld [vmem:[%s18 + $0x68] sm:$0xff]
    %v2729 = vld [vmem:[%s18 + $0x70] sm:$0xff]
    %v2730 = vld [vmem:[%s18 + $0x78] sm:$0xff]
    %v2731 = vld [vmem:[%s19] sm:$0x1]
    %v2733 = vlaneseq
    %v2734 = vshrl.u32 %v2733, 7
    %v2735 = vsub.s32 0, %v2734
    %v2736 = vrot.slane %v2731, %v2735
    %2738 = vmatprep.subr.mxu0 0.0
    %2739 = vmatpush1.msra.mxu0 %v2715
    %2740 = vmatprep.subr.mxu0 0.0
    %2741 = vmatpush1.msra.mxu0 %v2716
    %2742 = vmatprep.subr.mxu0 0.0
    %2743 = vmatpush1.msra.mxu0 %v2717
    %2744 = vmatprep.subr.mxu0 0.0
    %2745 = vmatpush1.msra.mxu0 %v2718
    %2746 = vmatprep.subr.mxu0 0.0
    %2747 = vmatpush1.msra.mxu0 %v2719
    %2748 = vmatprep.subr.mxu0 0.0
    %2749 = vmatpush1.msra.mxu0 %v2720
    %2750 = vmatprep.subr.mxu0 0.0
    %2751 = vmatpush1.msra.mxu0 %v2721
    %2752 = vmatprep.subr.mxu0 0.0
    %2753 = vmatpush1.msra.mxu0 %v2722
    %2754 = vmatprep.subr.mxu0 0.0
    %2755 = vmatpush1.msra.mxu0 %v2723
    %2756 = vmatprep.subr.mxu0 0.0
    %2757 = vmatpush1.msra.mxu0 %v2724
    %2758 = vmatprep.subr.mxu0 0.0
    %2759 = vmatpush1.msra.mxu0 %v2725
    %2760 = vmatprep.subr.mxu0 0.0
    %2761 = vmatpush1.msra.mxu0 %v2726
    %2762 = vmatprep.subr.mxu0 0.0
    %2763 = vmatpush1.msra.mxu0 %v2727
    %2764 = vmatprep.subr.mxu0 0.0
    %2765 = vmatpush1.msra.mxu0 %v2728
    %2766 = vmatprep.subr.mxu0 0.0
    %2767 = vmatpush1.msra.mxu0 %v2729
    %2768 = vmatprep.subr.mxu0 0.0
    %2769 = vmatpush1.msra.mxu0 %v2730
    %2770 = vmatprep.subr.mxu0 0.0
    %2771 = vmatpush1.msra.mxu0 0.0
    %2772 = vmatprep.subr.mxu0 0.0
    %2773 = vmatpush1.msra.mxu0 0.0
    %2774 = vmatprep.subr.mxu0 0.0
    %2775 = vmatpush1.msra.mxu0 0.0
    %2776 = vmatprep.subr.mxu0 0.0
    %2777 = vmatpush1.msra.mxu0 0.0
    %2778 = vmatprep.subr.mxu0 0.0
    %2779 = vmatpush1.msra.mxu0 0.0
    %2780 = vmatprep.subr.mxu0 0.0
    %2781 = vmatpush1.msra.mxu0 0.0
    %2782 = vmatprep.subr.mxu0 0.0
    %2783 = vmatpush1.msra.mxu0 0.0
    %2784 = vmatprep.subr.mxu0 0.0
    %2785 = vmatpush1.msra.mxu0 0.0
    %2786 = vmatprep.subr.mxu0 0.0
    %2787 = vmatpush1.msra.mxu0 0.0
    %2788 = vmatprep.subr.mxu0 0.0
    %2789 = vmatpush1.msra.mxu0 0.0
    %2790 = vmatprep.subr.mxu0 0.0
    %2791 = vmatpush1.msra.mxu0 0.0
    %2792 = vmatprep.subr.mxu0 0.0
    %2793 = vmatpush1.msra.mxu0 0.0
    %2794 = vmatprep.subr.mxu0 0.0
    %2795 = vmatpush1.msra.mxu0 0.0
    %2796 = vmatprep.subr.mxu0 0.0
    %2797 = vmatpush1.msra.mxu0 0.0
    %2798 = vmatprep.subr.mxu0 0.0
    %2799 = vmatpush1.msra.mxu0 0.0
    %2800 = vmatprep.subr.mxu0 0.0
    %2801 = vmatpush1.msra.mxu0 0.0
    %2802 = vmatprep.mubr.f32.mxu0 0.0
    %2803 = vmatmul.mubr.f32.gmra.mrb[0].mxu0 %v2713
    %v2804 = vpop.f32.mrb[0].mxu0
    %v2805 = vadd.f32 %v2736, %v2804
    %v2806 = vpop.f32.mrb[0].mxu0
    %2807 = vmatprep.mubr.f32.mxu0 0.0
    %2808 = vmatmul.mubr.f32.gmra.mrb[0].mxu0 %v2714
    %v2809 = vpop.f32.mrb[0].mxu0
    %v2810 = vadd.f32 %v2736, %v2809
    %v2811 = vpop.f32.mrb[0].mxu0
    %2812 = vdwg.mxu0
    %v2813 = vadd.f32 %v2619, %v2805
    %v2814 = vadd.f32 %v2620, %v2810
    %v2815 = vld [vmem:[%s20] sm:$0x1]
    %v2816 = vld [vmem:[%s21] sm:$0x1]
    %v2817 = vsel %vm250, %v2813, 0.0
    %2818 = vadd.xlane.f32.xlu0 %v2817
    %v2819 = vpop.xlane.xlu0 %2818
    %v2820 = vsel %vm250, %v2814, 0.0
    %2821 = vadd.xlane.f32.xlu0 %v2820
    %v2822 = vpop.xlane.xlu0 %2821
    %v2823 = vmul.f32 %v2819, %v1440
    %v2824 = vmul.f32 %v2822, %v1440
    %v2825 = vsub.f32 %v2813, %v2823
    %v2826 = vsub.f32 %v2814, %v2824
    %v2827 = vmul.f32 %v2825, %v2825
    %v2828 = vmul.f32 %v2826, %v2826
    %v2829 = vsel %vm250, %v2827, 0.0
    %2830 = vadd.xlane.f32.xlu0 %v2829
    %v2831 = vpop.xlane.xlu0 %2830
    %v2832 = vsel %vm250, %v2828, 0.0
    %2833 = vadd.xlane.f32.xlu0 %v2832
    %v2834 = vpop.xlane.xlu0 %2833
    %v2835 = vmul.f32 %v2831, %v1440
    %v2836 = vmul.f32 %v2834, %v1440
    %v2837 = vadd.f32 %v2835, 1e-05
    %v2838 = vadd.f32 %v2836, 1e-05
    %v2839 = vrsqrt.pop %v2837
    %v2840 = vrsqrt.pop %v2838
    %v2841 = vmul.f32 %v2825, %v2839
    %v2842 = vmul.f32 %v2826, %v2840
    %v2844 = vlaneseq
    %v2845 = vshrl.u32 %v2844, 7
    %v2846 = vsub.s32 0, %v2845
    %v2847 = vrot.slane %v2815, %v2846
    %v2849 = vmul.f32 %v2847, %v2841
    %v2850 = vmul.f32 %v2847, %v2842
    %v2852 = vlaneseq
    %v2853 = vshrl.u32 %v2852, 7
    %v2854 = vsub.s32 0, %v2853
    %v2855 = vrot.slane %v2816, %v2854
    %v2857 = vadd.f32 %v2849, %v2855
    %v2858 = vadd.f32 %v2850, %v2855
    %v2861 = vrot.slane %v2857, 1
    %v2862 = vrot.slane %v2858, 1
    %2863 = vrot.lane.b32.xlu0 %v2861, 32
    %v2864 = vpop.permute.xlu0 %2863
    %2865 = vrot.lane.b32.xlu0 %v2862, 32
    %v2866 = vpop.permute.xlu0 %2865
    %v2869 = vrot.slane %v2857, 2
    %v2870 = vrot.slane %v2858, 2
    %2871 = vrot.lane.b32.xlu0 %v2869, 64
    %v2872 = vpop.permute.xlu0 %2871
    %2873 = vrot.lane.b32.xlu0 %v2870, 64
    %v2874 = vpop.permute.xlu0 %2873
    %v2877 = vrot.slane %v2857, 3
    %v2878 = vrot.slane %v2858, 3
    %2879 = vrot.lane.b32.xlu0 %v2877, 96
    %v2880 = vpop.permute.xlu0 %2879
    %2881 = vrot.lane.b32.xlu0 %v2878, 96
    %v2882 = vpop.permute.xlu0 %2881
    %v2885 = vrot.slane %v2857, 4
    %v2886 = vrot.slane %v2858, 4
    %v2889 = vrot.slane %v2857, 5
    %v2890 = vrot.slane %v2858, 5
    %2891 = vrot.lane.b32.xlu0 %v2889, 32
    %v2892 = vpop.permute.xlu0 %2891
    %2893 = vrot.lane.b32.xlu0 %v2890, 32
    %v2894 = vpop.permute.xlu0 %2893
    %v2897 = vrot.slane %v2857, 6
    %v2898 = vrot.slane %v2858, 6
    %2899 = vrot.lane.b32.xlu0 %v2897, 64
    %v2900 = vpop.permute.xlu0 %2899
    %2901 = vrot.lane.b32.xlu0 %v2898, 64
    %v2902 = vpop.permute.xlu0 %2901
    %v2905 = vrot.slane %v2857, 7
    %v2906 = vrot.slane %v2858, 7
    %2907 = vrot.lane.b32.xlu0 %v2905, 96
    %v2908 = vpop.permute.xlu0 %2907
    %2909 = vrot.lane.b32.xlu0 %v2906, 96
    %v2910 = vpop.permute.xlu0 %2909
    %v2913 = vsel %vm250, %v2857, %v2864
    %v2914 = vsel %vm250, %v2858, %v2866
    %vm2915 = vcmask 523264
    %v2916 = vsel %vm2915, %v2913, %v2872
    %v2917 = vsel %vm2915, %v2914, %v2874
    %vm2918 = vcmask 785408
    %v2919 = vsel %vm2918, %v2916, %v2880
    %v2920 = vsel %vm2918, %v2917, %v2882
    %v2921 = vsel %vm250, %v2885, %v2892
    %v2922 = vsel %vm250, %v2886, %v2894
    %v2923 = vsel %vm2915, %v2921, %v2900
    %v2924 = vsel %vm2915, %v2922, %v2902
    %v2925 = vsel %vm2918, %v2923, %v2908
    %v2926 = vsel %vm2918, %v2924, %v2910
    %v2931 = vcombine.low %v2919, %v2925
    %v2933 = vunpack.c.l.s4 1966171168
    %v2934 = vunpack.c.0.s8 %v2933
    %v2935 = vlaneseq
    %v2936 = vshrl.u32 %v2935, 7
    %v2937 = vsub.s32 %v2934, %v2936
    %v2938 = vrot.slane %v2931, %v2937
    %v2940 = vunpack.c.l.s4 1966171168
    %v2941 = vunpack.c.0.s8 %v2940
    %v2942 = vlaneseq
    %v2943 = vshrl.u32 %v2942, 7
    %v2944 = vsub.s32 %v2941, %v2943
    %v2945 = vrot.slane %v2938, %v2944
    %v2946 = vcombine.low %v2920, %v2926
    %v2948 = vunpack.c.l.s4 1966171168
    %v2949 = vunpack.c.0.s8 %v2948
    %v2950 = vlaneseq
    %v2951 = vshrl.u32 %v2950, 7
    %v2952 = vsub.s32 %v2949, %v2951
    %v2953 = vrot.slane %v2946, %v2952
    %v2955 = vunpack.c.l.s4 1966171168
    %v2956 = vunpack.c.0.s8 %v2955
    %v2957 = vlaneseq
    %v2958 = vshrl.u32 %v2957, 7
    %v2959 = vsub.s32 %v2956, %v2958
    %v2960 = vrot.slane %v2953, %v2959
    %v2963 = vlaneseq
    %vm2964 = vcmp.ge.s32.totalorder %v2963, 0
    %vm2965 = vcmp.lt.s32.totalorder %v2963, 256
    %vm2966 = vmand %vm2964, %vm2965
    %2967 = vst.msk [vmem:[#allocation22] sm:$0x3] %vm2966, %v2945
    %2968 = vst.msk [vmem:[#allocation22 + $0x2] sm:$0x3] %vm2966, %v2960
    // Predicated region
    $region138: #{tpu_custom_call.1} parent=1 // pred_check
      _
    $region139: #{tpu_custom_call.1} parent=1 // pred_check_branch
      %2970 = sbr.rel (0) target = $region141
    $region140: #{tpu_custom_call.1} parent=1 // pred_region
      %s2972 = ssub.s32 64, 64
      %2973 = vsyncadd [#allocation4], %s2972
      %s2974 = sshll.u32 [#allocation22], 4
      %s2975 = int_to_ptr.vmem [resolvable:$true] %s2974
      %2980 = dma.vmem_to_hbm [thread:$0]  %s2975, 64, %s22, [#allocation4], 32, 32, 2
    $region141: #{tpu_custom_call.1} parent=1 // pred_fallthru
      _
    // Predicated region
    $region142: #{tpu_custom_call.1} parent=1 // pred_check
      _
    $region143: #{tpu_custom_call.1} parent=1 // pred_check_branch
      %2982 = sbr.rel (0) target = $region145
    $region144: #{tpu_custom_call.1} parent=1 // pred_region
      %2983 = dma.done [#allocation4], 64
    $region145: #{tpu_custom_call.1} parent=1 // pred_fallthru
      _
    %2984 = vsyncpa [#allocation3], 1
    %2985 = vsyncpa [#allocation6], 1
    %2986 = vsyncpa [#allocation9], 1
    %2987 = vsyncpa [#allocation12], 1
    %2988 = vsyncpa [#allocation15], 1
    %2989 = vsyncpa [#allocation18], 1
    %2990 = vsyncpa [#allocation21], 1
    %2991 = vsyncpa [#allocation4], 1

</llo_original>
